<compile_context>
chip_gen: v7x
topology: tpu7x:2x2x1
jax: 0.10.0
libtpu: 0.0.40
codegen_flags: <defaults>
</compile_context>

<pallas_src>
import functools

import jax
import jax.numpy as jnp
from jax import lax
from jax.experimental import pallas as pl
from jax.experimental.pallas import tpu as pltpu


# ----------------------------------------------------------------------------
# padding helpers (hardware tiles: sublane=8, lane=128)
# ----------------------------------------------------------------------------
def _rup(x, m):
    return ((x + m - 1) // m) * m


def _pad_axis(x, axis, target, value=None):
    pad = target - x.shape[axis]
    if pad <= 0:
        return x
    widths = [(0, 0)] * x.ndim
    widths[axis] = (0, pad)
    if value is None:
        return jnp.pad(x, widths)
    return jnp.pad(x, widths, constant_values=value)


def _pad_gru_w(w, in_p, Hp, H):
    # w: (in, 3H), gate layout [r|z|n] each H wide -> (in_p, 3Hp), zero padded
    # per-gate so gate slicing at Hp boundaries stays correct.
    parts = []
    for g in range(3):
        p = w[:, g * H:(g + 1) * H]
        parts.append(_pad_axis(_pad_axis(p, 0, in_p), 1, Hp))
    return jnp.concatenate(parts, axis=1)


def _pad_gru_b(b, Hp, H):
    parts = []
    for g in range(3):
        parts.append(_pad_axis(b[:, g * H:(g + 1) * H], 1, Hp))
    return jnp.concatenate(parts, axis=1)


# ----------------------------------------------------------------------------
# Encoder kernel: GRU recurrence only (input gates precomputed in the wrapper).
# grid = (T // block_t,), block_t timesteps per grid step, hidden carried in
# VMEM scratch.  Output written directly in (B, T, H) layout for the decoder.
# ----------------------------------------------------------------------------
def _encoder_kernel(gi_ref, wh_ref, bh_ref, out_ref, hfin_ref, h_scratch):
    @pl.when(pl.program_id(0) == 0)
    def _():
        h_scratch[...] = jnp.zeros_like(h_scratch)

    Hp = h_scratch.shape[-1]
    TT = gi_ref.shape[0]

    h = h_scratch[...]                       # (Bp, Hp)
    wh = wh_ref[...]                         # (Hp, 3Hp)
    bh = bh_ref[...]                         # (1, 3Hp)

    for tt in range(TT):                     # static unrolled inner time loop
        gi = gi_ref[tt]                      # (Bp, 3Hp) precomputed x@Wi + bi
        gh = jnp.dot(h, wh, preferred_element_type=jnp.float32) + bh
        r = jax.nn.sigmoid(gi[:, :Hp] + gh[:, :Hp])
        z = jax.nn.sigmoid(gi[:, Hp:2 * Hp] + gh[:, Hp:2 * Hp])
        n = jnp.tanh(gi[:, 2 * Hp:] + r * gh[:, 2 * Hp:])
        h = (1.0 - z) * n + z * h
        out_ref[:, tt:tt + 1, :] = h[:, None, :]

    h_scratch[...] = h
    hfin_ref[...] = h                        # last write == final hidden


def run_encoder(gi_all, wh, bh, *, block_t):
    T, Bp, G = gi_all.shape
    Hp = G // 3
    return pl.pallas_call(
        _encoder_kernel,
        out_shape=(jax.ShapeDtypeStruct((Bp, T, Hp), jnp.float32),
                   jax.ShapeDtypeStruct((Bp, Hp), jnp.float32)),
        grid_spec=pltpu.PrefetchScalarGridSpec(
            num_scalar_prefetch=0,
            grid=(T // block_t,),
            in_specs=[
                pl.BlockSpec((block_t, Bp, G), lambda tb: (tb, 0, 0)),
                pl.BlockSpec((Hp, G), lambda tb: (0, 0)),
                pl.BlockSpec((1, G), lambda tb: (0, 0)),
            ],
            out_specs=(
                pl.BlockSpec((Bp, block_t, Hp), lambda tb: (0, tb, 0)),
                pl.BlockSpec((Bp, Hp), lambda tb: (0, 0)),
            ),
            scratch_shapes=[pltpu.VMEM((Bp, Hp), jnp.float32)],
        ),
        compiler_params=pltpu.CompilerParams(
            dimension_semantics=("arbitrary",),
            vmem_limit_bytes=32 * 1024 * 1024),
    )(gi_all, wh, bh)


# ----------------------------------------------------------------------------
# Decoder kernel: per-step MXU attention + GRU + output projection + greedy
# argmax.  grid = (T,).  Hidden and previous-token one-hot carried in VMEM.
# ----------------------------------------------------------------------------
def _decoder_kernel(enc_ref, mask_ref, h0_ref, emb_ref,
                    wie_ref, wic_ref, wh_ref, bi_ref, bh_ref,
                    woh_ref, woc_ref, bo_ref,
                    out_ref, attn_ref, h_scratch, oh_scratch):
    t = pl.program_id(0)
    Bp, Hp = h_scratch.shape
    Lp = oh_scratch.shape[-1]

    iota_l = lax.broadcasted_iota(jnp.int32, (Bp, Lp), 1)

    @pl.when(t == 0)
    def _():
        h_scratch[...] = h0_ref[...]                          # hidden[:dec_layers]
        oh_scratch[...] = (iota_l == 0).astype(jnp.float32)   # start token 0

    h = h_scratch[...]                                        # (Bp, Hp)
    prev_oh = oh_scratch[...]                                 # (Bp, Lp)

    # embedding of previous greedy token via one-hot matmul (MXU)
    embedded = jnp.dot(prev_oh, emb_ref[...],
                       preferred_element_type=jnp.float32)    # (Bp, Hp)

    # dot-product attention in lane-dense (B, T) layout, batched MXU matmuls
    enc = enc_ref[...]                                        # (Bp, T, Hp)
    s = jnp.einsum('bqh,bth->bqt', h[:, None, :], enc,
                   preferred_element_type=jnp.float32)        # (Bp, 1, T)
    mask3 = mask_ref[...][:, None, :]                         # (Bp, 1, T)
    s = jnp.where(mask3 > 0.5, s, -1e30)
    m = jnp.max(s, axis=-1, keepdims=True)
    e = jnp.exp(s - m)
    attn3 = e / jnp.sum(e, axis=-1, keepdims=True)            # (Bp, 1, T)
    ctx = jnp.einsum('bqt,bth->bqh', attn3, enc,
                     preferred_element_type=jnp.float32)[:, 0, :]   # (Bp, Hp)

    # GRU cell over [embedded ; context] via split (accumulated) matmuls
    gi = (jnp.dot(embedded, wie_ref[...], preferred_element_type=jnp.float32)
          + jnp.dot(ctx, wic_ref[...], preferred_element_type=jnp.float32)
          + bi_ref[...])
    gh = jnp.dot(h, wh_ref[...], preferred_element_type=jnp.float32) + bh_ref[...]
    r = jax.nn.sigmoid(gi[:, :Hp] + gh[:, :Hp])
    z = jax.nn.sigmoid(gi[:, Hp:2 * Hp] + gh[:, Hp:2 * Hp])
    n = jnp.tanh(gi[:, 2 * Hp:] + r * gh[:, 2 * Hp:])
    h_new = (1.0 - z) * n + z * h

    # output projection over [h_new ; context] (lane-dense Lp, split matmuls)
    logits = (jnp.dot(h_new, woh_ref[...], preferred_element_type=jnp.float32)
              + jnp.dot(ctx, woc_ref[...], preferred_element_type=jnp.float32)
              + bo_ref[...])                                  # (Bp, Lp)

    out_ref[0] = logits                                       # outputs[t]
    attn_ref[0] = attn3[:, 0, :]                              # attention[t] (B,T)

    # greedy feedback (output.max(1)[1]); padded label cols carry -1e9 bias
    maxval = jnp.max(logits, axis=1, keepdims=True)
    idx = jnp.min(jnp.where(logits >= maxval, iota_l, Lp), axis=1, keepdims=True)
    oh_scratch[...] = (iota_l == idx).astype(jnp.float32)
    h_scratch[...] = h_new


def run_decoder(enc_out, mask_bt, h0, dec_emb,
                wi_e, wi_c, wh, bi, bh, wo_h, wo_c, bo):
    Bp, T, Hp = enc_out.shape
    Lp = dec_emb.shape[0]
    G = 3 * Hp
    return pl.pallas_call(
        _decoder_kernel,
        out_shape=(jax.ShapeDtypeStruct((T, Bp, Lp), jnp.float32),
                   jax.ShapeDtypeStruct((T, Bp, T), jnp.float32)),
        grid_spec=pltpu.PrefetchScalarGridSpec(
            num_scalar_prefetch=0,
            grid=(T,),
            in_specs=[
                pl.BlockSpec((Bp, T, Hp), lambda t: (0, 0, 0)),  # encoder outputs
                pl.BlockSpec((Bp, T), lambda t: (0, 0)),          # source mask
                pl.BlockSpec((Bp, Hp), lambda t: (0, 0)),         # initial hidden
                pl.BlockSpec((Lp, Hp), lambda t: (0, 0)),         # decoder embedding
                pl.BlockSpec((Hp, G), lambda t: (0, 0)),          # wi (embedded part)
                pl.BlockSpec((Hp, G), lambda t: (0, 0)),          # wi (context part)
                pl.BlockSpec((Hp, G), lambda t: (0, 0)),          # wh
                pl.BlockSpec((1, G), lambda t: (0, 0)),           # bi
                pl.BlockSpec((1, G), lambda t: (0, 0)),           # bh
                pl.BlockSpec((Hp, Lp), lambda t: (0, 0)),         # wo (hidden part)
                pl.BlockSpec((Hp, Lp), lambda t: (0, 0)),         # wo (context part)
                pl.BlockSpec((1, Lp), lambda t: (0, 0)),          # bo
            ],
            out_specs=(
                pl.BlockSpec((1, Bp, Lp), lambda t: (t, 0, 0)),
                pl.BlockSpec((1, Bp, T), lambda t: (t, 0, 0)),
            ),
            scratch_shapes=[pltpu.VMEM((Bp, Hp), jnp.float32),
                            pltpu.VMEM((Bp, Lp), jnp.float32)],
        ),
        compiler_params=pltpu.CompilerParams(
            dimension_semantics=("arbitrary",),
            vmem_limit_bytes=32 * 1024 * 1024),
    )(enc_out, mask_bt, h0, dec_emb, wi_e, wi_c, wh, bi, bh, wo_h, wo_c, bo)


# ----------------------------------------------------------------------------
# Seq2Seq forward (testing=True path): returns (outputs, attention)
#   outputs   : (batch, max_len, label_size)
#   attention : (max_len, batch, max_len)
# ----------------------------------------------------------------------------
@functools.partial(jax.jit, static_argnames=())
def seq2seq_forward(params, source, source_length):
    del source_length  # only used by pack_padded_sequence in the reference
    B, T = source.shape
    H = params["enc_wh"].shape[0]
    L = params["dec_emb"].shape[0]
    Bp, Hp, Lp = _rup(B, 8), _rup(H, 128), _rup(L, 128)

    # --- pad params to hardware tile shapes (per-gate for GRU matrices) ---
    enc_emb = _pad_axis(params["enc_emb"], 1, Hp)
    enc_wi = _pad_gru_w(params["enc_wi"], Hp, Hp, H)
    enc_wh = _pad_gru_w(params["enc_wh"], Hp, Hp, H)
    enc_bi = _pad_gru_b(params["enc_bi"], Hp, H)
    enc_bh = _pad_gru_b(params["enc_bh"], Hp, H)

    dec_emb = _pad_axis(_pad_axis(params["dec_emb"], 0, Lp), 1, Hp)
    wi = params["dec_wi"]                                    # (2H, 3H)
    wi_e = _pad_gru_w(wi[:H], Hp, Hp, H)
    wi_c = _pad_gru_w(wi[H:], Hp, Hp, H)
    dec_wh = _pad_gru_w(params["dec_wh"], Hp, Hp, H)
    dec_bi = _pad_gru_b(params["dec_bi"], Hp, H)
    dec_bh = _pad_gru_b(params["dec_bh"], Hp, H)
    wo = params["dec_wo"]                                    # (2H, L)
    wo_h = _pad_axis(_pad_axis(wo[:H], 0, Hp), 1, Lp)
    wo_c = _pad_axis(_pad_axis(wo[H:], 0, Hp), 1, Lp)
    bo = _pad_axis(params["dec_bo"], 1, Lp, value=-1e9)      # block padded labels

    # --- pad batch; source_mask = source > 0, kept lane-dense as (B, T) ---
    source_p = _pad_axis(source, 0, Bp)                      # (Bp, T), pad token 0
    mask_bt = (source_p > 0).astype(jnp.float32)             # (Bp, T)

    # --- hoisted encoder input-gate matmul (one large MXU matmul) ---
    src_emb = jnp.take(enc_emb, source_p, axis=0)            # (Bp, T, Hp)
    gi_all = jnp.einsum('bth,hg->tbg', src_emb, enc_wi,
                        preferred_element_type=jnp.float32) + enc_bi   # (T,Bp,3Hp)

    block_t = 8 if T % 8 == 0 else T
    enc_out, h_final = run_encoder(gi_all, enc_wh, enc_bh, block_t=block_t)

    outputs_p, attention_p = run_decoder(
        enc_out, mask_bt, h_final, dec_emb,
        wi_e, wi_c, dec_wh, dec_bi, dec_bh, wo_h, wo_c, bo)

    # testing branch: outputs = outputs.transpose(0, 1); strip padding
    outputs = jnp.transpose(outputs_p[:, :B, :L], (1, 0, 2))  # (B, T, L)
    attention = attention_p[:, :B, :]                         # (T, B, T)
    return outputs, attention


def init_params(key, vocab, label_size, hidden):
    ks = jax.random.split(key, 12)
    s = 1.0 / jnp.sqrt(hidden)
    u = lambda k, shp, sc: jax.random.uniform(k, shp, jnp.float32, -sc, sc)
    return {
        "enc_emb": u(ks[0], (vocab, hidden), 1.0),
        "enc_wi": u(ks[1], (hidden, 3 * hidden), s),
        "enc_wh": u(ks[2], (hidden, 3 * hidden), s),
        "enc_bi": u(ks[3], (1, 3 * hidden), s),
        "enc_bh": u(ks[4], (1, 3 * hidden), s),
        "dec_emb": u(ks[5], (label_size, hidden), 1.0),
        "dec_wi": u(ks[6], (2 * hidden, 3 * hidden), s),
        "dec_wh": u(ks[7], (hidden, 3 * hidden), s),
        "dec_bi": u(ks[8], (1, 3 * hidden), s),
        "dec_bh": u(ks[9], (1, 3 * hidden), s),
        "dec_wo": u(ks[10], (2 * hidden, label_size), s),
        "dec_bo": u(ks[11], (1, label_size), s),
    }


if __name__ == "__main__":
    B, T, H, V, L = 2, 8, 32, 16, 16   # batch, max_len, hidden, vocab, label_size

    key = jax.random.PRNGKey(0)
    k_tok, k_par = jax.random.split(key)
    source = jax.random.randint(k_tok, (B, T), 0, V).astype(jnp.int32)  # (batch, max_len)
    source_length = jnp.full((B,), T, dtype=jnp.int32)
    params = init_params(k_par, V, L, H)

    outputs, attention = seq2seq_forward(params, source, source_length)
    jax.block_until_ready((outputs, attention))

    assert outputs.shape == (B, T, L)
    assert attention.shape == (T, B, T)
    assert bool(jnp.all(jnp.isfinite(outputs)))
    assert bool(jnp.all(jnp.isfinite(attention)))
    print("KERNEL_OK")
</pallas_src>

<mosaic_0001>
module attributes {stable_mosaic.version = 11 : i64} {
  func.func @_encoder_kernel(%arg0: i32, %arg1: memref<8x8x384xf32, #tpu.memory_space<vmem>>, %arg2: memref<128x384xf32, #tpu.memory_space<vmem>>, %arg3: memref<1x384xf32, #tpu.memory_space<vmem>>, %arg4: memref<8x8x128xf32, #tpu.memory_space<vmem>>, %arg5: memref<8x128xf32, #tpu.memory_space<vmem>>, %arg6: memref<8x128xf32, #tpu.memory_space<vmem>>) attributes {dimension_semantics = [#tpu.dimension_semantics<arbitrary>], iteration_bounds = array<i64: 1>, scalar_prefetch = 0 : i64, scratch_operands = 1 : i64, tpu.core_type = #tpu.core_type<tc>, window_params = [{transform_indices = @transform_0, window_bounds = array<i64: 8, 8, 384>}, {pipeline_mode = #tpu.pipeline_mode<synchronous>, transform_indices = @transform_1, window_bounds = array<i64: 128, 384>}, {pipeline_mode = #tpu.pipeline_mode<synchronous>, transform_indices = @transform_2, window_bounds = array<i64: 1, 384>}, {transform_indices = @transform_3, window_bounds = array<i64: 8, 8, 128>}, {pipeline_mode = #tpu.pipeline_mode<synchronous>, transform_indices = @transform_4, window_bounds = array<i64: 8, 128>}]} {
    %c0_i32 = arith.constant 0 : i32
    %0 = arith.cmpi eq, %arg0, %c0_i32 : i32
    %1 = arith.extui %0 : i1 to i32
    %c0_i32_0 = arith.constant 0 : i32
    %2 = arith.cmpi ne, %1, %c0_i32_0 : i32
    scf.if %2 {
      %cst_82 = arith.constant 0.000000e+00 : f32
      %272 = vector.broadcast %cst_82 : f32 to vector<8x128xf32>
      %c0_83 = arith.constant 0 : index
      %c0_84 = arith.constant 0 : index
      %273 = vector.load %arg6[%c0_83, %c0_84] : memref<8x128xf32, #tpu.memory_space<vmem>>, vector<8x128xf32>
      tpu.vector_store %arg6[%c0_83, %c0_84], %272 {strides = array<i32>} : memref<8x128xf32, #tpu.memory_space<vmem>>, vector<8x128xf32>,
    } else {
    }
    %c0 = arith.constant 0 : index
    %c0_1 = arith.constant 0 : index
    %3 = vector.load %arg6[%c0, %c0_1] : memref<8x128xf32, #tpu.memory_space<vmem>>, vector<8x128xf32>
    %c0_2 = arith.constant 0 : index
    %c0_3 = arith.constant 0 : index
    %4 = vector.load %arg2[%c0_2, %c0_3] : memref<128x384xf32, #tpu.memory_space<vmem>>, vector<128x384xf32>
    %c0_4 = arith.constant 0 : index
    %c0_5 = arith.constant 0 : index
    %5 = vector.load %arg3[%c0_4, %c0_5] : memref<1x384xf32, #tpu.memory_space<vmem>>, vector<1x384xf32>
    %c0_6 = arith.constant 0 : index
    %c0_7 = arith.constant 0 : index
    %c0_8 = arith.constant 0 : index
    %6 = vector.load %arg1[%c0_6, %c0_7, %c0_8] : memref<8x8x384xf32, #tpu.memory_space<vmem>>, vector<1x8x384xf32>
    %7 = vector.shape_cast %6 : vector<1x8x384xf32> to vector<8x384xf32>
    %cst = arith.constant dense<0.000000e+00> : vector<8x384xf32>
    %8 = tpu.matmul %3, %4, %cst {dimension_numbers = #tpu.dot_dimension_numbers<[1], [0], [0], [1], [0, 0, 1, 1], [], []>} : vector<8x128xf32>, vector<128x384xf32>, vector<8x384xf32> -> vector<8x384xf32>
    %9 = vector.broadcast %5 : vector<1x384xf32> to vector<8x384xf32>
    %10 = arith.addf %8, %9 : vector<8x384xf32>
    %11 = vector.extract_strided_slice %7 {offsets = [0, 0], sizes = [8, 128], strides = [1, 1]} : vector<8x384xf32> to vector<8x128xf32>
    %12 = vector.extract_strided_slice %10 {offsets = [0, 0], sizes = [8, 128], strides = [1, 1]} : vector<8x384xf32> to vector<8x128xf32>
    %13 = arith.addf %11, %12 : vector<8x128xf32>
    %14 = arith.negf %13 : vector<8x128xf32>
    %15 = math.exp %14 : vector<8x128xf32>
    %cst_9 = arith.constant 1.000000e+00 : f32
    %16 = vector.broadcast %cst_9 : f32 to vector<8x128xf32>
    %17 = arith.addf %16, %15 : vector<8x128xf32>
    %18 = arith.divf %16, %17 : vector<8x128xf32>
    %19 = vector.extract_strided_slice %7 {offsets = [0, 128], sizes = [8, 128], strides = [1, 1]} : vector<8x384xf32> to vector<8x128xf32>
    %20 = vector.extract_strided_slice %10 {offsets = [0, 128], sizes = [8, 128], strides = [1, 1]} : vector<8x384xf32> to vector<8x128xf32>
    %21 = arith.addf %19, %20 : vector<8x128xf32>
    %22 = arith.negf %21 : vector<8x128xf32>
    %23 = math.exp %22 : vector<8x128xf32>
    %cst_10 = arith.constant 1.000000e+00 : f32
    %24 = vector.broadcast %cst_10 : f32 to vector<8x128xf32>
    %25 = arith.addf %24, %23 : vector<8x128xf32>
    %26 = arith.divf %24, %25 : vector<8x128xf32>
    %27 = vector.extract_strided_slice %7 {offsets = [0, 256], sizes = [8, 128], strides = [1, 1]} : vector<8x384xf32> to vector<8x128xf32>
    %28 = vector.extract_strided_slice %10 {offsets = [0, 256], sizes = [8, 128], strides = [1, 1]} : vector<8x384xf32> to vector<8x128xf32>
    %29 = arith.mulf %18, %28 : vector<8x128xf32>
    %30 = arith.addf %27, %29 : vector<8x128xf32>
    %31 = math.tanh %30 : vector<8x128xf32>
    %cst_11 = arith.constant 1.000000e+00 : f32
    %32 = vector.broadcast %cst_11 : f32 to vector<8x128xf32>
    %33 = arith.subf %32, %26 : vector<8x128xf32>
    %34 = arith.mulf %33, %31 : vector<8x128xf32>
    %35 = arith.mulf %26, %3 : vector<8x128xf32>
    %36 = arith.addf %34, %35 : vector<8x128xf32>
    %37 = vector.shape_cast %36 : vector<8x128xf32> to vector<8x1x128xf32>
    %c0_12 = arith.constant 0 : index
    %c0_13 = arith.constant 0 : index
    %c0_14 = arith.constant 0 : index
    %38 = vector.load %arg4[%c0_12, %c0_13, %c0_14] : memref<8x8x128xf32, #tpu.memory_space<vmem>>, vector<8x1x128xf32>
    tpu.vector_store %arg4[%c0_12, %c0_13, %c0_14], %37 {strides = array<i32>} : memref<8x8x128xf32, #tpu.memory_space<vmem>>, vector<8x1x128xf32>,
    %c1 = arith.constant 1 : index
    %c0_15 = arith.constant 0 : index
    %c0_16 = arith.constant 0 : index
    %39 = vector.load %arg1[%c1, %c0_15, %c0_16] : memref<8x8x384xf32, #tpu.memory_space<vmem>>, vector<1x8x384xf32>
    %40 = vector.shape_cast %39 : vector<1x8x384xf32> to vector<8x384xf32>
    %cst_17 = arith.constant dense<0.000000e+00> : vector<8x384xf32>
    %41 = tpu.matmul %36, %4, %cst_17 {dimension_numbers = #tpu.dot_dimension_numbers<[1], [0], [0], [1], [0, 0, 1, 1], [], []>} : vector<8x128xf32>, vector<128x384xf32>, vector<8x384xf32> -> vector<8x384xf32>
    %42 = vector.broadcast %5 : vector<1x384xf32> to vector<8x384xf32>
    %43 = arith.addf %41, %42 : vector<8x384xf32>
    %44 = vector.extract_strided_slice %40 {offsets = [0, 0], sizes = [8, 128], strides = [1, 1]} : vector<8x384xf32> to vector<8x128xf32>
    %45 = vector.extract_strided_slice %43 {offsets = [0, 0], sizes = [8, 128], strides = [1, 1]} : vector<8x384xf32> to vector<8x128xf32>
    %46 = arith.addf %44, %45 : vector<8x128xf32>
    %47 = arith.negf %46 : vector<8x128xf32>
    %48 = math.exp %47 : vector<8x128xf32>
    %cst_18 = arith.constant 1.000000e+00 : f32
    %49 = vector.broadcast %cst_18 : f32 to vector<8x128xf32>
    %50 = arith.addf %49, %48 : vector<8x128xf32>
    %51 = arith.divf %49, %50 : vector<8x128xf32>
    %52 = vector.extract_strided_slice %40 {offsets = [0, 128], sizes = [8, 128], strides = [1, 1]} : vector<8x384xf32> to vector<8x128xf32>
    %53 = vector.extract_strided_slice %43 {offsets = [0, 128], sizes = [8, 128], strides = [1, 1]} : vector<8x384xf32> to vector<8x128xf32>
    %54 = arith.addf %52, %53 : vector<8x128xf32>
    %55 = arith.negf %54 : vector<8x128xf32>
    %56 = math.exp %55 : vector<8x128xf32>
    %cst_19 = arith.constant 1.000000e+00 : f32
    %57 = vector.broadcast %cst_19 : f32 to vector<8x128xf32>
    %58 = arith.addf %57, %56 : vector<8x128xf32>
    %59 = arith.divf %57, %58 : vector<8x128xf32>
    %60 = vector.extract_strided_slice %40 {offsets = [0, 256], sizes = [8, 128], strides = [1, 1]} : vector<8x384xf32> to vector<8x128xf32>
    %61 = vector.extract_strided_slice %43 {offsets = [0, 256], sizes = [8, 128], strides = [1, 1]} : vector<8x384xf32> to vector<8x128xf32>
    %62 = arith.mulf %51, %61 : vector<8x128xf32>
    %63 = arith.addf %60, %62 : vector<8x128xf32>
    %64 = math.tanh %63 : vector<8x128xf32>
    %cst_20 = arith.constant 1.000000e+00 : f32
    %65 = vector.broadcast %cst_20 : f32 to vector<8x128xf32>
    %66 = arith.subf %65, %59 : vector<8x128xf32>
    %67 = arith.mulf %66, %64 : vector<8x128xf32>
    %68 = arith.mulf %59, %36 : vector<8x128xf32>
    %69 = arith.addf %67, %68 : vector<8x128xf32>
    %70 = vector.shape_cast %69 : vector<8x128xf32> to vector<8x1x128xf32>
    %c0_21 = arith.constant 0 : index
    %c1_22 = arith.constant 1 : index
    %c0_23 = arith.constant 0 : index
    %71 = vector.load %arg4[%c0_21, %c1_22, %c0_23] : memref<8x8x128xf32, #tpu.memory_space<vmem>>, vector<8x1x128xf32>
    tpu.vector_store %arg4[%c0_21, %c1_22, %c0_23], %70 {strides = array<i32>} : memref<8x8x128xf32, #tpu.memory_space<vmem>>, vector<8x1x128xf32>,
    %c2 = arith.constant 2 : index
    %c0_24 = arith.constant 0 : index
    %c0_25 = arith.constant 0 : index
    %72 = vector.load %arg1[%c2, %c0_24, %c0_25] : memref<8x8x384xf32, #tpu.memory_space<vmem>>, vector<1x8x384xf32>
    %73 = vector.shape_cast %72 : vector<1x8x384xf32> to vector<8x384xf32>
    %cst_26 = arith.constant dense<0.000000e+00> : vector<8x384xf32>
    %74 = tpu.matmul %69, %4, %cst_26 {dimension_numbers = #tpu.dot_dimension_numbers<[1], [0], [0], [1], [0, 0, 1, 1], [], []>} : vector<8x128xf32>, vector<128x384xf32>, vector<8x384xf32> -> vector<8x384xf32>
    %75 = vector.broadcast %5 : vector<1x384xf32> to vector<8x384xf32>
    %76 = arith.addf %74, %75 : vector<8x384xf32>
    %77 = vector.extract_strided_slice %73 {offsets = [0, 0], sizes = [8, 128], strides = [1, 1]} : vector<8x384xf32> to vector<8x128xf32>
    %78 = vector.extract_strided_slice %76 {offsets = [0, 0], sizes = [8, 128], strides = [1, 1]} : vector<8x384xf32> to vector<8x128xf32>
    %79 = arith.addf %77, %78 : vector<8x128xf32>
    %80 = arith.negf %79 : vector<8x128xf32>
    %81 = math.exp %80 : vector<8x128xf32>
    %cst_27 = arith.constant 1.000000e+00 : f32
    %82 = vector.broadcast %cst_27 : f32 to vector<8x128xf32>
    %83 = arith.addf %82, %81 : vector<8x128xf32>
    %84 = arith.divf %82, %83 : vector<8x128xf32>
    %85 = vector.extract_strided_slice %73 {offsets = [0, 128], sizes = [8, 128], strides = [1, 1]} : vector<8x384xf32> to vector<8x128xf32>
    %86 = vector.extract_strided_slice %76 {offsets = [0, 128], sizes = [8, 128], strides = [1, 1]} : vector<8x384xf32> to vector<8x128xf32>
    %87 = arith.addf %85, %86 : vector<8x128xf32>
    %88 = arith.negf %87 : vector<8x128xf32>
    %89 = math.exp %88 : vector<8x128xf32>
    %cst_28 = arith.constant 1.000000e+00 : f32
    %90 = vector.broadcast %cst_28 : f32 to vector<8x128xf32>
    %91 = arith.addf %90, %89 : vector<8x128xf32>
    %92 = arith.divf %90, %91 : vector<8x128xf32>
    %93 = vector.extract_strided_slice %73 {offsets = [0, 256], sizes = [8, 128], strides = [1, 1]} : vector<8x384xf32> to vector<8x128xf32>
    %94 = vector.extract_strided_slice %76 {offsets = [0, 256], sizes = [8, 128], strides = [1, 1]} : vector<8x384xf32> to vector<8x128xf32>
    %95 = arith.mulf %84, %94 : vector<8x128xf32>
    %96 = arith.addf %93, %95 : vector<8x128xf32>
    %97 = math.tanh %96 : vector<8x128xf32>
    %cst_29 = arith.constant 1.000000e+00 : f32
    %98 = vector.broadcast %cst_29 : f32 to vector<8x128xf32>
    %99 = arith.subf %98, %92 : vector<8x128xf32>
    %100 = arith.mulf %99, %97 : vector<8x128xf32>
    %101 = arith.mulf %92, %69 : vector<8x128xf32>
    %102 = arith.addf %100, %101 : vector<8x128xf32>
    %103 = vector.shape_cast %102 : vector<8x128xf32> to vector<8x1x128xf32>
    %c0_30 = arith.constant 0 : index
    %c2_31 = arith.constant 2 : index
    %c0_32 = arith.constant 0 : index
    %104 = vector.load %arg4[%c0_30, %c2_31, %c0_32] : memref<8x8x128xf32, #tpu.memory_space<vmem>>, vector<8x1x128xf32>
    tpu.vector_store %arg4[%c0_30, %c2_31, %c0_32], %103 {strides = array<i32>} : memref<8x8x128xf32, #tpu.memory_space<vmem>>, vector<8x1x128xf32>,
    %c3 = arith.constant 3 : index
    %c0_33 = arith.constant 0 : index
    %c0_34 = arith.constant 0 : index
    %105 = vector.load %arg1[%c3, %c0_33, %c0_34] : memref<8x8x384xf32, #tpu.memory_space<vmem>>, vector<1x8x384xf32>
    %106 = vector.shape_cast %105 : vector<1x8x384xf32> to vector<8x384xf32>
    %cst_35 = arith.constant dense<0.000000e+00> : vector<8x384xf32>
    %107 = tpu.matmul %102, %4, %cst_35 {dimension_numbers = #tpu.dot_dimension_numbers<[1], [0], [0], [1], [0, 0, 1, 1], [], []>} : vector<8x128xf32>, vector<128x384xf32>, vector<8x384xf32> -> vector<8x384xf32>
    %108 = vector.broadcast %5 : vector<1x384xf32> to vector<8x384xf32>
    %109 = arith.addf %107, %108 : vector<8x384xf32>
    %110 = vector.extract_strided_slice %106 {offsets = [0, 0], sizes = [8, 128], strides = [1, 1]} : vector<8x384xf32> to vector<8x128xf32>
    %111 = vector.extract_strided_slice %109 {offsets = [0, 0], sizes = [8, 128], strides = [1, 1]} : vector<8x384xf32> to vector<8x128xf32>
    %112 = arith.addf %110, %111 : vector<8x128xf32>
    %113 = arith.negf %112 : vector<8x128xf32>
    %114 = math.exp %113 : vector<8x128xf32>
    %cst_36 = arith.constant 1.000000e+00 : f32
    %115 = vector.broadcast %cst_36 : f32 to vector<8x128xf32>
    %116 = arith.addf %115, %114 : vector<8x128xf32>
    %117 = arith.divf %115, %116 : vector<8x128xf32>
    %118 = vector.extract_strided_slice %106 {offsets = [0, 128], sizes = [8, 128], strides = [1, 1]} : vector<8x384xf32> to vector<8x128xf32>
    %119 = vector.extract_strided_slice %109 {offsets = [0, 128], sizes = [8, 128], strides = [1, 1]} : vector<8x384xf32> to vector<8x128xf32>
    %120 = arith.addf %118, %119 : vector<8x128xf32>
    %121 = arith.negf %120 : vector<8x128xf32>
    %122 = math.exp %121 : vector<8x128xf32>
    %cst_37 = arith.constant 1.000000e+00 : f32
    %123 = vector.broadcast %cst_37 : f32 to vector<8x128xf32>
    %124 = arith.addf %123, %122 : vector<8x128xf32>
    %125 = arith.divf %123, %124 : vector<8x128xf32>
    %126 = vector.extract_strided_slice %106 {offsets = [0, 256], sizes = [8, 128], strides = [1, 1]} : vector<8x384xf32> to vector<8x128xf32>
    %127 = vector.extract_strided_slice %109 {offsets = [0, 256], sizes = [8, 128], strides = [1, 1]} : vector<8x384xf32> to vector<8x128xf32>
    %128 = arith.mulf %117, %127 : vector<8x128xf32>
    %129 = arith.addf %126, %128 : vector<8x128xf32>
    %130 = math.tanh %129 : vector<8x128xf32>
    %cst_38 = arith.constant 1.000000e+00 : f32
    %131 = vector.broadcast %cst_38 : f32 to vector<8x128xf32>
    %132 = arith.subf %131, %125 : vector<8x128xf32>
    %133 = arith.mulf %132, %130 : vector<8x128xf32>
    %134 = arith.mulf %125, %102 : vector<8x128xf32>
    %135 = arith.addf %133, %134 : vector<8x128xf32>
    %136 = vector.shape_cast %135 : vector<8x128xf32> to vector<8x1x128xf32>
    %c0_39 = arith.constant 0 : index
    %c3_40 = arith.constant 3 : index
    %c0_41 = arith.constant 0 : index
    %137 = vector.load %arg4[%c0_39, %c3_40, %c0_41] : memref<8x8x128xf32, #tpu.memory_space<vmem>>, vector<8x1x128xf32>
    tpu.vector_store %arg4[%c0_39, %c3_40, %c0_41], %136 {strides = array<i32>} : memref<8x8x128xf32, #tpu.memory_space<vmem>>, vector<8x1x128xf32>,
    %c4 = arith.constant 4 : index
    %c0_42 = arith.constant 0 : index
    %c0_43 = arith.constant 0 : index
    %138 = vector.load %arg1[%c4, %c0_42, %c0_43] : memref<8x8x384xf32, #tpu.memory_space<vmem>>, vector<1x8x384xf32>
    %139 = vector.shape_cast %138 : vector<1x8x384xf32> to vector<8x384xf32>
    %cst_44 = arith.constant dense<0.000000e+00> : vector<8x384xf32>
    %140 = tpu.matmul %135, %4, %cst_44 {dimension_numbers = #tpu.dot_dimension_numbers<[1], [0], [0], [1], [0, 0, 1, 1], [], []>} : vector<8x128xf32>, vector<128x384xf32>, vector<8x384xf32> -> vector<8x384xf32>
    %141 = vector.broadcast %5 : vector<1x384xf32> to vector<8x384xf32>
    %142 = arith.addf %140, %141 : vector<8x384xf32>
    %143 = vector.extract_strided_slice %139 {offsets = [0, 0], sizes = [8, 128], strides = [1, 1]} : vector<8x384xf32> to vector<8x128xf32>
    %144 = vector.extract_strided_slice %142 {offsets = [0, 0], sizes = [8, 128], strides = [1, 1]} : vector<8x384xf32> to vector<8x128xf32>
    %145 = arith.addf %143, %144 : vector<8x128xf32>
    %146 = arith.negf %145 : vector<8x128xf32>
    %147 = math.exp %146 : vector<8x128xf32>
    %cst_45 = arith.constant 1.000000e+00 : f32
    %148 = vector.broadcast %cst_45 : f32 to vector<8x128xf32>
    %149 = arith.addf %148, %147 : vector<8x128xf32>
    %150 = arith.divf %148, %149 : vector<8x128xf32>
    %151 = vector.extract_strided_slice %139 {offsets = [0, 128], sizes = [8, 128], strides = [1, 1]} : vector<8x384xf32> to vector<8x128xf32>
    %152 = vector.extract_strided_slice %142 {offsets = [0, 128], sizes = [8, 128], strides = [1, 1]} : vector<8x384xf32> to vector<8x128xf32>
    %153 = arith.addf %151, %152 : vector<8x128xf32>
    %154 = arith.negf %153 : vector<8x128xf32>
    %155 = math.exp %154 : vector<8x128xf32>
    %cst_46 = arith.constant 1.000000e+00 : f32
    %156 = vector.broadcast %cst_46 : f32 to vector<8x128xf32>
    %157 = arith.addf %156, %155 : vector<8x128xf32>
    %158 = arith.divf %156, %157 : vector<8x128xf32>
    %159 = vector.extract_strided_slice %139 {offsets = [0, 256], sizes = [8, 128], strides = [1, 1]} : vector<8x384xf32> to vector<8x128xf32>
    %160 = vector.extract_strided_slice %142 {offsets = [0, 256], sizes = [8, 128], strides = [1, 1]} : vector<8x384xf32> to vector<8x128xf32>
    %161 = arith.mulf %150, %160 : vector<8x128xf32>
    %162 = arith.addf %159, %161 : vector<8x128xf32>
    %163 = math.tanh %162 : vector<8x128xf32>
    %cst_47 = arith.constant 1.000000e+00 : f32
    %164 = vector.broadcast %cst_47 : f32 to vector<8x128xf32>
    %165 = arith.subf %164, %158 : vector<8x128xf32>
    %166 = arith.mulf %165, %163 : vector<8x128xf32>
    %167 = arith.mulf %158, %135 : vector<8x128xf32>
    %168 = arith.addf %166, %167 : vector<8x128xf32>
    %169 = vector.shape_cast %168 : vector<8x128xf32> to vector<8x1x128xf32>
    %c0_48 = arith.constant 0 : index
    %c4_49 = arith.constant 4 : index
    %c0_50 = arith.constant 0 : index
    %170 = vector.load %arg4[%c0_48, %c4_49, %c0_50] : memref<8x8x128xf32, #tpu.memory_space<vmem>>, vector<8x1x128xf32>
    tpu.vector_store %arg4[%c0_48, %c4_49, %c0_50], %169 {strides = array<i32>} : memref<8x8x128xf32, #tpu.memory_space<vmem>>, vector<8x1x128xf32>,
    %c5 = arith.constant 5 : index
    %c0_51 = arith.constant 0 : index
    %c0_52 = arith.constant 0 : index
    %171 = vector.load %arg1[%c5, %c0_51, %c0_52] : memref<8x8x384xf32, #tpu.memory_space<vmem>>, vector<1x8x384xf32>
    %172 = vector.shape_cast %171 : vector<1x8x384xf32> to vector<8x384xf32>
    %cst_53 = arith.constant dense<0.000000e+00> : vector<8x384xf32>
    %173 = tpu.matmul %168, %4, %cst_53 {dimension_numbers = #tpu.dot_dimension_numbers<[1], [0], [0], [1], [0, 0, 1, 1], [], []>} : vector<8x128xf32>, vector<128x384xf32>, vector<8x384xf32> -> vector<8x384xf32>
    %174 = vector.broadcast %5 : vector<1x384xf32> to vector<8x384xf32>
    %175 = arith.addf %173, %174 : vector<8x384xf32>
    %176 = vector.extract_strided_slice %172 {offsets = [0, 0], sizes = [8, 128], strides = [1, 1]} : vector<8x384xf32> to vector<8x128xf32>
    %177 = vector.extract_strided_slice %175 {offsets = [0, 0], sizes = [8, 128], strides = [1, 1]} : vector<8x384xf32> to vector<8x128xf32>
    %178 = arith.addf %176, %177 : vector<8x128xf32>
    %179 = arith.negf %178 : vector<8x128xf32>
    %180 = math.exp %179 : vector<8x128xf32>
    %cst_54 = arith.constant 1.000000e+00 : f32
    %181 = vector.broadcast %cst_54 : f32 to vector<8x128xf32>
    %182 = arith.addf %181, %180 : vector<8x128xf32>
    %183 = arith.divf %181, %182 : vector<8x128xf32>
    %184 = vector.extract_strided_slice %172 {offsets = [0, 128], sizes = [8, 128], strides = [1, 1]} : vector<8x384xf32> to vector<8x128xf32>
    %185 = vector.extract_strided_slice %175 {offsets = [0, 128], sizes = [8, 128], strides = [1, 1]} : vector<8x384xf32> to vector<8x128xf32>
    %186 = arith.addf %184, %185 : vector<8x128xf32>
    %187 = arith.negf %186 : vector<8x128xf32>
    %188 = math.exp %187 : vector<8x128xf32>
    %cst_55 = arith.constant 1.000000e+00 : f32
    %189 = vector.broadcast %cst_55 : f32 to vector<8x128xf32>
    %190 = arith.addf %189, %188 : vector<8x128xf32>
    %191 = arith.divf %189, %190 : vector<8x128xf32>
    %192 = vector.extract_strided_slice %172 {offsets = [0, 256], sizes = [8, 128], strides = [1, 1]} : vector<8x384xf32> to vector<8x128xf32>
    %193 = vector.extract_strided_slice %175 {offsets = [0, 256], sizes = [8, 128], strides = [1, 1]} : vector<8x384xf32> to vector<8x128xf32>
    %194 = arith.mulf %183, %193 : vector<8x128xf32>
    %195 = arith.addf %192, %194 : vector<8x128xf32>
    %196 = math.tanh %195 : vector<8x128xf32>
    %cst_56 = arith.constant 1.000000e+00 : f32
    %197 = vector.broadcast %cst_56 : f32 to vector<8x128xf32>
    %198 = arith.subf %197, %191 : vector<8x128xf32>
    %199 = arith.mulf %198, %196 : vector<8x128xf32>
    %200 = arith.mulf %191, %168 : vector<8x128xf32>
    %201 = arith.addf %199, %200 : vector<8x128xf32>
    %202 = vector.shape_cast %201 : vector<8x128xf32> to vector<8x1x128xf32>
    %c0_57 = arith.constant 0 : index
    %c5_58 = arith.constant 5 : index
    %c0_59 = arith.constant 0 : index
    %203 = vector.load %arg4[%c0_57, %c5_58, %c0_59] : memref<8x8x128xf32, #tpu.memory_space<vmem>>, vector<8x1x128xf32>
    tpu.vector_store %arg4[%c0_57, %c5_58, %c0_59], %202 {strides = array<i32>} : memref<8x8x128xf32, #tpu.memory_space<vmem>>, vector<8x1x128xf32>,
    %c6 = arith.constant 6 : index
    %c0_60 = arith.constant 0 : index
    %c0_61 = arith.constant 0 : index
    %204 = vector.load %arg1[%c6, %c0_60, %c0_61] : memref<8x8x384xf32, #tpu.memory_space<vmem>>, vector<1x8x384xf32>
    %205 = vector.shape_cast %204 : vector<1x8x384xf32> to vector<8x384xf32>
    %cst_62 = arith.constant dense<0.000000e+00> : vector<8x384xf32>
    %206 = tpu.matmul %201, %4, %cst_62 {dimension_numbers = #tpu.dot_dimension_numbers<[1], [0], [0], [1], [0, 0, 1, 1], [], []>} : vector<8x128xf32>, vector<128x384xf32>, vector<8x384xf32> -> vector<8x384xf32>
    %207 = vector.broadcast %5 : vector<1x384xf32> to vector<8x384xf32>
    %208 = arith.addf %206, %207 : vector<8x384xf32>
    %209 = vector.extract_strided_slice %205 {offsets = [0, 0], sizes = [8, 128], strides = [1, 1]} : vector<8x384xf32> to vector<8x128xf32>
    %210 = vector.extract_strided_slice %208 {offsets = [0, 0], sizes = [8, 128], strides = [1, 1]} : vector<8x384xf32> to vector<8x128xf32>
    %211 = arith.addf %209, %210 : vector<8x128xf32>
    %212 = arith.negf %211 : vector<8x128xf32>
    %213 = math.exp %212 : vector<8x128xf32>
    %cst_63 = arith.constant 1.000000e+00 : f32
    %214 = vector.broadcast %cst_63 : f32 to vector<8x128xf32>
    %215 = arith.addf %214, %213 : vector<8x128xf32>
    %216 = arith.divf %214, %215 : vector<8x128xf32>
    %217 = vector.extract_strided_slice %205 {offsets = [0, 128], sizes = [8, 128], strides = [1, 1]} : vector<8x384xf32> to vector<8x128xf32>
    %218 = vector.extract_strided_slice %208 {offsets = [0, 128], sizes = [8, 128], strides = [1, 1]} : vector<8x384xf32> to vector<8x128xf32>
    %219 = arith.addf %217, %218 : vector<8x128xf32>
    %220 = arith.negf %219 : vector<8x128xf32>
    %221 = math.exp %220 : vector<8x128xf32>
    %cst_64 = arith.constant 1.000000e+00 : f32
    %222 = vector.broadcast %cst_64 : f32 to vector<8x128xf32>
    %223 = arith.addf %222, %221 : vector<8x128xf32>
    %224 = arith.divf %222, %223 : vector<8x128xf32>
    %225 = vector.extract_strided_slice %205 {offsets = [0, 256], sizes = [8, 128], strides = [1, 1]} : vector<8x384xf32> to vector<8x128xf32>
    %226 = vector.extract_strided_slice %208 {offsets = [0, 256], sizes = [8, 128], strides = [1, 1]} : vector<8x384xf32> to vector<8x128xf32>
    %227 = arith.mulf %216, %226 : vector<8x128xf32>
    %228 = arith.addf %225, %227 : vector<8x128xf32>
    %229 = math.tanh %228 : vector<8x128xf32>
    %cst_65 = arith.constant 1.000000e+00 : f32
    %230 = vector.broadcast %cst_65 : f32 to vector<8x128xf32>
    %231 = arith.subf %230, %224 : vector<8x128xf32>
    %232 = arith.mulf %231, %229 : vector<8x128xf32>
    %233 = arith.mulf %224, %201 : vector<8x128xf32>
    %234 = arith.addf %232, %233 : vector<8x128xf32>
    %235 = vector.shape_cast %234 : vector<8x128xf32> to vector<8x1x128xf32>
    %c0_66 = arith.constant 0 : index
    %c6_67 = arith.constant 6 : index
    %c0_68 = arith.constant 0 : index
    %236 = vector.load %arg4[%c0_66, %c6_67, %c0_68] : memref<8x8x128xf32, #tpu.memory_space<vmem>>, vector<8x1x128xf32>
    tpu.vector_store %arg4[%c0_66, %c6_67, %c0_68], %235 {strides = array<i32>} : memref<8x8x128xf32, #tpu.memory_space<vmem>>, vector<8x1x128xf32>,
    %c7 = arith.constant 7 : index
    %c0_69 = arith.constant 0 : index
    %c0_70 = arith.constant 0 : index
    %237 = vector.load %arg1[%c7, %c0_69, %c0_70] : memref<8x8x384xf32, #tpu.memory_space<vmem>>, vector<1x8x384xf32>
    %238 = vector.shape_cast %237 : vector<1x8x384xf32> to vector<8x384xf32>
    %cst_71 = arith.constant dense<0.000000e+00> : vector<8x384xf32>
    %239 = tpu.matmul %234, %4, %cst_71 {dimension_numbers = #tpu.dot_dimension_numbers<[1], [0], [0], [1], [0, 0, 1, 1], [], []>} : vector<8x128xf32>, vector<128x384xf32>, vector<8x384xf32> -> vector<8x384xf32>
    %240 = vector.broadcast %5 : vector<1x384xf32> to vector<8x384xf32>
    %241 = arith.addf %239, %240 : vector<8x384xf32>
    %242 = vector.extract_strided_slice %238 {offsets = [0, 0], sizes = [8, 128], strides = [1, 1]} : vector<8x384xf32> to vector<8x128xf32>
    %243 = vector.extract_strided_slice %241 {offsets = [0, 0], sizes = [8, 128], strides = [1, 1]} : vector<8x384xf32> to vector<8x128xf32>
    %244 = arith.addf %242, %243 : vector<8x128xf32>
    %245 = arith.negf %244 : vector<8x128xf32>
    %246 = math.exp %245 : vector<8x128xf32>
    %cst_72 = arith.constant 1.000000e+00 : f32
    %247 = vector.broadcast %cst_72 : f32 to vector<8x128xf32>
    %248 = arith.addf %247, %246 : vector<8x128xf32>
    %249 = arith.divf %247, %248 : vector<8x128xf32>
    %250 = vector.extract_strided_slice %238 {offsets = [0, 128], sizes = [8, 128], strides = [1, 1]} : vector<8x384xf32> to vector<8x128xf32>
    %251 = vector.extract_strided_slice %241 {offsets = [0, 128], sizes = [8, 128], strides = [1, 1]} : vector<8x384xf32> to vector<8x128xf32>
    %252 = arith.addf %250, %251 : vector<8x128xf32>
    %253 = arith.negf %252 : vector<8x128xf32>
    %254 = math.exp %253 : vector<8x128xf32>
    %cst_73 = arith.constant 1.000000e+00 : f32
    %255 = vector.broadcast %cst_73 : f32 to vector<8x128xf32>
    %256 = arith.addf %255, %254 : vector<8x128xf32>
    %257 = arith.divf %255, %256 : vector<8x128xf32>
    %258 = vector.extract_strided_slice %238 {offsets = [0, 256], sizes = [8, 128], strides = [1, 1]} : vector<8x384xf32> to vector<8x128xf32>
    %259 = vector.extract_strided_slice %241 {offsets = [0, 256], sizes = [8, 128], strides = [1, 1]} : vector<8x384xf32> to vector<8x128xf32>
    %260 = arith.mulf %249, %259 : vector<8x128xf32>
    %261 = arith.addf %258, %260 : vector<8x128xf32>
    %262 = math.tanh %261 : vector<8x128xf32>
    %cst_74 = arith.constant 1.000000e+00 : f32
    %263 = vector.broadcast %cst_74 : f32 to vector<8x128xf32>
    %264 = arith.subf %263, %257 : vector<8x128xf32>
    %265 = arith.mulf %264, %262 : vector<8x128xf32>
    %266 = arith.mulf %257, %234 : vector<8x128xf32>
    %267 = arith.addf %265, %266 : vector<8x128xf32>
    %268 = vector.shape_cast %267 : vector<8x128xf32> to vector<8x1x128xf32>
    %c0_75 = arith.constant 0 : index
    %c7_76 = arith.constant 7 : index
    %c0_77 = arith.constant 0 : index
    %269 = vector.load %arg4[%c0_75, %c7_76, %c0_77] : memref<8x8x128xf32, #tpu.memory_space<vmem>>, vector<8x1x128xf32>
    tpu.vector_store %arg4[%c0_75, %c7_76, %c0_77], %268 {strides = array<i32>} : memref<8x8x128xf32, #tpu.memory_space<vmem>>, vector<8x1x128xf32>,
    %c0_78 = arith.constant 0 : index
    %c0_79 = arith.constant 0 : index
    %270 = vector.load %arg6[%c0_78, %c0_79] : memref<8x128xf32, #tpu.memory_space<vmem>>, vector<8x128xf32>
    tpu.vector_store %arg6[%c0_78, %c0_79], %267 {strides = array<i32>} : memref<8x128xf32, #tpu.memory_space<vmem>>, vector<8x128xf32>,
    %c0_80 = arith.constant 0 : index
    %c0_81 = arith.constant 0 : index
    %271 = vector.load %arg5[%c0_80, %c0_81] : memref<8x128xf32, #tpu.memory_space<vmem>>, vector<8x128xf32>
    tpu.vector_store %arg5[%c0_80, %c0_81], %267 {strides = array<i32>} : memref<8x128xf32, #tpu.memory_space<vmem>>, vector<8x128xf32>,
    return
  }
  func.func @transform_0(%arg0: i32) -> (i32, i32, i32) {
    %c0_i32 = arith.constant 0 : i32
    %c0_i32_0 = arith.constant 0 : i32
    %c0_i32_1 = arith.constant 0 : i32
    return %arg0, %c0_i32, %c0_i32_0 : i32, i32, i32
  }
  func.func @transform_1(%arg0: i32) -> (i32, i32) {
    %c0_i32 = arith.constant 0 : i32
    %c0_i32_0 = arith.constant 0 : i32
    %c0_i32_1 = arith.constant 0 : i32
    return %c0_i32, %c0_i32_0 : i32, i32
  }
  func.func @transform_2(%arg0: i32) -> (i32, i32) {
    %c0_i32 = arith.constant 0 : i32
    %c0_i32_0 = arith.constant 0 : i32
    %c0_i32_1 = arith.constant 0 : i32
    return %c0_i32, %c0_i32_0 : i32, i32
  }
  func.func @transform_3(%arg0: i32) -> (i32, i32, i32) {
    %c0_i32 = arith.constant 0 : i32
    %c0_i32_0 = arith.constant 0 : i32
    %c0_i32_1 = arith.constant 0 : i32
    return %c0_i32, %arg0, %c0_i32_0 : i32, i32, i32
  }
  func.func @transform_4(%arg0: i32) -> (i32, i32) {
    %c0_i32 = arith.constant 0 : i32
    %c0_i32_0 = arith.constant 0 : i32
    %c0_i32_1 = arith.constant 0 : i32
    return %c0_i32, %c0_i32_0 : i32, i32
  }
}

module attributes {stable_mosaic.version = 11 : i64} {
  func.func @_decoder_kernel(%arg0: i32, %arg1: memref<8x8x128xf32, #tpu.memory_space<vmem>>, %arg2: memref<8x8xf32, #tpu.memory_space<vmem>>, %arg3: memref<8x128xf32, #tpu.memory_space<vmem>>, %arg4: memref<128x128xf32, #tpu.memory_space<vmem>>, %arg5: memref<128x384xf32, #tpu.memory_space<vmem>>, %arg6: memref<128x384xf32, #tpu.memory_space<vmem>>, %arg7: memref<128x384xf32, #tpu.memory_space<vmem>>, %arg8: memref<1x384xf32, #tpu.memory_space<vmem>>, %arg9: memref<1x384xf32, #tpu.memory_space<vmem>>, %arg10: memref<128x128xf32, #tpu.memory_space<vmem>>, %arg11: memref<128x128xf32, #tpu.memory_space<vmem>>, %arg12: memref<1x128xf32, #tpu.memory_space<vmem>>, %arg13: memref<1x8x128xf32, #tpu.memory_space<vmem>>, %arg14: memref<1x8x8xf32, #tpu.memory_space<vmem>>, %arg15: memref<8x128xf32, #tpu.memory_space<vmem>>, %arg16: memref<8x128xf32, #tpu.memory_space<vmem>>) attributes {dimension_semantics = [#tpu.dimension_semantics<arbitrary>], iteration_bounds = array<i64: 8>, scalar_prefetch = 0 : i64, scratch_operands = 2 : i64, tpu.core_type = #tpu.core_type<tc>, window_params = [{pipeline_mode = #tpu.pipeline_mode<synchronous>, transform_indices = @transform_0, window_bounds = array<i64: 8, 8, 128>}, {pipeline_mode = #tpu.pipeline_mode<synchronous>, transform_indices = @transform_1, window_bounds = array<i64: 8, 8>}, {pipeline_mode = #tpu.pipeline_mode<synchronous>, transform_indices = @transform_2, window_bounds = array<i64: 8, 128>}, {pipeline_mode = #tpu.pipeline_mode<synchronous>, transform_indices = @transform_3, window_bounds = array<i64: 128, 128>}, {pipeline_mode = #tpu.pipeline_mode<synchronous>, transform_indices = @transform_4, window_bounds = array<i64: 128, 384>}, {pipeline_mode = #tpu.pipeline_mode<synchronous>, transform_indices = @transform_5, window_bounds = array<i64: 128, 384>}, {pipeline_mode = #tpu.pipeline_mode<synchronous>, transform_indices = @transform_6, window_bounds = array<i64: 128, 384>}, {pipeline_mode = #tpu.pipeline_mode<synchronous>, transform_indices = @transform_7, window_bounds = array<i64: 1, 384>}, {pipeline_mode = #tpu.pipeline_mode<synchronous>, transform_indices = @transform_8, window_bounds = array<i64: 1, 384>}, {pipeline_mode = #tpu.pipeline_mode<synchronous>, transform_indices = @transform_9, window_bounds = array<i64: 128, 128>}, {pipeline_mode = #tpu.pipeline_mode<synchronous>, transform_indices = @transform_10, window_bounds = array<i64: 128, 128>}, {pipeline_mode = #tpu.pipeline_mode<synchronous>, transform_indices = @transform_11, window_bounds = array<i64: 1, 128>}, {transform_indices = @transform_12, window_bounds = array<i64: 1, 8, 128>}, {transform_indices = @transform_13, window_bounds = array<i64: 1, 8, 8>}]} {
    %0 = tpu.iota {dimensions = array<i32: 1>} : vector<8x128xi32>
    %c0_i32 = arith.constant 0 : i32
    %1 = arith.cmpi eq, %arg0, %c0_i32 : i32
    %2 = arith.extui %1 : i1 to i32
    %c0_i32_0 = arith.constant 0 : i32
    %3 = arith.cmpi ne, %2, %c0_i32_0 : i32
    scf.if %3 {
      %c0_53 = arith.constant 0 : index
      %c0_54 = arith.constant 0 : index
      %96 = vector.load %arg3[%c0_53, %c0_54] : memref<8x128xf32, #tpu.memory_space<vmem>>, vector<8x128xf32>
      %c0_55 = arith.constant 0 : index
      %c0_56 = arith.constant 0 : index
      %97 = vector.load %arg15[%c0_55, %c0_56] : memref<8x128xf32, #tpu.memory_space<vmem>>, vector<8x128xf32>
      tpu.vector_store %arg15[%c0_55, %c0_56], %96 {strides = array<i32>} : memref<8x128xf32, #tpu.memory_space<vmem>>, vector<8x128xf32>,
      %c0_i32_57 = arith.constant 0 : i32
      %98 = vector.broadcast %c0_i32_57 : i32 to vector<8x128xi32>
      %99 = arith.cmpi eq, %0, %98 : vector<8x128xi32>
      %100 = arith.extui %99 : vector<8x128xi1> to vector<8x128xi32>
      %101 = arith.sitofp %100 : vector<8x128xi32> to vector<8x128xf32>
      %c0_58 = arith.constant 0 : index
      %c0_59 = arith.constant 0 : index
      %102 = vector.load %arg16[%c0_58, %c0_59] : memref<8x128xf32, #tpu.memory_space<vmem>>, vector<8x128xf32>
      tpu.vector_store %arg16[%c0_58, %c0_59], %101 {strides = array<i32>} : memref<8x128xf32, #tpu.memory_space<vmem>>, vector<8x128xf32>,
    } else {
    }
    %c0 = arith.constant 0 : index
    %c0_1 = arith.constant 0 : index
    %4 = vector.load %arg15[%c0, %c0_1] : memref<8x128xf32, #tpu.memory_space<vmem>>, vector<8x128xf32>
    %c0_2 = arith.constant 0 : index
    %c0_3 = arith.constant 0 : index
    %5 = vector.load %arg16[%c0_2, %c0_3] : memref<8x128xf32, #tpu.memory_space<vmem>>, vector<8x128xf32>
    %c0_4 = arith.constant 0 : index
    %c0_5 = arith.constant 0 : index
    %6 = vector.load %arg4[%c0_4, %c0_5] : memref<128x128xf32, #tpu.memory_space<vmem>>, vector<128x128xf32>
    %cst = arith.constant dense<0.000000e+00> : vector<8x128xf32>
    %7 = tpu.matmul %5, %6, %cst {dimension_numbers = #tpu.dot_dimension_numbers<[1], [0], [0], [1], [0, 0, 1, 1], [], []>} : vector<8x128xf32>, vector<128x128xf32>, vector<8x128xf32> -> vector<8x128xf32>
    %c0_6 = arith.constant 0 : index
    %c0_7 = arith.constant 0 : index
    %c0_8 = arith.constant 0 : index
    %8 = vector.load %arg1[%c0_6, %c0_7, %c0_8] : memref<8x8x128xf32, #tpu.memory_space<vmem>>, vector<8x8x128xf32>
    %9 = vector.shape_cast %4 : vector<8x128xf32> to vector<8x1x128xf32>
    "tpu.trace_start"() <{level = 10 : i32, message = "bqh,bth->bqt"}> : () -> ()
    %cst_9 = arith.constant dense<0.000000e+00> : vector<8x1x8xf32>
    %10 = tpu.matmul %9, %8, %cst_9 {dimension_numbers = #tpu.dot_dimension_numbers<[2], [2], [1], [1], [0, 0, 0, 1, 1, 1], [0], [0]>} : vector<8x1x128xf32>, vector<8x8x128xf32>, vector<8x1x8xf32> -> vector<8x1x8xf32>
    "tpu.trace_stop"() : () -> ()
    %c0_10 = arith.constant 0 : index
    %c0_11 = arith.constant 0 : index
    %11 = vector.load %arg2[%c0_10, %c0_11] : memref<8x8xf32, #tpu.memory_space<vmem>>, vector<8x8xf32>
    %12 = vector.shape_cast %11 : vector<8x8xf32> to vector<8x1x8xf32>
    %cst_12 = arith.constant 5.000000e-01 : f32
    %13 = vector.broadcast %cst_12 : f32 to vector<8x1x8xf32>
    %14 = arith.cmpf ogt, %12, %13 : vector<8x1x8xf32>
    %cst_13 = arith.constant -1.000000e+30 : f32
    %15 = vector.broadcast %cst_13 : f32 to vector<8x1x8xf32>
    %16 = arith.select %14, %10, %15 : vector<8x1x8xi1>, vector<8x1x8xf32>
    %cst_14 = arith.constant dense<0xFF800000> : vector<8x1xf32>
    %17 = vector.multi_reduction <maximumf>, %16, %cst_14 [2] : vector<8x1x8xf32> to vector<8x1xf32>
    %18 = vector.shape_cast %17 : vector<8x1xf32> to vector<8x1x1xf32>
    %19 = vector.broadcast %18 : vector<8x1x1xf32> to vector<8x1x8xf32>
    %20 = arith.subf %16, %19 : vector<8x1x8xf32>
    %21 = math.exp %20 : vector<8x1x8xf32>
    %cst_15 = arith.constant dense<0.000000e+00> : vector<8x1xf32>
    %22 = vector.multi_reduction <add>, %21, %cst_15 [2] : vector<8x1x8xf32> to vector<8x1xf32>
    %23 = vector.shape_cast %22 : vector<8x1xf32> to vector<8x1x1xf32>
    %24 = vector.broadcast %23 : vector<8x1x1xf32> to vector<8x1x8xf32>
    %25 = arith.divf %21, %24 : vector<8x1x8xf32>
    "tpu.trace_start"() <{level = 10 : i32, message = "bqt,bth->bqh"}> : () -> ()
    %cst_16 = arith.constant dense<0.000000e+00> : vector<8x1x128xf32>
    %26 = tpu.matmul %25, %8, %cst_16 {dimension_numbers = #tpu.dot_dimension_numbers<[2], [1], [1], [2], [0, 0, 0, 1, 1, 2], [0], [0]>} : vector<8x1x8xf32>, vector<8x8x128xf32>, vector<8x1x128xf32> -> vector<8x1x128xf32>
    "tpu.trace_stop"() : () -> ()
    %27 = vector.shape_cast %26 : vector<8x1x128xf32> to vector<8x128xf32>
    %c0_17 = arith.constant 0 : index
    %c0_18 = arith.constant 0 : index
    %28 = vector.load %arg5[%c0_17, %c0_18] : memref<128x384xf32, #tpu.memory_space<vmem>>, vector<128x384xf32>
    %cst_19 = arith.constant dense<0.000000e+00> : vector<8x384xf32>
    %29 = tpu.matmul %7, %28, %cst_19 {dimension_numbers = #tpu.dot_dimension_numbers<[1], [0], [0], [1], [0, 0, 1, 1], [], []>} : vector<8x128xf32>, vector<128x384xf32>, vector<8x384xf32> -> vector<8x384xf32>
    %c0_20 = arith.constant 0 : index
    %c0_21 = arith.constant 0 : index
    %30 = vector.load %arg6[%c0_20, %c0_21] : memref<128x384xf32, #tpu.memory_space<vmem>>, vector<128x384xf32>
    %cst_22 = arith.constant dense<0.000000e+00> : vector<8x384xf32>
    %31 = tpu.matmul %27, %30, %cst_22 {dimension_numbers = #tpu.dot_dimension_numbers<[1], [0], [0], [1], [0, 0, 1, 1], [], []>} : vector<8x128xf32>, vector<128x384xf32>, vector<8x384xf32> -> vector<8x384xf32>
    %32 = arith.addf %29, %31 : vector<8x384xf32>
    %c0_23 = arith.constant 0 : index
    %c0_24 = arith.constant 0 : index
    %33 = vector.load %arg8[%c0_23, %c0_24] : memref<1x384xf32, #tpu.memory_space<vmem>>, vector<1x384xf32>
    %34 = vector.broadcast %33 : vector<1x384xf32> to vector<8x384xf32>
    %35 = arith.addf %32, %34 : vector<8x384xf32>
    %c0_25 = arith.constant 0 : index
    %c0_26 = arith.constant 0 : index
    %36 = vector.load %arg7[%c0_25, %c0_26] : memref<128x384xf32, #tpu.memory_space<vmem>>, vector<128x384xf32>
    %cst_27 = arith.constant dense<0.000000e+00> : vector<8x384xf32>
    %37 = tpu.matmul %4, %36, %cst_27 {dimension_numbers = #tpu.dot_dimension_numbers<[1], [0], [0], [1], [0, 0, 1, 1], [], []>} : vector<8x128xf32>, vector<128x384xf32>, vector<8x384xf32> -> vector<8x384xf32>
    %c0_28 = arith.constant 0 : index
    %c0_29 = arith.constant 0 : index
    %38 = vector.load %arg9[%c0_28, %c0_29] : memref<1x384xf32, #tpu.memory_space<vmem>>, vector<1x384xf32>
    %39 = vector.broadcast %38 : vector<1x384xf32> to vector<8x384xf32>
    %40 = arith.addf %37, %39 : vector<8x384xf32>
    %41 = vector.extract_strided_slice %35 {offsets = [0, 0], sizes = [8, 128], strides = [1, 1]} : vector<8x384xf32> to vector<8x128xf32>
    %42 = vector.extract_strided_slice %40 {offsets = [0, 0], sizes = [8, 128], strides = [1, 1]} : vector<8x384xf32> to vector<8x128xf32>
    %43 = arith.addf %41, %42 : vector<8x128xf32>
    %44 = arith.negf %43 : vector<8x128xf32>
    %45 = math.exp %44 : vector<8x128xf32>
    %cst_30 = arith.constant 1.000000e+00 : f32
    %46 = vector.broadcast %cst_30 : f32 to vector<8x128xf32>
    %47 = arith.addf %46, %45 : vector<8x128xf32>
    %48 = arith.divf %46, %47 : vector<8x128xf32>
    %49 = vector.extract_strided_slice %35 {offsets = [0, 128], sizes = [8, 128], strides = [1, 1]} : vector<8x384xf32> to vector<8x128xf32>
    %50 = vector.extract_strided_slice %40 {offsets = [0, 128], sizes = [8, 128], strides = [1, 1]} : vector<8x384xf32> to vector<8x128xf32>
    %51 = arith.addf %49, %50 : vector<8x128xf32>
    %52 = arith.negf %51 : vector<8x128xf32>
    %53 = math.exp %52 : vector<8x128xf32>
    %cst_31 = arith.constant 1.000000e+00 : f32
    %54 = vector.broadcast %cst_31 : f32 to vector<8x128xf32>
    %55 = arith.addf %54, %53 : vector<8x128xf32>
    %56 = arith.divf %54, %55 : vector<8x128xf32>
    %57 = vector.extract_strided_slice %35 {offsets = [0, 256], sizes = [8, 128], strides = [1, 1]} : vector<8x384xf32> to vector<8x128xf32>
    %58 = vector.extract_strided_slice %40 {offsets = [0, 256], sizes = [8, 128], strides = [1, 1]} : vector<8x384xf32> to vector<8x128xf32>
    %59 = arith.mulf %48, %58 : vector<8x128xf32>
    %60 = arith.addf %57, %59 : vector<8x128xf32>
    %61 = math.tanh %60 : vector<8x128xf32>
    %cst_32 = arith.constant 1.000000e+00 : f32
    %62 = vector.broadcast %cst_32 : f32 to vector<8x128xf32>
    %63 = arith.subf %62, %56 : vector<8x128xf32>
    %64 = arith.mulf %63, %61 : vector<8x128xf32>
    %65 = arith.mulf %56, %4 : vector<8x128xf32>
    %66 = arith.addf %64, %65 : vector<8x128xf32>
    %c0_33 = arith.constant 0 : index
    %c0_34 = arith.constant 0 : index
    %67 = vector.load %arg10[%c0_33, %c0_34] : memref<128x128xf32, #tpu.memory_space<vmem>>, vector<128x128xf32>
    %cst_35 = arith.constant dense<0.000000e+00> : vector<8x128xf32>
    %68 = tpu.matmul %66, %67, %cst_35 {dimension_numbers = #tpu.dot_dimension_numbers<[1], [0], [0], [1], [0, 0, 1, 1], [], []>} : vector<8x128xf32>, vector<128x128xf32>, vector<8x128xf32> -> vector<8x128xf32>
    %c0_36 = arith.constant 0 : index
    %c0_37 = arith.constant 0 : index
    %69 = vector.load %arg11[%c0_36, %c0_37] : memref<128x128xf32, #tpu.memory_space<vmem>>, vector<128x128xf32>
    %cst_38 = arith.constant dense<0.000000e+00> : vector<8x128xf32>
    %70 = tpu.matmul %27, %69, %cst_38 {dimension_numbers = #tpu.dot_dimension_numbers<[1], [0], [0], [1], [0, 0, 1, 1], [], []>} : vector<8x128xf32>, vector<128x128xf32>, vector<8x128xf32> -> vector<8x128xf32>
    %71 = arith.addf %68, %70 : vector<8x128xf32>
    %c0_39 = arith.constant 0 : index
    %c0_40 = arith.constant 0 : index
    %72 = vector.load %arg12[%c0_39, %c0_40] : memref<1x128xf32, #tpu.memory_space<vmem>>, vector<1x128xf32>
    %73 = vector.broadcast %72 : vector<1x128xf32> to vector<8x128xf32>
    %74 = arith.addf %71, %73 : vector<8x128xf32>
    %c0_41 = arith.constant 0 : index
    %c0_42 = arith.constant 0 : index
    %c0_43 = arith.constant 0 : index
    %75 = vector.load %arg13[%c0_41, %c0_42, %c0_43] : memref<1x8x128xf32, #tpu.memory_space<vmem>>, vector<1x8x128xf32>
    %76 = vector.shape_cast %75 : vector<1x8x128xf32> to vector<8x128xf32>
    %77 = vector.shape_cast %74 : vector<8x128xf32> to vector<1x8x128xf32>
    tpu.vector_store %arg13[%c0_41, %c0_42, %c0_43], %77 {strides = array<i32>} : memref<1x8x128xf32, #tpu.memory_space<vmem>>, vector<1x8x128xf32>,
    %78 = vector.shape_cast %25 : vector<8x1x8xf32> to vector<8x8xf32>
    %c0_44 = arith.constant 0 : index
    %c0_45 = arith.constant 0 : index
    %c0_46 = arith.constant 0 : index
    %79 = vector.load %arg14[%c0_44, %c0_45, %c0_46] : memref<1x8x8xf32, #tpu.memory_space<vmem>>, vector<1x8x8xf32>
    %80 = vector.shape_cast %79 : vector<1x8x8xf32> to vector<8x8xf32>
    %81 = vector.shape_cast %78 : vector<8x8xf32> to vector<1x8x8xf32>
    tpu.vector_store %arg14[%c0_44, %c0_45, %c0_46], %81 {strides = array<i32>} : memref<1x8x8xf32, #tpu.memory_space<vmem>>, vector<1x8x8xf32>,
    %cst_47 = arith.constant dense<0xFF800000> : vector<8xf32>
    %82 = vector.multi_reduction <maximumf>, %74, %cst_47 [1] : vector<8x128xf32> to vector<8xf32>
    %83 = vector.shape_cast %82 : vector<8xf32> to vector<8x1xf32>
    %84 = vector.broadcast %83 : vector<8x1xf32> to vector<8x128xf32>
    %85 = arith.cmpf oge, %74, %84 : vector<8x128xf32>
    %c128_i32 = arith.constant 128 : i32
    %86 = vector.broadcast %c128_i32 : i32 to vector<8x128xi32>
    %87 = arith.select %85, %0, %86 : vector<8x128xi1>, vector<8x128xi32>
    %cst_48 = arith.constant dense<2147483647> : vector<8xi32>
    %88 = vector.multi_reduction <minsi>, %87, %cst_48 [1] : vector<8x128xi32> to vector<8xi32>
    %89 = vector.shape_cast %88 : vector<8xi32> to vector<8x1xi32>
    %90 = vector.broadcast %89 : vector<8x1xi32> to vector<8x128xi32>
    %91 = arith.cmpi eq, %0, %90 : vector<8x128xi32>
    %92 = arith.extui %91 : vector<8x128xi1> to vector<8x128xi32>
    %93 = arith.sitofp %92 : vector<8x128xi32> to vector<8x128xf32>
    %c0_49 = arith.constant 0 : index
    %c0_50 = arith.constant 0 : index
    %94 = vector.load %arg16[%c0_49, %c0_50] : memref<8x128xf32, #tpu.memory_space<vmem>>, vector<8x128xf32>
    tpu.vector_store %arg16[%c0_49, %c0_50], %93 {strides = array<i32>} : memref<8x128xf32, #tpu.memory_space<vmem>>, vector<8x128xf32>,
    %c0_51 = arith.constant 0 : index
    %c0_52 = arith.constant 0 : index
    %95 = vector.load %arg15[%c0_51, %c0_52] : memref<8x128xf32, #tpu.memory_space<vmem>>, vector<8x128xf32>
    tpu.vector_store %arg15[%c0_51, %c0_52], %66 {strides = array<i32>} : memref<8x128xf32, #tpu.memory_space<vmem>>, vector<8x128xf32>,
    return
  }
  func.func @transform_0(%arg0: i32) -> (i32, i32, i32) {
    %c0_i32 = arith.constant 0 : i32
    %c0_i32_0 = arith.constant 0 : i32
    %c0_i32_1 = arith.constant 0 : i32
    %c0_i32_2 = arith.constant 0 : i32
    return %c0_i32, %c0_i32_0, %c0_i32_1 : i32, i32, i32
  }
  func.func @transform_1(%arg0: i32) -> (i32, i32) {
    %c0_i32 = arith.constant 0 : i32
    %c0_i32_0 = arith.constant 0 : i32
    %c0_i32_1 = arith.constant 0 : i32
    return %c0_i32, %c0_i32_0 : i32, i32
  }
  func.func @transform_2(%arg0: i32) -> (i32, i32) {
    %c0_i32 = arith.constant 0 : i32
    %c0_i32_0 = arith.constant 0 : i32
    %c0_i32_1 = arith.constant 0 : i32
    return %c0_i32, %c0_i32_0 : i32, i32
  }
  func.func @transform_3(%arg0: i32) -> (i32, i32) {
    %c0_i32 = arith.constant 0 : i32
    %c0_i32_0 = arith.constant 0 : i32
    %c0_i32_1 = arith.constant 0 : i32
    return %c0_i32, %c0_i32_0 : i32, i32
  }
  func.func @transform_4(%arg0: i32) -> (i32, i32) {
    %c0_i32 = arith.constant 0 : i32
    %c0_i32_0 = arith.constant 0 : i32
    %c0_i32_1 = arith.constant 0 : i32
    return %c0_i32, %c0_i32_0 : i32, i32
  }
  func.func @transform_5(%arg0: i32) -> (i32, i32) {
    %c0_i32 = arith.constant 0 : i32
    %c0_i32_0 = arith.constant 0 : i32
    %c0_i32_1 = arith.constant 0 : i32
    return %c0_i32, %c0_i32_0 : i32, i32
  }
  func.func @transform_6(%arg0: i32) -> (i32, i32) {
    %c0_i32 = arith.constant 0 : i32
    %c0_i32_0 = arith.constant 0 : i32
    %c0_i32_1 = arith.constant 0 : i32
    return %c0_i32, %c0_i32_0 : i32, i32
  }
  func.func @transform_7(%arg0: i32) -> (i32, i32) {
    %c0_i32 = arith.constant 0 : i32
    %c0_i32_0 = arith.constant 0 : i32
    %c0_i32_1 = arith.constant 0 : i32
    return %c0_i32, %c0_i32_0 : i32, i32
  }
  func.func @transform_8(%arg0: i32) -> (i32, i32) {
    %c0_i32 = arith.constant 0 : i32
    %c0_i32_0 = arith.constant 0 : i32
    %c0_i32_1 = arith.constant 0 : i32
    return %c0_i32, %c0_i32_0 : i32, i32
  }
  func.func @transform_9(%arg0: i32) -> (i32, i32) {
    %c0_i32 = arith.constant 0 : i32
    %c0_i32_0 = arith.constant 0 : i32
    %c0_i32_1 = arith.constant 0 : i32
    return %c0_i32, %c0_i32_0 : i32, i32
  }
  func.func @transform_10(%arg0: i32) -> (i32, i32) {
    %c0_i32 = arith.constant 0 : i32
    %c0_i32_0 = arith.constant 0 : i32
    %c0_i32_1 = arith.constant 0 : i32
    return %c0_i32, %c0_i32_0 : i32, i32
  }
  func.func @transform_11(%arg0: i32) -> (i32, i32) {
    %c0_i32 = arith.constant 0 : i32
    %c0_i32_0 = arith.constant 0 : i32
    %c0_i32_1 = arith.constant 0 : i32
    return %c0_i32, %c0_i32_0 : i32, i32
  }
  func.func @transform_12(%arg0: i32) -> (i32, i32, i32) {
    %c0_i32 = arith.constant 0 : i32
    %c0_i32_0 = arith.constant 0 : i32
    %c0_i32_1 = arith.constant 0 : i32
    return %arg0, %c0_i32, %c0_i32_0 : i32, i32, i32
  }
  func.func @transform_13(%arg0: i32) -> (i32, i32, i32) {
    %c0_i32 = arith.constant 0 : i32
    %c0_i32_0 = arith.constant 0 : i32
    %c0_i32_1 = arith.constant 0 : i32
    return %arg0, %c0_i32, %c0_i32_0 : i32, i32, i32
  }
}

</mosaic_0001>

<llo_original>
// kernel: seq2seq_forward.2
$region0: #{seq2seq_forward.2}
  #allocation0 [shape = 'u32[]', space=smem, size = 0x4, offset = 0x4, fixed_abs, tag = 'smem constant byte address 0x4 - core index']
  #allocation1 [shape = 'u32[144,128]{1,0:T(1,128)}', space=vmem, size = 0x12000, scoped, tag = 'internal scratch']
  #allocation2 [shape = 'f32[8,128]{1,0:T(8,128)}', space=vmem, size = 0x1000, scoped, tag = 'scratch operand']
  %s0 = inlined_call_operand.vmem [shape: f32[8,8,384], index: 0, kind: input, shape index: {}]
  %s1 = inlined_call_operand.vmem [shape: f32[128,384], index: 1, kind: input, shape index: {}]
  %s2 = inlined_call_operand.vmem [shape: f32[1,384], index: 2, kind: input, shape index: {}]
  %s3 = inlined_call_operand.vmem [shape: f32[8,8,128], index: 3, kind: output, shape index: {0}]
  %s4 = inlined_call_operand.vmem [shape: f32[8,128], index: 4, kind: output, shape index: {1}]
  %5 = xla_tuple %s3, %s4
  %s6 = sld [smem:[#allocation0]]
  $region34: #{seq2seq_forward.2} parent=0
    _
  %s8 = ssub.s32 1, %s6
  %s9 = scalar_select 0, %s8, %s6
  // Predicated region
  $region2: #{seq2seq_forward.2} parent=0 // pred_check
    _
  $region3: #{seq2seq_forward.2} parent=0 // pred_check_branch
    %11 = sbr.rel (0) target = $region5
  $region4: #{seq2seq_forward.2} parent=0 // pred_region
    _
  $region5: #{seq2seq_forward.2} parent=0 // pred_fallthru
    _
  // Predicated region
  $region6: #{seq2seq_forward.2} parent=0 // pred_check
    _
  $region7: #{seq2seq_forward.2} parent=0 // pred_check_branch
    %13 = sbr.rel (0) target = $region9
  $region8: #{seq2seq_forward.2} parent=0 // pred_region
    _
  $region9: #{seq2seq_forward.2} parent=0 // pred_fallthru
    _
  // Predicated region
  $region10: #{seq2seq_forward.2} parent=0 // pred_check
    _
  $region11: #{seq2seq_forward.2} parent=0 // pred_check_branch
    %15 = sbr.rel (0) target = $region13
  $region12: #{seq2seq_forward.2} parent=0 // pred_region
    _
  $region13: #{seq2seq_forward.2} parent=0 // pred_fallthru
    _
  %p16 = scmp.eq.s32.totalorder 0, 0
  // Predicated region
  $region14: #{seq2seq_forward.2} parent=0 // pred_check
    %p17 = pneg %p16
  $region15: #{seq2seq_forward.2} parent=0 // pred_check_branch
    %19 = sbr.rel (%p17) target = $region17
  $region16: #{seq2seq_forward.2} parent=0 // pred_region
    %20 = vst [vmem:[#allocation2] sm:$0xff] 0.0
  $region17: #{seq2seq_forward.2} parent=0 // pred_fallthru
    _
  %v21 = vld [vmem:[#allocation2] sm:$0xff]
  %v22 = vld [vmem:[%s1] sm:$0xff]
  %v23 = vld [vmem:[%s1 + $0x8] sm:$0xff]
  %v24 = vld [vmem:[%s1 + $0x10] sm:$0xff]
  %v25 = vld [vmem:[%s1 + $0x18] sm:$0xff]
  %v26 = vld [vmem:[%s1 + $0x20] sm:$0xff]
  %v27 = vld [vmem:[%s1 + $0x28] sm:$0xff]
  %v28 = vld [vmem:[%s1 + $0x30] sm:$0xff]
  %v29 = vld [vmem:[%s1 + $0x38] sm:$0xff]
  %v30 = vld [vmem:[%s1 + $0x40] sm:$0xff]
  %v31 = vld [vmem:[%s1 + $0x48] sm:$0xff]
  %v32 = vld [vmem:[%s1 + $0x50] sm:$0xff]
  %v33 = vld [vmem:[%s1 + $0x58] sm:$0xff]
  %v34 = vld [vmem:[%s1 + $0x60] sm:$0xff]
  %v35 = vld [vmem:[%s1 + $0x68] sm:$0xff]
  %v36 = vld [vmem:[%s1 + $0x70] sm:$0xff]
  %v37 = vld [vmem:[%s1 + $0x78] sm:$0xff]
  %v38 = vld [vmem:[%s1 + $0x80] sm:$0xff]
  %v39 = vld [vmem:[%s1 + $0x88] sm:$0xff]
  %v40 = vld [vmem:[%s1 + $0x90] sm:$0xff]
  %v41 = vld [vmem:[%s1 + $0x98] sm:$0xff]
  %v42 = vld [vmem:[%s1 + $0xa0] sm:$0xff]
  %v43 = vld [vmem:[%s1 + $0xa8] sm:$0xff]
  %v44 = vld [vmem:[%s1 + $0xb0] sm:$0xff]
  %v45 = vld [vmem:[%s1 + $0xb8] sm:$0xff]
  %v46 = vld [vmem:[%s1 + $0xc0] sm:$0xff]
  %v47 = vld [vmem:[%s1 + $0xc8] sm:$0xff]
  %v48 = vld [vmem:[%s1 + $0xd0] sm:$0xff]
  %v49 = vld [vmem:[%s1 + $0xd8] sm:$0xff]
  %v50 = vld [vmem:[%s1 + $0xe0] sm:$0xff]
  %v51 = vld [vmem:[%s1 + $0xe8] sm:$0xff]
  %v52 = vld [vmem:[%s1 + $0xf0] sm:$0xff]
  %v53 = vld [vmem:[%s1 + $0xf8] sm:$0xff]
  %v54 = vld [vmem:[%s1 + $0x100] sm:$0xff]
  %v55 = vld [vmem:[%s1 + $0x108] sm:$0xff]
  %v56 = vld [vmem:[%s1 + $0x110] sm:$0xff]
  %v57 = vld [vmem:[%s1 + $0x118] sm:$0xff]
  %v58 = vld [vmem:[%s1 + $0x120] sm:$0xff]
  %v59 = vld [vmem:[%s1 + $0x128] sm:$0xff]
  %v60 = vld [vmem:[%s1 + $0x130] sm:$0xff]
  %v61 = vld [vmem:[%s1 + $0x138] sm:$0xff]
  %v62 = vld [vmem:[%s1 + $0x140] sm:$0xff]
  %v63 = vld [vmem:[%s1 + $0x148] sm:$0xff]
  %v64 = vld [vmem:[%s1 + $0x150] sm:$0xff]
  %v65 = vld [vmem:[%s1 + $0x158] sm:$0xff]
  %v66 = vld [vmem:[%s1 + $0x160] sm:$0xff]
  %v67 = vld [vmem:[%s1 + $0x168] sm:$0xff]
  %v68 = vld [vmem:[%s1 + $0x170] sm:$0xff]
  %v69 = vld [vmem:[%s1 + $0x178] sm:$0xff]
  %v70 = vld [vmem:[%s2] sm:$0x7]
  %v71 = vld [vmem:[%s0] sm:$0xff]
  %v72 = vld [vmem:[%s0 + $0x8] sm:$0xff]
  %v73 = vld [vmem:[%s0 + $0x10] sm:$0xff]
  %v75 = vlaneseq
  %v76 = vshrl.u32 %v75, 7
  %v77 = vsub.s32 0, %v76
  %v78 = vrot.slane %v70, %v77
  %v79 = vlaneseq
  %v80 = vshrl.u32 %v79, 7
  %v81 = vsub.s32 1, %v80
  %v82 = vrot.slane %v70, %v81
  %v83 = vlaneseq
  %v84 = vshrl.u32 %v83, 7
  %v85 = vsub.s32 2, %v84
  %v86 = vrot.slane %v70, %v85
  %90 = vmatprep.subr.mxu0 %v23
  %91 = vmatpush1.msra.mxu0 %v22
  %92 = vmatprep.subr.mxu0 %v26
  %93 = vmatpush1.msra.mxu0 %v25
  %94 = vmatprep.subr.mxu0 %v29
  %95 = vmatpush1.msra.mxu0 %v28
  %96 = vmatprep.subr.mxu0 %v32
  %97 = vmatpush1.msra.mxu0 %v31
  %98 = vmatprep.subr.mxu0 %v35
  %99 = vmatpush1.msra.mxu0 %v34
  %100 = vmatprep.subr.mxu0 %v38
  %101 = vmatpush1.msra.mxu0 %v37
  %102 = vmatprep.subr.mxu0 %v41
  %103 = vmatpush1.msra.mxu0 %v40
  %104 = vmatprep.subr.mxu0 %v44
  %105 = vmatpush1.msra.mxu0 %v43
  %106 = vmatprep.subr.mxu0 %v47
  %107 = vmatpush1.msra.mxu0 %v46
  %108 = vmatprep.subr.mxu0 %v50
  %109 = vmatpush1.msra.mxu0 %v49
  %110 = vmatprep.subr.mxu0 %v53
  %111 = vmatpush1.msra.mxu0 %v52
  %112 = vmatprep.subr.mxu0 %v56
  %113 = vmatpush1.msra.mxu0 %v55
  %114 = vmatprep.subr.mxu0 %v59
  %115 = vmatpush1.msra.mxu0 %v58
  %116 = vmatprep.subr.mxu0 %v62
  %117 = vmatpush1.msra.mxu0 %v61
  %118 = vmatprep.subr.mxu0 %v65
  %119 = vmatpush1.msra.mxu0 %v64
  %120 = vmatprep.subr.mxu0 %v68
  %121 = vmatpush1.msra.mxu0 %v67
  %122 = vmatprep.subr.mxu0 0.0
  %123 = vmatpush1.msra.mxu0 0.0
  %124 = vmatprep.subr.mxu0 0.0
  %125 = vmatpush1.msra.mxu0 0.0
  %126 = vmatprep.subr.mxu0 0.0
  %127 = vmatpush1.msra.mxu0 0.0
  %128 = vmatprep.subr.mxu0 0.0
  %129 = vmatpush1.msra.mxu0 0.0
  %130 = vmatprep.subr.mxu0 0.0
  %131 = vmatpush1.msra.mxu0 0.0
  %132 = vmatprep.subr.mxu0 0.0
  %133 = vmatpush1.msra.mxu0 0.0
  %134 = vmatprep.subr.mxu0 0.0
  %135 = vmatpush1.msra.mxu0 0.0
  %136 = vmatprep.subr.mxu0 0.0
  %137 = vmatpush1.msra.mxu0 0.0
  %138 = vmatprep.subr.mxu0 0.0
  %139 = vmatpush1.msra.mxu0 0.0
  %140 = vmatprep.subr.mxu0 0.0
  %141 = vmatpush1.msra.mxu0 0.0
  %142 = vmatprep.subr.mxu0 0.0
  %143 = vmatpush1.msra.mxu0 0.0
  %144 = vmatprep.subr.mxu0 0.0
  %145 = vmatpush1.msra.mxu0 0.0
  %146 = vmatprep.subr.mxu0 0.0
  %147 = vmatpush1.msra.mxu0 0.0
  %148 = vmatprep.subr.mxu0 0.0
  %149 = vmatpush1.msra.mxu0 0.0
  %150 = vmatprep.subr.mxu0 0.0
  %151 = vmatpush1.msra.mxu0 0.0
  %152 = vmatprep.subr.mxu0 0.0
  %153 = vmatpush1.msra.mxu0 0.0
  %154 = vmatprep.mubr.f32.mxu0 0.0
  %155 = vmatmul.mubr.f32.gmra.mrb[0].mxu0 %v21
  %v156 = vpop.f32.mrb[0].mxu0
  %v157 = vadd.f32 %v78, %v156
  %v158 = vpop.f32.mrb[0].mxu0
  %v159 = vadd.f32 %v82, %v158
  %160 = vdwg.mxu0
  %161 = vmatprep.subr.mxu0 0.0
  %162 = vmatpush1.msra.mxu0 %v24
  %163 = vmatprep.subr.mxu0 0.0
  %164 = vmatpush1.msra.mxu0 %v27
  %165 = vmatprep.subr.mxu0 0.0
  %166 = vmatpush1.msra.mxu0 %v30
  %167 = vmatprep.subr.mxu0 0.0
  %168 = vmatpush1.msra.mxu0 %v33
  %169 = vmatprep.subr.mxu0 0.0
  %170 = vmatpush1.msra.mxu0 %v36
  %171 = vmatprep.subr.mxu0 0.0
  %172 = vmatpush1.msra.mxu0 %v39
  %173 = vmatprep.subr.mxu0 0.0
  %174 = vmatpush1.msra.mxu0 %v42
  %175 = vmatprep.subr.mxu0 0.0
  %176 = vmatpush1.msra.mxu0 %v45
  %177 = vmatprep.subr.mxu0 0.0
  %178 = vmatpush1.msra.mxu0 %v48
  %179 = vmatprep.subr.mxu0 0.0
  %180 = vmatpush1.msra.mxu0 %v51
  %181 = vmatprep.subr.mxu0 0.0
  %182 = vmatpush1.msra.mxu0 %v54
  %183 = vmatprep.subr.mxu0 0.0
  %184 = vmatpush1.msra.mxu0 %v57
  %185 = vmatprep.subr.mxu0 0.0
  %186 = vmatpush1.msra.mxu0 %v60
  %187 = vmatprep.subr.mxu0 0.0
  %188 = vmatpush1.msra.mxu0 %v63
  %189 = vmatprep.subr.mxu0 0.0
  %190 = vmatpush1.msra.mxu0 %v66
  %191 = vmatprep.subr.mxu0 0.0
  %192 = vmatpush1.msra.mxu0 %v69
  %193 = vmatprep.subr.mxu0 0.0
  %194 = vmatpush1.msra.mxu0 0.0
  %195 = vmatprep.subr.mxu0 0.0
  %196 = vmatpush1.msra.mxu0 0.0
  %197 = vmatprep.subr.mxu0 0.0
  %198 = vmatpush1.msra.mxu0 0.0
  %199 = vmatprep.subr.mxu0 0.0
  %200 = vmatpush1.msra.mxu0 0.0
  %201 = vmatprep.subr.mxu0 0.0
  %202 = vmatpush1.msra.mxu0 0.0
  %203 = vmatprep.subr.mxu0 0.0
  %204 = vmatpush1.msra.mxu0 0.0
  %205 = vmatprep.subr.mxu0 0.0
  %206 = vmatpush1.msra.mxu0 0.0
  %207 = vmatprep.subr.mxu0 0.0
  %208 = vmatpush1.msra.mxu0 0.0
  %209 = vmatprep.subr.mxu0 0.0
  %210 = vmatpush1.msra.mxu0 0.0
  %211 = vmatprep.subr.mxu0 0.0
  %212 = vmatpush1.msra.mxu0 0.0
  %213 = vmatprep.subr.mxu0 0.0
  %214 = vmatpush1.msra.mxu0 0.0
  %215 = vmatprep.subr.mxu0 0.0
  %216 = vmatpush1.msra.mxu0 0.0
  %217 = vmatprep.subr.mxu0 0.0
  %218 = vmatpush1.msra.mxu0 0.0
  %219 = vmatprep.subr.mxu0 0.0
  %220 = vmatpush1.msra.mxu0 0.0
  %221 = vmatprep.subr.mxu0 0.0
  %222 = vmatpush1.msra.mxu0 0.0
  %223 = vmatprep.subr.mxu0 0.0
  %224 = vmatpush1.msra.mxu0 0.0
  %225 = vmatprep.mubr.f32.mxu0 0.0
  %226 = vmatmul.mubr.f32.gmra.mrb[0].mxu0 %v21
  %v227 = vpop.f32.mrb[0].mxu0
  %v228 = vadd.f32 %v86, %v227
  %v229 = vpop.f32.mrb[0].mxu0
  %230 = vdwg.mxu0
  %v231 = vadd.f32 %v71, %v157
  %v232 = vxor.u32 %v231, 2147483648
  %v233 = vmul.f32 %v232, 1.442695
  %v234 = vpow.pop %v233
  %v235 = vadd.f32 %v234, 1.0
  %v236 = vrcp.pop %v235
  %v237 = vmul.f32 1.0, %v236
  %v238 = vadd.f32 %v72, %v159
  %v239 = vxor.u32 %v238, 2147483648
  %v240 = vmul.f32 %v239, 1.442695
  %v241 = vpow.pop %v240
  %v242 = vadd.f32 %v241, 1.0
  %v243 = vrcp.pop %v242
  %v244 = vmul.f32 1.0, %v243
  %v245 = vmul.f32 %v237, %v228
  %v246 = vadd.f32 %v73, %v245
  %v247 = vtanh.pop %v246
  %v248 = vsub.f32 1.0, %v244
  %v249 = vmul.f32 %v248, %v247
  %v250 = vmul.f32 %v244, %v21
  %v251 = vadd.f32 %v249, %v250
  %v253 = vcombine.high %v251, %v251
  %v255 = vunpack.c.l.s4 1966171168
  %v256 = vunpack.c.0.s8 %v255
  %v257 = vlaneseq
  %v258 = vshrl.u32 %v257, 7
  %v259 = vsub.s32 %v256, %v258
  %v260 = vrot.slane %v251, %v259
  %v262 = vunpack.c.l.s4 1966171168
  %v263 = vunpack.c.0.s8 %v262
  %v264 = vlaneseq
  %v265 = vshrl.u32 %v264, 7
  %v266 = vsub.s32 %v263, %v265
  %v267 = vrot.slane %v253, %v266
  %v268 = vcombine.high %v260, %v260
  %v269 = vcombine.high %v267, %v267
  %v271 = vunpack.c.l.s4 1966171168
  %v272 = vunpack.c.0.s8 %v271
  %v273 = vlaneseq
  %v274 = vshrl.u32 %v273, 7
  %v275 = vsub.s32 %v272, %v274
  %v276 = vrot.slane %v260, %v275
  %v278 = vunpack.c.l.s4 1966171168
  %v279 = vunpack.c.0.s8 %v278
  %v280 = vlaneseq
  %v281 = vshrl.u32 %v280, 7
  %v282 = vsub.s32 %v279, %v281
  %v283 = vrot.slane %v267, %v282
  %v285 = vunpack.c.l.s4 1966171168
  %v286 = vunpack.c.0.s8 %v285
  %v287 = vlaneseq
  %v288 = vshrl.u32 %v287, 7
  %v289 = vsub.s32 %v286, %v288
  %v290 = vrot.slane %v268, %v289
  %v292 = vunpack.c.l.s4 1966171168
  %v293 = vunpack.c.0.s8 %v292
  %v294 = vlaneseq
  %v295 = vshrl.u32 %v294, 7
  %v296 = vsub.s32 %v293, %v295
  %v297 = vrot.slane %v269, %v296
  %v298 = vcombine.high %v276, %v276
  %v299 = vcombine.high %v283, %v283
  %v300 = vcombine.high %v290, %v290
  %v301 = vcombine.high %v297, %v297
  %310 = vst [vmem:[%s3] sm:$0x1] %v276
  %311 = vst [vmem:[%s3 + $0x8] sm:$0x1] %v290
  %312 = vst [vmem:[%s3 + $0x10] sm:$0x1] %v298
  %313 = vst [vmem:[%s3 + $0x18] sm:$0x1] %v300
  %314 = vst [vmem:[%s3 + $0x20] sm:$0x1] %v283
  %315 = vst [vmem:[%s3 + $0x28] sm:$0x1] %v297
  %316 = vst [vmem:[%s3 + $0x30] sm:$0x1] %v299
  %317 = vst [vmem:[%s3 + $0x38] sm:$0x1] %v301
  %s318 = scalar_lea.vmem %s0, 24
  %v319 = vld [vmem:[%s318] sm:$0xff]
  %v320 = vld [vmem:[%s318 + $0x8] sm:$0xff]
  %v321 = vld [vmem:[%s318 + $0x10] sm:$0xff]
  %322 = vmatprep.subr.mxu0 %v23
  %323 = vmatpush1.msra.mxu0 %v22
  %324 = vmatprep.subr.mxu0 %v26
  %325 = vmatpush1.msra.mxu0 %v25
  %326 = vmatprep.subr.mxu0 %v29
  %327 = vmatpush1.msra.mxu0 %v28
  %328 = vmatprep.subr.mxu0 %v32
  %329 = vmatpush1.msra.mxu0 %v31
  %330 = vmatprep.subr.mxu0 %v35
  %331 = vmatpush1.msra.mxu0 %v34
  %332 = vmatprep.subr.mxu0 %v38
  %333 = vmatpush1.msra.mxu0 %v37
  %334 = vmatprep.subr.mxu0 %v41
  %335 = vmatpush1.msra.mxu0 %v40
  %336 = vmatprep.subr.mxu0 %v44
  %337 = vmatpush1.msra.mxu0 %v43
  %338 = vmatprep.subr.mxu0 %v47
  %339 = vmatpush1.msra.mxu0 %v46
  %340 = vmatprep.subr.mxu0 %v50
  %341 = vmatpush1.msra.mxu0 %v49
  %342 = vmatprep.subr.mxu0 %v53
  %343 = vmatpush1.msra.mxu0 %v52
  %344 = vmatprep.subr.mxu0 %v56
  %345 = vmatpush1.msra.mxu0 %v55
  %346 = vmatprep.subr.mxu0 %v59
  %347 = vmatpush1.msra.mxu0 %v58
  %348 = vmatprep.subr.mxu0 %v62
  %349 = vmatpush1.msra.mxu0 %v61
  %350 = vmatprep.subr.mxu0 %v65
  %351 = vmatpush1.msra.mxu0 %v64
  %352 = vmatprep.subr.mxu0 %v68
  %353 = vmatpush1.msra.mxu0 %v67
  %354 = vmatprep.subr.mxu0 0.0
  %355 = vmatpush1.msra.mxu0 0.0
  %356 = vmatprep.subr.mxu0 0.0
  %357 = vmatpush1.msra.mxu0 0.0
  %358 = vmatprep.subr.mxu0 0.0
  %359 = vmatpush1.msra.mxu0 0.0
  %360 = vmatprep.subr.mxu0 0.0
  %361 = vmatpush1.msra.mxu0 0.0
  %362 = vmatprep.subr.mxu0 0.0
  %363 = vmatpush1.msra.mxu0 0.0
  %364 = vmatprep.subr.mxu0 0.0
  %365 = vmatpush1.msra.mxu0 0.0
  %366 = vmatprep.subr.mxu0 0.0
  %367 = vmatpush1.msra.mxu0 0.0
  %368 = vmatprep.subr.mxu0 0.0
  %369 = vmatpush1.msra.mxu0 0.0
  %370 = vmatprep.subr.mxu0 0.0
  %371 = vmatpush1.msra.mxu0 0.0
  %372 = vmatprep.subr.mxu0 0.0
  %373 = vmatpush1.msra.mxu0 0.0
  %374 = vmatprep.subr.mxu0 0.0
  %375 = vmatpush1.msra.mxu0 0.0
  %376 = vmatprep.subr.mxu0 0.0
  %377 = vmatpush1.msra.mxu0 0.0
  %378 = vmatprep.subr.mxu0 0.0
  %379 = vmatpush1.msra.mxu0 0.0
  %380 = vmatprep.subr.mxu0 0.0
  %381 = vmatpush1.msra.mxu0 0.0
  %382 = vmatprep.subr.mxu0 0.0
  %383 = vmatpush1.msra.mxu0 0.0
  %384 = vmatprep.subr.mxu0 0.0
  %385 = vmatpush1.msra.mxu0 0.0
  %386 = vmatprep.mubr.f32.mxu0 0.0
  %387 = vmatmul.mubr.f32.gmra.mrb[0].mxu0 %v251
  %v388 = vpop.f32.mrb[0].mxu0
  %v389 = vadd.f32 %v78, %v388
  %v390 = vpop.f32.mrb[0].mxu0
  %v391 = vadd.f32 %v82, %v390
  %392 = vdwg.mxu0
  %393 = vmatprep.subr.mxu0 0.0
  %394 = vmatpush1.msra.mxu0 %v24
  %395 = vmatprep.subr.mxu0 0.0
  %396 = vmatpush1.msra.mxu0 %v27
  %397 = vmatprep.subr.mxu0 0.0
  %398 = vmatpush1.msra.mxu0 %v30
  %399 = vmatprep.subr.mxu0 0.0
  %400 = vmatpush1.msra.mxu0 %v33
  %401 = vmatprep.subr.mxu0 0.0
  %402 = vmatpush1.msra.mxu0 %v36
  %403 = vmatprep.subr.mxu0 0.0
  %404 = vmatpush1.msra.mxu0 %v39
  %405 = vmatprep.subr.mxu0 0.0
  %406 = vmatpush1.msra.mxu0 %v42
  %407 = vmatprep.subr.mxu0 0.0
  %408 = vmatpush1.msra.mxu0 %v45
  %409 = vmatprep.subr.mxu0 0.0
  %410 = vmatpush1.msra.mxu0 %v48
  %411 = vmatprep.subr.mxu0 0.0
  %412 = vmatpush1.msra.mxu0 %v51
  %413 = vmatprep.subr.mxu0 0.0
  %414 = vmatpush1.msra.mxu0 %v54
  %415 = vmatprep.subr.mxu0 0.0
  %416 = vmatpush1.msra.mxu0 %v57
  %417 = vmatprep.subr.mxu0 0.0
  %418 = vmatpush1.msra.mxu0 %v60
  %419 = vmatprep.subr.mxu0 0.0
  %420 = vmatpush1.msra.mxu0 %v63
  %421 = vmatprep.subr.mxu0 0.0
  %422 = vmatpush1.msra.mxu0 %v66
  %423 = vmatprep.subr.mxu0 0.0
  %424 = vmatpush1.msra.mxu0 %v69
  %425 = vmatprep.subr.mxu0 0.0
  %426 = vmatpush1.msra.mxu0 0.0
  %427 = vmatprep.subr.mxu0 0.0
  %428 = vmatpush1.msra.mxu0 0.0
  %429 = vmatprep.subr.mxu0 0.0
  %430 = vmatpush1.msra.mxu0 0.0
  %431 = vmatprep.subr.mxu0 0.0
  %432 = vmatpush1.msra.mxu0 0.0
  %433 = vmatprep.subr.mxu0 0.0
  %434 = vmatpush1.msra.mxu0 0.0
  %435 = vmatprep.subr.mxu0 0.0
  %436 = vmatpush1.msra.mxu0 0.0
  %437 = vmatprep.subr.mxu0 0.0
  %438 = vmatpush1.msra.mxu0 0.0
  %439 = vmatprep.subr.mxu0 0.0
  %440 = vmatpush1.msra.mxu0 0.0
  %441 = vmatprep.subr.mxu0 0.0
  %442 = vmatpush1.msra.mxu0 0.0
  %443 = vmatprep.subr.mxu0 0.0
  %444 = vmatpush1.msra.mxu0 0.0
  %445 = vmatprep.subr.mxu0 0.0
  %446 = vmatpush1.msra.mxu0 0.0
  %447 = vmatprep.subr.mxu0 0.0
  %448 = vmatpush1.msra.mxu0 0.0
  %449 = vmatprep.subr.mxu0 0.0
  %450 = vmatpush1.msra.mxu0 0.0
  %451 = vmatprep.subr.mxu0 0.0
  %452 = vmatpush1.msra.mxu0 0.0
  %453 = vmatprep.subr.mxu0 0.0
  %454 = vmatpush1.msra.mxu0 0.0
  %455 = vmatprep.subr.mxu0 0.0
  %456 = vmatpush1.msra.mxu0 0.0
  %457 = vmatprep.mubr.f32.mxu0 0.0
  %458 = vmatmul.mubr.f32.gmra.mrb[0].mxu0 %v251
  %v459 = vpop.f32.mrb[0].mxu0
  %v460 = vadd.f32 %v86, %v459
  %v461 = vpop.f32.mrb[0].mxu0
  %462 = vdwg.mxu0
  %v463 = vadd.f32 %v319, %v389
  %v464 = vxor.u32 %v463, 2147483648
  %v465 = vmul.f32 %v464, 1.442695
  %v466 = vpow.pop %v465
  %v467 = vadd.f32 %v466, 1.0
  %v468 = vrcp.pop %v467
  %v469 = vmul.f32 1.0, %v468
  %v470 = vadd.f32 %v320, %v391
  %v471 = vxor.u32 %v470, 2147483648
  %v472 = vmul.f32 %v471, 1.442695
  %v473 = vpow.pop %v472
  %v474 = vadd.f32 %v473, 1.0
  %v475 = vrcp.pop %v474
  %v476 = vmul.f32 1.0, %v475
  %v477 = vmul.f32 %v469, %v460
  %v478 = vadd.f32 %v321, %v477
  %v479 = vtanh.pop %v478
  %v480 = vsub.f32 1.0, %v476
  %v481 = vmul.f32 %v480, %v479
  %v482 = vmul.f32 %v476, %v251
  %v483 = vadd.f32 %v481, %v482
  %v485 = vcombine.high %v483, %v483
  %v487 = vunpack.c.l.s4 1966171168
  %v488 = vunpack.c.0.s8 %v487
  %v489 = vlaneseq
  %v490 = vshrl.u32 %v489, 7
  %v491 = vsub.s32 %v488, %v490
  %v492 = vrot.slane %v483, %v491
  %v494 = vunpack.c.l.s4 1966171168
  %v495 = vunpack.c.0.s8 %v494
  %v496 = vlaneseq
  %v497 = vshrl.u32 %v496, 7
  %v498 = vsub.s32 %v495, %v497
  %v499 = vrot.slane %v485, %v498
  %v500 = vcombine.high %v492, %v492
  %v501 = vcombine.high %v499, %v499
  %v503 = vunpack.c.l.s4 1966171168
  %v504 = vunpack.c.0.s8 %v503
  %v505 = vlaneseq
  %v506 = vshrl.u32 %v505, 7
  %v507 = vsub.s32 %v504, %v506
  %v508 = vrot.slane %v492, %v507
  %v510 = vunpack.c.l.s4 1966171168
  %v511 = vunpack.c.0.s8 %v510
  %v512 = vlaneseq
  %v513 = vshrl.u32 %v512, 7
  %v514 = vsub.s32 %v511, %v513
  %v515 = vrot.slane %v499, %v514
  %v517 = vunpack.c.l.s4 1966171168
  %v518 = vunpack.c.0.s8 %v517
  %v519 = vlaneseq
  %v520 = vshrl.u32 %v519, 7
  %v521 = vsub.s32 %v518, %v520
  %v522 = vrot.slane %v500, %v521
  %v524 = vunpack.c.l.s4 1966171168
  %v525 = vunpack.c.0.s8 %v524
  %v526 = vlaneseq
  %v527 = vshrl.u32 %v526, 7
  %v528 = vsub.s32 %v525, %v527
  %v529 = vrot.slane %v501, %v528
  %v530 = vcombine.high %v508, %v508
  %v531 = vcombine.high %v515, %v515
  %v532 = vcombine.high %v522, %v522
  %v533 = vcombine.high %v529, %v529
  %542 = vst [vmem:[%s3 + $0x1] sm:$0x1] %v508
  %543 = vst [vmem:[%s3 + $0x9] sm:$0x1] %v522
  %544 = vst [vmem:[%s3 + $0x11] sm:$0x1] %v530
  %545 = vst [vmem:[%s3 + $0x19] sm:$0x1] %v532
  %546 = vst [vmem:[%s3 + $0x21] sm:$0x1] %v515
  %547 = vst [vmem:[%s3 + $0x29] sm:$0x1] %v529
  %548 = vst [vmem:[%s3 + $0x31] sm:$0x1] %v531
  %549 = vst [vmem:[%s3 + $0x39] sm:$0x1] %v533
  %s550 = scalar_lea.vmem %s0, 48
  %v551 = vld [vmem:[%s550] sm:$0xff]
  %v552 = vld [vmem:[%s550 + $0x8] sm:$0xff]
  %v553 = vld [vmem:[%s550 + $0x10] sm:$0xff]
  %554 = vmatprep.subr.mxu0 %v23
  %555 = vmatpush1.msra.mxu0 %v22
  %556 = vmatprep.subr.mxu0 %v26
  %557 = vmatpush1.msra.mxu0 %v25
  %558 = vmatprep.subr.mxu0 %v29
  %559 = vmatpush1.msra.mxu0 %v28
  %560 = vmatprep.subr.mxu0 %v32
  %561 = vmatpush1.msra.mxu0 %v31
  %562 = vmatprep.subr.mxu0 %v35
  %563 = vmatpush1.msra.mxu0 %v34
  %564 = vmatprep.subr.mxu0 %v38
  %565 = vmatpush1.msra.mxu0 %v37
  %566 = vmatprep.subr.mxu0 %v41
  %567 = vmatpush1.msra.mxu0 %v40
  %568 = vmatprep.subr.mxu0 %v44
  %569 = vmatpush1.msra.mxu0 %v43
  %570 = vmatprep.subr.mxu0 %v47
  %571 = vmatpush1.msra.mxu0 %v46
  %572 = vmatprep.subr.mxu0 %v50
  %573 = vmatpush1.msra.mxu0 %v49
  %574 = vmatprep.subr.mxu0 %v53
  %575 = vmatpush1.msra.mxu0 %v52
  %576 = vmatprep.subr.mxu0 %v56
  %577 = vmatpush1.msra.mxu0 %v55
  %578 = vmatprep.subr.mxu0 %v59
  %579 = vmatpush1.msra.mxu0 %v58
  %580 = vmatprep.subr.mxu0 %v62
  %581 = vmatpush1.msra.mxu0 %v61
  %582 = vmatprep.subr.mxu0 %v65
  %583 = vmatpush1.msra.mxu0 %v64
  %584 = vmatprep.subr.mxu0 %v68
  %585 = vmatpush1.msra.mxu0 %v67
  %586 = vmatprep.subr.mxu0 0.0
  %587 = vmatpush1.msra.mxu0 0.0
  %588 = vmatprep.subr.mxu0 0.0
  %589 = vmatpush1.msra.mxu0 0.0
  %590 = vmatprep.subr.mxu0 0.0
  %591 = vmatpush1.msra.mxu0 0.0
  %592 = vmatprep.subr.mxu0 0.0
  %593 = vmatpush1.msra.mxu0 0.0
  %594 = vmatprep.subr.mxu0 0.0
  %595 = vmatpush1.msra.mxu0 0.0
  %596 = vmatprep.subr.mxu0 0.0
  %597 = vmatpush1.msra.mxu0 0.0
  %598 = vmatprep.subr.mxu0 0.0
  %599 = vmatpush1.msra.mxu0 0.0
  %600 = vmatprep.subr.mxu0 0.0
  %601 = vmatpush1.msra.mxu0 0.0
  %602 = vmatprep.subr.mxu0 0.0
  %603 = vmatpush1.msra.mxu0 0.0
  %604 = vmatprep.subr.mxu0 0.0
  %605 = vmatpush1.msra.mxu0 0.0
  %606 = vmatprep.subr.mxu0 0.0
  %607 = vmatpush1.msra.mxu0 0.0
  %608 = vmatprep.subr.mxu0 0.0
  %609 = vmatpush1.msra.mxu0 0.0
  %610 = vmatprep.subr.mxu0 0.0
  %611 = vmatpush1.msra.mxu0 0.0
  %612 = vmatprep.subr.mxu0 0.0
  %613 = vmatpush1.msra.mxu0 0.0
  %614 = vmatprep.subr.mxu0 0.0
  %615 = vmatpush1.msra.mxu0 0.0
  %616 = vmatprep.subr.mxu0 0.0
  %617 = vmatpush1.msra.mxu0 0.0
  %618 = vmatprep.mubr.f32.mxu0 0.0
  %619 = vmatmul.mubr.f32.gmra.mrb[0].mxu0 %v483
  %v620 = vpop.f32.mrb[0].mxu0
  %v621 = vadd.f32 %v78, %v620
  %v622 = vpop.f32.mrb[0].mxu0
  %v623 = vadd.f32 %v82, %v622
  %624 = vdwg.mxu0
  %625 = vmatprep.subr.mxu0 0.0
  %626 = vmatpush1.msra.mxu0 %v24
  %627 = vmatprep.subr.mxu0 0.0
  %628 = vmatpush1.msra.mxu0 %v27
  %629 = vmatprep.subr.mxu0 0.0
  %630 = vmatpush1.msra.mxu0 %v30
  %631 = vmatprep.subr.mxu0 0.0
  %632 = vmatpush1.msra.mxu0 %v33
  %633 = vmatprep.subr.mxu0 0.0
  %634 = vmatpush1.msra.mxu0 %v36
  %635 = vmatprep.subr.mxu0 0.0
  %636 = vmatpush1.msra.mxu0 %v39
  %637 = vmatprep.subr.mxu0 0.0
  %638 = vmatpush1.msra.mxu0 %v42
  %639 = vmatprep.subr.mxu0 0.0
  %640 = vmatpush1.msra.mxu0 %v45
  %641 = vmatprep.subr.mxu0 0.0
  %642 = vmatpush1.msra.mxu0 %v48
  %643 = vmatprep.subr.mxu0 0.0
  %644 = vmatpush1.msra.mxu0 %v51
  %645 = vmatprep.subr.mxu0 0.0
  %646 = vmatpush1.msra.mxu0 %v54
  %647 = vmatprep.subr.mxu0 0.0
  %648 = vmatpush1.msra.mxu0 %v57
  %649 = vmatprep.subr.mxu0 0.0
  %650 = vmatpush1.msra.mxu0 %v60
  %651 = vmatprep.subr.mxu0 0.0
  %652 = vmatpush1.msra.mxu0 %v63
  %653 = vmatprep.subr.mxu0 0.0
  %654 = vmatpush1.msra.mxu0 %v66
  %655 = vmatprep.subr.mxu0 0.0
  %656 = vmatpush1.msra.mxu0 %v69
  %657 = vmatprep.subr.mxu0 0.0
  %658 = vmatpush1.msra.mxu0 0.0
  %659 = vmatprep.subr.mxu0 0.0
  %660 = vmatpush1.msra.mxu0 0.0
  %661 = vmatprep.subr.mxu0 0.0
  %662 = vmatpush1.msra.mxu0 0.0
  %663 = vmatprep.subr.mxu0 0.0
  %664 = vmatpush1.msra.mxu0 0.0
  %665 = vmatprep.subr.mxu0 0.0
  %666 = vmatpush1.msra.mxu0 0.0
  %667 = vmatprep.subr.mxu0 0.0
  %668 = vmatpush1.msra.mxu0 0.0
  %669 = vmatprep.subr.mxu0 0.0
  %670 = vmatpush1.msra.mxu0 0.0
  %671 = vmatprep.subr.mxu0 0.0
  %672 = vmatpush1.msra.mxu0 0.0
  %673 = vmatprep.subr.mxu0 0.0
  %674 = vmatpush1.msra.mxu0 0.0
  %675 = vmatprep.subr.mxu0 0.0
  %676 = vmatpush1.msra.mxu0 0.0
  %677 = vmatprep.subr.mxu0 0.0
  %678 = vmatpush1.msra.mxu0 0.0
  %679 = vmatprep.subr.mxu0 0.0
  %680 = vmatpush1.msra.mxu0 0.0
  %681 = vmatprep.subr.mxu0 0.0
  %682 = vmatpush1.msra.mxu0 0.0
  %683 = vmatprep.subr.mxu0 0.0
  %684 = vmatpush1.msra.mxu0 0.0
  %685 = vmatprep.subr.mxu0 0.0
  %686 = vmatpush1.msra.mxu0 0.0
  %687 = vmatprep.subr.mxu0 0.0
  %688 = vmatpush1.msra.mxu0 0.0
  %689 = vmatprep.mubr.f32.mxu0 0.0
  %690 = vmatmul.mubr.f32.gmra.mrb[0].mxu0 %v483
  %v691 = vpop.f32.mrb[0].mxu0
  %v692 = vadd.f32 %v86, %v691
  %v693 = vpop.f32.mrb[0].mxu0
  %694 = vdwg.mxu0
  %v695 = vadd.f32 %v551, %v621
  %v696 = vxor.u32 %v695, 2147483648
  %v697 = vmul.f32 %v696, 1.442695
  %v698 = vpow.pop %v697
  %v699 = vadd.f32 %v698, 1.0
  %v700 = vrcp.pop %v699
  %v701 = vmul.f32 1.0, %v700
  %v702 = vadd.f32 %v552, %v623
  %v703 = vxor.u32 %v702, 2147483648
  %v704 = vmul.f32 %v703, 1.442695
  %v705 = vpow.pop %v704
  %v706 = vadd.f32 %v705, 1.0
  %v707 = vrcp.pop %v706
  %v708 = vmul.f32 1.0, %v707
  %v709 = vmul.f32 %v701, %v692
  %v710 = vadd.f32 %v553, %v709
  %v711 = vtanh.pop %v710
  %v712 = vsub.f32 1.0, %v708
  %v713 = vmul.f32 %v712, %v711
  %v714 = vmul.f32 %v708, %v483
  %v715 = vadd.f32 %v713, %v714
  %v717 = vcombine.high %v715, %v715
  %v719 = vunpack.c.l.s4 1966171168
  %v720 = vunpack.c.0.s8 %v719
  %v721 = vlaneseq
  %v722 = vshrl.u32 %v721, 7
  %v723 = vsub.s32 %v720, %v722
  %v724 = vrot.slane %v715, %v723
  %v726 = vunpack.c.l.s4 1966171168
  %v727 = vunpack.c.0.s8 %v726
  %v728 = vlaneseq
  %v729 = vshrl.u32 %v728, 7
  %v730 = vsub.s32 %v727, %v729
  %v731 = vrot.slane %v717, %v730
  %v732 = vcombine.high %v724, %v724
  %v733 = vcombine.high %v731, %v731
  %v735 = vunpack.c.l.s4 1966171168
  %v736 = vunpack.c.0.s8 %v735
  %v737 = vlaneseq
  %v738 = vshrl.u32 %v737, 7
  %v739 = vsub.s32 %v736, %v738
  %v740 = vrot.slane %v724, %v739
  %v742 = vunpack.c.l.s4 1966171168
  %v743 = vunpack.c.0.s8 %v742
  %v744 = vlaneseq
  %v745 = vshrl.u32 %v744, 7
  %v746 = vsub.s32 %v743, %v745
  %v747 = vrot.slane %v731, %v746
  %v749 = vunpack.c.l.s4 1966171168
  %v750 = vunpack.c.0.s8 %v749
  %v751 = vlaneseq
  %v752 = vshrl.u32 %v751, 7
  %v753 = vsub.s32 %v750, %v752
  %v754 = vrot.slane %v732, %v753
  %v756 = vunpack.c.l.s4 1966171168
  %v757 = vunpack.c.0.s8 %v756
  %v758 = vlaneseq
  %v759 = vshrl.u32 %v758, 7
  %v760 = vsub.s32 %v757, %v759
  %v761 = vrot.slane %v733, %v760
  %v762 = vcombine.high %v740, %v740
  %v763 = vcombine.high %v747, %v747
  %v764 = vcombine.high %v754, %v754
  %v765 = vcombine.high %v761, %v761
  %774 = vst [vmem:[%s3 + $0x2] sm:$0x1] %v740
  %775 = vst [vmem:[%s3 + $0xa] sm:$0x1] %v754
  %776 = vst [vmem:[%s3 + $0x12] sm:$0x1] %v762
  %777 = vst [vmem:[%s3 + $0x1a] sm:$0x1] %v764
  %778 = vst [vmem:[%s3 + $0x22] sm:$0x1] %v747
  %779 = vst [vmem:[%s3 + $0x2a] sm:$0x1] %v761
  %780 = vst [vmem:[%s3 + $0x32] sm:$0x1] %v763
  %781 = vst [vmem:[%s3 + $0x3a] sm:$0x1] %v765
  %s782 = scalar_lea.vmem %s0, 72
  %v783 = vld [vmem:[%s782] sm:$0xff]
  %v784 = vld [vmem:[%s782 + $0x8] sm:$0xff]
  %v785 = vld [vmem:[%s782 + $0x10] sm:$0xff]
  %786 = vmatprep.subr.mxu0 %v23
  %787 = vmatpush1.msra.mxu0 %v22
  %788 = vmatprep.subr.mxu0 %v26
  %789 = vmatpush1.msra.mxu0 %v25
  %790 = vmatprep.subr.mxu0 %v29
  %791 = vmatpush1.msra.mxu0 %v28
  %792 = vmatprep.subr.mxu0 %v32
  %793 = vmatpush1.msra.mxu0 %v31
  %794 = vmatprep.subr.mxu0 %v35
  %795 = vmatpush1.msra.mxu0 %v34
  %796 = vmatprep.subr.mxu0 %v38
  %797 = vmatpush1.msra.mxu0 %v37
  %798 = vmatprep.subr.mxu0 %v41
  %799 = vmatpush1.msra.mxu0 %v40
  %800 = vmatprep.subr.mxu0 %v44
  %801 = vmatpush1.msra.mxu0 %v43
  %802 = vmatprep.subr.mxu0 %v47
  %803 = vmatpush1.msra.mxu0 %v46
  %804 = vmatprep.subr.mxu0 %v50
  %805 = vmatpush1.msra.mxu0 %v49
  %806 = vmatprep.subr.mxu0 %v53
  %807 = vmatpush1.msra.mxu0 %v52
  %808 = vmatprep.subr.mxu0 %v56
  %809 = vmatpush1.msra.mxu0 %v55
  %810 = vmatprep.subr.mxu0 %v59
  %811 = vmatpush1.msra.mxu0 %v58
  %812 = vmatprep.subr.mxu0 %v62
  %813 = vmatpush1.msra.mxu0 %v61
  %814 = vmatprep.subr.mxu0 %v65
  %815 = vmatpush1.msra.mxu0 %v64
  %816 = vmatprep.subr.mxu0 %v68
  %817 = vmatpush1.msra.mxu0 %v67
  %818 = vmatprep.subr.mxu0 0.0
  %819 = vmatpush1.msra.mxu0 0.0
  %820 = vmatprep.subr.mxu0 0.0
  %821 = vmatpush1.msra.mxu0 0.0
  %822 = vmatprep.subr.mxu0 0.0
  %823 = vmatpush1.msra.mxu0 0.0
  %824 = vmatprep.subr.mxu0 0.0
  %825 = vmatpush1.msra.mxu0 0.0
  %826 = vmatprep.subr.mxu0 0.0
  %827 = vmatpush1.msra.mxu0 0.0
  %828 = vmatprep.subr.mxu0 0.0
  %829 = vmatpush1.msra.mxu0 0.0
  %830 = vmatprep.subr.mxu0 0.0
  %831 = vmatpush1.msra.mxu0 0.0
  %832 = vmatprep.subr.mxu0 0.0
  %833 = vmatpush1.msra.mxu0 0.0
  %834 = vmatprep.subr.mxu0 0.0
  %835 = vmatpush1.msra.mxu0 0.0
  %836 = vmatprep.subr.mxu0 0.0
  %837 = vmatpush1.msra.mxu0 0.0
  %838 = vmatprep.subr.mxu0 0.0
  %839 = vmatpush1.msra.mxu0 0.0
  %840 = vmatprep.subr.mxu0 0.0
  %841 = vmatpush1.msra.mxu0 0.0
  %842 = vmatprep.subr.mxu0 0.0
  %843 = vmatpush1.msra.mxu0 0.0
  %844 = vmatprep.subr.mxu0 0.0
  %845 = vmatpush1.msra.mxu0 0.0
  %846 = vmatprep.subr.mxu0 0.0
  %847 = vmatpush1.msra.mxu0 0.0
  %848 = vmatprep.subr.mxu0 0.0
  %849 = vmatpush1.msra.mxu0 0.0
  %850 = vmatprep.mubr.f32.mxu0 0.0
  %851 = vmatmul.mubr.f32.gmra.mrb[0].mxu0 %v715
  %v852 = vpop.f32.mrb[0].mxu0
  %v853 = vadd.f32 %v78, %v852
  %v854 = vpop.f32.mrb[0].mxu0
  %v855 = vadd.f32 %v82, %v854
  %856 = vdwg.mxu0
  %857 = vmatprep.subr.mxu0 0.0
  %858 = vmatpush1.msra.mxu0 %v24
  %859 = vmatprep.subr.mxu0 0.0
  %860 = vmatpush1.msra.mxu0 %v27
  %861 = vmatprep.subr.mxu0 0.0
  %862 = vmatpush1.msra.mxu0 %v30
  %863 = vmatprep.subr.mxu0 0.0
  %864 = vmatpush1.msra.mxu0 %v33
  %865 = vmatprep.subr.mxu0 0.0
  %866 = vmatpush1.msra.mxu0 %v36
  %867 = vmatprep.subr.mxu0 0.0
  %868 = vmatpush1.msra.mxu0 %v39
  %869 = vmatprep.subr.mxu0 0.0
  %870 = vmatpush1.msra.mxu0 %v42
  %871 = vmatprep.subr.mxu0 0.0
  %872 = vmatpush1.msra.mxu0 %v45
  %873 = vmatprep.subr.mxu0 0.0
  %874 = vmatpush1.msra.mxu0 %v48
  %875 = vmatprep.subr.mxu0 0.0
  %876 = vmatpush1.msra.mxu0 %v51
  %877 = vmatprep.subr.mxu0 0.0
  %878 = vmatpush1.msra.mxu0 %v54
  %879 = vmatprep.subr.mxu0 0.0
  %880 = vmatpush1.msra.mxu0 %v57
  %881 = vmatprep.subr.mxu0 0.0
  %882 = vmatpush1.msra.mxu0 %v60
  %883 = vmatprep.subr.mxu0 0.0
  %884 = vmatpush1.msra.mxu0 %v63
  %885 = vmatprep.subr.mxu0 0.0
  %886 = vmatpush1.msra.mxu0 %v66
  %887 = vmatprep.subr.mxu0 0.0
  %888 = vmatpush1.msra.mxu0 %v69
  %889 = vmatprep.subr.mxu0 0.0
  %890 = vmatpush1.msra.mxu0 0.0
  %891 = vmatprep.subr.mxu0 0.0
  %892 = vmatpush1.msra.mxu0 0.0
  %893 = vmatprep.subr.mxu0 0.0
  %894 = vmatpush1.msra.mxu0 0.0
  %895 = vmatprep.subr.mxu0 0.0
  %896 = vmatpush1.msra.mxu0 0.0
  %897 = vmatprep.subr.mxu0 0.0
  %898 = vmatpush1.msra.mxu0 0.0
  %899 = vmatprep.subr.mxu0 0.0
  %900 = vmatpush1.msra.mxu0 0.0
  %901 = vmatprep.subr.mxu0 0.0
  %902 = vmatpush1.msra.mxu0 0.0
  %903 = vmatprep.subr.mxu0 0.0
  %904 = vmatpush1.msra.mxu0 0.0
  %905 = vmatprep.subr.mxu0 0.0
  %906 = vmatpush1.msra.mxu0 0.0
  %907 = vmatprep.subr.mxu0 0.0
  %908 = vmatpush1.msra.mxu0 0.0
  %909 = vmatprep.subr.mxu0 0.0
  %910 = vmatpush1.msra.mxu0 0.0
  %911 = vmatprep.subr.mxu0 0.0
  %912 = vmatpush1.msra.mxu0 0.0
  %913 = vmatprep.subr.mxu0 0.0
  %914 = vmatpush1.msra.mxu0 0.0
  %915 = vmatprep.subr.mxu0 0.0
  %916 = vmatpush1.msra.mxu0 0.0
  %917 = vmatprep.subr.mxu0 0.0
  %918 = vmatpush1.msra.mxu0 0.0
  %919 = vmatprep.subr.mxu0 0.0
  %920 = vmatpush1.msra.mxu0 0.0
  %921 = vmatprep.mubr.f32.mxu0 0.0
  %922 = vmatmul.mubr.f32.gmra.mrb[0].mxu0 %v715
  %v923 = vpop.f32.mrb[0].mxu0
  %v924 = vadd.f32 %v86, %v923
  %v925 = vpop.f32.mrb[0].mxu0
  %926 = vdwg.mxu0
  %v927 = vadd.f32 %v783, %v853
  %v928 = vxor.u32 %v927, 2147483648
  %v929 = vmul.f32 %v928, 1.442695
  %v930 = vpow.pop %v929
  %v931 = vadd.f32 %v930, 1.0
  %v932 = vrcp.pop %v931
  %v933 = vmul.f32 1.0, %v932
  %v934 = vadd.f32 %v784, %v855
  %v935 = vxor.u32 %v934, 2147483648
  %v936 = vmul.f32 %v935, 1.442695
  %v937 = vpow.pop %v936
  %v938 = vadd.f32 %v937, 1.0
  %v939 = vrcp.pop %v938
  %v940 = vmul.f32 1.0, %v939
  %v941 = vmul.f32 %v933, %v924
  %v942 = vadd.f32 %v785, %v941
  %v943 = vtanh.pop %v942
  %v944 = vsub.f32 1.0, %v940
  %v945 = vmul.f32 %v944, %v943
  %v946 = vmul.f32 %v940, %v715
  %v947 = vadd.f32 %v945, %v946
  %v949 = vcombine.high %v947, %v947
  %v951 = vunpack.c.l.s4 1966171168
  %v952 = vunpack.c.0.s8 %v951
  %v953 = vlaneseq
  %v954 = vshrl.u32 %v953, 7
  %v955 = vsub.s32 %v952, %v954
  %v956 = vrot.slane %v947, %v955
  %v958 = vunpack.c.l.s4 1966171168
  %v959 = vunpack.c.0.s8 %v958
  %v960 = vlaneseq
  %v961 = vshrl.u32 %v960, 7
  %v962 = vsub.s32 %v959, %v961
  %v963 = vrot.slane %v949, %v962
  %v964 = vcombine.high %v956, %v956
  %v965 = vcombine.high %v963, %v963
  %v967 = vunpack.c.l.s4 1966171168
  %v968 = vunpack.c.0.s8 %v967
  %v969 = vlaneseq
  %v970 = vshrl.u32 %v969, 7
  %v971 = vsub.s32 %v968, %v970
  %v972 = vrot.slane %v956, %v971
  %v974 = vunpack.c.l.s4 1966171168
  %v975 = vunpack.c.0.s8 %v974
  %v976 = vlaneseq
  %v977 = vshrl.u32 %v976, 7
  %v978 = vsub.s32 %v975, %v977
  %v979 = vrot.slane %v963, %v978
  %v981 = vunpack.c.l.s4 1966171168
  %v982 = vunpack.c.0.s8 %v981
  %v983 = vlaneseq
  %v984 = vshrl.u32 %v983, 7
  %v985 = vsub.s32 %v982, %v984
  %v986 = vrot.slane %v964, %v985
  %v988 = vunpack.c.l.s4 1966171168
  %v989 = vunpack.c.0.s8 %v988
  %v990 = vlaneseq
  %v991 = vshrl.u32 %v990, 7
  %v992 = vsub.s32 %v989, %v991
  %v993 = vrot.slane %v965, %v992
  %v994 = vcombine.high %v972, %v972
  %v995 = vcombine.high %v979, %v979
  %v996 = vcombine.high %v986, %v986
  %v997 = vcombine.high %v993, %v993
  %1006 = vst [vmem:[%s3 + $0x3] sm:$0x1] %v972
  %1007 = vst [vmem:[%s3 + $0xb] sm:$0x1] %v986
  %1008 = vst [vmem:[%s3 + $0x13] sm:$0x1] %v994
  %1009 = vst [vmem:[%s3 + $0x1b] sm:$0x1] %v996
  %1010 = vst [vmem:[%s3 + $0x23] sm:$0x1] %v979
  %1011 = vst [vmem:[%s3 + $0x2b] sm:$0x1] %v993
  %1012 = vst [vmem:[%s3 + $0x33] sm:$0x1] %v995
  %1013 = vst [vmem:[%s3 + $0x3b] sm:$0x1] %v997
  %s1014 = scalar_lea.vmem %s0, 96
  %v1015 = vld [vmem:[%s1014] sm:$0xff]
  %v1016 = vld [vmem:[%s1014 + $0x8] sm:$0xff]
  %v1017 = vld [vmem:[%s1014 + $0x10] sm:$0xff]
  %1018 = vmatprep.subr.mxu0 %v23
  %1019 = vmatpush1.msra.mxu0 %v22
  %1020 = vmatprep.subr.mxu0 %v26
  %1021 = vmatpush1.msra.mxu0 %v25
  %1022 = vmatprep.subr.mxu0 %v29
  %1023 = vmatpush1.msra.mxu0 %v28
  %1024 = vmatprep.subr.mxu0 %v32
  %1025 = vmatpush1.msra.mxu0 %v31
  %1026 = vmatprep.subr.mxu0 %v35
  %1027 = vmatpush1.msra.mxu0 %v34
  %1028 = vmatprep.subr.mxu0 %v38
  %1029 = vmatpush1.msra.mxu0 %v37
  %1030 = vmatprep.subr.mxu0 %v41
  %1031 = vmatpush1.msra.mxu0 %v40
  %1032 = vmatprep.subr.mxu0 %v44
  %1033 = vmatpush1.msra.mxu0 %v43
  %1034 = vmatprep.subr.mxu0 %v47
  %1035 = vmatpush1.msra.mxu0 %v46
  %1036 = vmatprep.subr.mxu0 %v50
  %1037 = vmatpush1.msra.mxu0 %v49
  %1038 = vmatprep.subr.mxu0 %v53
  %1039 = vmatpush1.msra.mxu0 %v52
  %1040 = vmatprep.subr.mxu0 %v56
  %1041 = vmatpush1.msra.mxu0 %v55
  %1042 = vmatprep.subr.mxu0 %v59
  %1043 = vmatpush1.msra.mxu0 %v58
  %1044 = vmatprep.subr.mxu0 %v62
  %1045 = vmatpush1.msra.mxu0 %v61
  %1046 = vmatprep.subr.mxu0 %v65
  %1047 = vmatpush1.msra.mxu0 %v64
  %1048 = vmatprep.subr.mxu0 %v68
  %1049 = vmatpush1.msra.mxu0 %v67
  %1050 = vmatprep.subr.mxu0 0.0
  %1051 = vmatpush1.msra.mxu0 0.0
  %1052 = vmatprep.subr.mxu0 0.0
  %1053 = vmatpush1.msra.mxu0 0.0
  %1054 = vmatprep.subr.mxu0 0.0
  %1055 = vmatpush1.msra.mxu0 0.0
  %1056 = vmatprep.subr.mxu0 0.0
  %1057 = vmatpush1.msra.mxu0 0.0
  %1058 = vmatprep.subr.mxu0 0.0
  %1059 = vmatpush1.msra.mxu0 0.0
  %1060 = vmatprep.subr.mxu0 0.0
  %1061 = vmatpush1.msra.mxu0 0.0
  %1062 = vmatprep.subr.mxu0 0.0
  %1063 = vmatpush1.msra.mxu0 0.0
  %1064 = vmatprep.subr.mxu0 0.0
  %1065 = vmatpush1.msra.mxu0 0.0
  %1066 = vmatprep.subr.mxu0 0.0
  %1067 = vmatpush1.msra.mxu0 0.0
  %1068 = vmatprep.subr.mxu0 0.0
  %1069 = vmatpush1.msra.mxu0 0.0
  %1070 = vmatprep.subr.mxu0 0.0
  %1071 = vmatpush1.msra.mxu0 0.0
  %1072 = vmatprep.subr.mxu0 0.0
  %1073 = vmatpush1.msra.mxu0 0.0
  %1074 = vmatprep.subr.mxu0 0.0
  %1075 = vmatpush1.msra.mxu0 0.0
  %1076 = vmatprep.subr.mxu0 0.0
  %1077 = vmatpush1.msra.mxu0 0.0
  %1078 = vmatprep.subr.mxu0 0.0
  %1079 = vmatpush1.msra.mxu0 0.0
  %1080 = vmatprep.subr.mxu0 0.0
  %1081 = vmatpush1.msra.mxu0 0.0
  %1082 = vmatprep.mubr.f32.mxu0 0.0
  %1083 = vmatmul.mubr.f32.gmra.mrb[0].mxu0 %v947
  %v1084 = vpop.f32.mrb[0].mxu0
  %v1085 = vadd.f32 %v78, %v1084
  %v1086 = vpop.f32.mrb[0].mxu0
  %v1087 = vadd.f32 %v82, %v1086
  %1088 = vdwg.mxu0
  %1089 = vmatprep.subr.mxu0 0.0
  %1090 = vmatpush1.msra.mxu0 %v24
  %1091 = vmatprep.subr.mxu0 0.0
  %1092 = vmatpush1.msra.mxu0 %v27
  %1093 = vmatprep.subr.mxu0 0.0
  %1094 = vmatpush1.msra.mxu0 %v30
  %1095 = vmatprep.subr.mxu0 0.0
  %1096 = vmatpush1.msra.mxu0 %v33
  %1097 = vmatprep.subr.mxu0 0.0
  %1098 = vmatpush1.msra.mxu0 %v36
  %1099 = vmatprep.subr.mxu0 0.0
  %1100 = vmatpush1.msra.mxu0 %v39
  %1101 = vmatprep.subr.mxu0 0.0
  %1102 = vmatpush1.msra.mxu0 %v42
  %1103 = vmatprep.subr.mxu0 0.0
  %1104 = vmatpush1.msra.mxu0 %v45
  %1105 = vmatprep.subr.mxu0 0.0
  %1106 = vmatpush1.msra.mxu0 %v48
  %1107 = vmatprep.subr.mxu0 0.0
  %1108 = vmatpush1.msra.mxu0 %v51
  %1109 = vmatprep.subr.mxu0 0.0
  %1110 = vmatpush1.msra.mxu0 %v54
  %1111 = vmatprep.subr.mxu0 0.0
  %1112 = vmatpush1.msra.mxu0 %v57
  %1113 = vmatprep.subr.mxu0 0.0
  %1114 = vmatpush1.msra.mxu0 %v60
  %1115 = vmatprep.subr.mxu0 0.0
  %1116 = vmatpush1.msra.mxu0 %v63
  %1117 = vmatprep.subr.mxu0 0.0
  %1118 = vmatpush1.msra.mxu0 %v66
  %1119 = vmatprep.subr.mxu0 0.0
  %1120 = vmatpush1.msra.mxu0 %v69
  %1121 = vmatprep.subr.mxu0 0.0
  %1122 = vmatpush1.msra.mxu0 0.0
  %1123 = vmatprep.subr.mxu0 0.0
  %1124 = vmatpush1.msra.mxu0 0.0
  %1125 = vmatprep.subr.mxu0 0.0
  %1126 = vmatpush1.msra.mxu0 0.0
  %1127 = vmatprep.subr.mxu0 0.0
  %1128 = vmatpush1.msra.mxu0 0.0
  %1129 = vmatprep.subr.mxu0 0.0
  %1130 = vmatpush1.msra.mxu0 0.0
  %1131 = vmatprep.subr.mxu0 0.0
  %1132 = vmatpush1.msra.mxu0 0.0
  %1133 = vmatprep.subr.mxu0 0.0
  %1134 = vmatpush1.msra.mxu0 0.0
  %1135 = vmatprep.subr.mxu0 0.0
  %1136 = vmatpush1.msra.mxu0 0.0
  %1137 = vmatprep.subr.mxu0 0.0
  %1138 = vmatpush1.msra.mxu0 0.0
  %1139 = vmatprep.subr.mxu0 0.0
  %1140 = vmatpush1.msra.mxu0 0.0
  %1141 = vmatprep.subr.mxu0 0.0
  %1142 = vmatpush1.msra.mxu0 0.0
  %1143 = vmatprep.subr.mxu0 0.0
  %1144 = vmatpush1.msra.mxu0 0.0
  %1145 = vmatprep.subr.mxu0 0.0
  %1146 = vmatpush1.msra.mxu0 0.0
  %1147 = vmatprep.subr.mxu0 0.0
  %1148 = vmatpush1.msra.mxu0 0.0
  %1149 = vmatprep.subr.mxu0 0.0
  %1150 = vmatpush1.msra.mxu0 0.0
  %1151 = vmatprep.subr.mxu0 0.0
  %1152 = vmatpush1.msra.mxu0 0.0
  %1153 = vmatprep.mubr.f32.mxu0 0.0
  %1154 = vmatmul.mubr.f32.gmra.mrb[0].mxu0 %v947
  %v1155 = vpop.f32.mrb[0].mxu0
  %v1156 = vadd.f32 %v86, %v1155
  %v1157 = vpop.f32.mrb[0].mxu0
  %1158 = vdwg.mxu0
  %v1159 = vadd.f32 %v1015, %v1085
  %v1160 = vxor.u32 %v1159, 2147483648
  %v1161 = vmul.f32 %v1160, 1.442695
  %v1162 = vpow.pop %v1161
  %v1163 = vadd.f32 %v1162, 1.0
  %v1164 = vrcp.pop %v1163
  %v1165 = vmul.f32 1.0, %v1164
  %v1166 = vadd.f32 %v1016, %v1087
  %v1167 = vxor.u32 %v1166, 2147483648
  %v1168 = vmul.f32 %v1167, 1.442695
  %v1169 = vpow.pop %v1168
  %v1170 = vadd.f32 %v1169, 1.0
  %v1171 = vrcp.pop %v1170
  %v1172 = vmul.f32 1.0, %v1171
  %v1173 = vmul.f32 %v1165, %v1156
  %v1174 = vadd.f32 %v1017, %v1173
  %v1175 = vtanh.pop %v1174
  %v1176 = vsub.f32 1.0, %v1172
  %v1177 = vmul.f32 %v1176, %v1175
  %v1178 = vmul.f32 %v1172, %v947
  %v1179 = vadd.f32 %v1177, %v1178
  %v1181 = vcombine.high %v1179, %v1179
  %v1183 = vunpack.c.l.s4 1966171168
  %v1184 = vunpack.c.0.s8 %v1183
  %v1185 = vlaneseq
  %v1186 = vshrl.u32 %v1185, 7
  %v1187 = vsub.s32 %v1184, %v1186
  %v1188 = vrot.slane %v1179, %v1187
  %v1190 = vunpack.c.l.s4 1966171168
  %v1191 = vunpack.c.0.s8 %v1190
  %v1192 = vlaneseq
  %v1193 = vshrl.u32 %v1192, 7
  %v1194 = vsub.s32 %v1191, %v1193
  %v1195 = vrot.slane %v1181, %v1194
  %v1196 = vcombine.high %v1188, %v1188
  %v1197 = vcombine.high %v1195, %v1195
  %v1199 = vunpack.c.l.s4 1966171168
  %v1200 = vunpack.c.0.s8 %v1199
  %v1201 = vlaneseq
  %v1202 = vshrl.u32 %v1201, 7
  %v1203 = vsub.s32 %v1200, %v1202
  %v1204 = vrot.slane %v1188, %v1203
  %v1206 = vunpack.c.l.s4 1966171168
  %v1207 = vunpack.c.0.s8 %v1206
  %v1208 = vlaneseq
  %v1209 = vshrl.u32 %v1208, 7
  %v1210 = vsub.s32 %v1207, %v1209
  %v1211 = vrot.slane %v1195, %v1210
  %v1213 = vunpack.c.l.s4 1966171168
  %v1214 = vunpack.c.0.s8 %v1213
  %v1215 = vlaneseq
  %v1216 = vshrl.u32 %v1215, 7
  %v1217 = vsub.s32 %v1214, %v1216
  %v1218 = vrot.slane %v1196, %v1217
  %v1220 = vunpack.c.l.s4 1966171168
  %v1221 = vunpack.c.0.s8 %v1220
  %v1222 = vlaneseq
  %v1223 = vshrl.u32 %v1222, 7
  %v1224 = vsub.s32 %v1221, %v1223
  %v1225 = vrot.slane %v1197, %v1224
  %v1226 = vcombine.high %v1204, %v1204
  %v1227 = vcombine.high %v1211, %v1211
  %v1228 = vcombine.high %v1218, %v1218
  %v1229 = vcombine.high %v1225, %v1225
  %1238 = vst [vmem:[%s3 + $0x4] sm:$0x1] %v1204
  %1239 = vst [vmem:[%s3 + $0xc] sm:$0x1] %v1218
  %1240 = vst [vmem:[%s3 + $0x14] sm:$0x1] %v1226
  %1241 = vst [vmem:[%s3 + $0x1c] sm:$0x1] %v1228
  %1242 = vst [vmem:[%s3 + $0x24] sm:$0x1] %v1211
  %1243 = vst [vmem:[%s3 + $0x2c] sm:$0x1] %v1225
  %1244 = vst [vmem:[%s3 + $0x34] sm:$0x1] %v1227
  %1245 = vst [vmem:[%s3 + $0x3c] sm:$0x1] %v1229
  %s1246 = scalar_lea.vmem %s0, 120
  %v1247 = vld [vmem:[%s1246] sm:$0xff]
  %v1248 = vld [vmem:[%s1246 + $0x8] sm:$0xff]
  %v1249 = vld [vmem:[%s1246 + $0x10] sm:$0xff]
  %1250 = vmatprep.subr.mxu0 %v23
  %1251 = vmatpush1.msra.mxu0 %v22
  %1252 = vmatprep.subr.mxu0 %v26
  %1253 = vmatpush1.msra.mxu0 %v25
  %1254 = vmatprep.subr.mxu0 %v29
  %1255 = vmatpush1.msra.mxu0 %v28
  %1256 = vmatprep.subr.mxu0 %v32
  %1257 = vmatpush1.msra.mxu0 %v31
  %1258 = vmatprep.subr.mxu0 %v35
  %1259 = vmatpush1.msra.mxu0 %v34
  %1260 = vmatprep.subr.mxu0 %v38
  %1261 = vmatpush1.msra.mxu0 %v37
  %1262 = vmatprep.subr.mxu0 %v41
  %1263 = vmatpush1.msra.mxu0 %v40
  %1264 = vmatprep.subr.mxu0 %v44
  %1265 = vmatpush1.msra.mxu0 %v43
  %1266 = vmatprep.subr.mxu0 %v47
  %1267 = vmatpush1.msra.mxu0 %v46
  %1268 = vmatprep.subr.mxu0 %v50
  %1269 = vmatpush1.msra.mxu0 %v49
  %1270 = vmatprep.subr.mxu0 %v53
  %1271 = vmatpush1.msra.mxu0 %v52
  %1272 = vmatprep.subr.mxu0 %v56
  %1273 = vmatpush1.msra.mxu0 %v55
  %1274 = vmatprep.subr.mxu0 %v59
  %1275 = vmatpush1.msra.mxu0 %v58
  %1276 = vmatprep.subr.mxu0 %v62
  %1277 = vmatpush1.msra.mxu0 %v61
  %1278 = vmatprep.subr.mxu0 %v65
  %1279 = vmatpush1.msra.mxu0 %v64
  %1280 = vmatprep.subr.mxu0 %v68
  %1281 = vmatpush1.msra.mxu0 %v67
  %1282 = vmatprep.subr.mxu0 0.0
  %1283 = vmatpush1.msra.mxu0 0.0
  %1284 = vmatprep.subr.mxu0 0.0
  %1285 = vmatpush1.msra.mxu0 0.0
  %1286 = vmatprep.subr.mxu0 0.0
  %1287 = vmatpush1.msra.mxu0 0.0
  %1288 = vmatprep.subr.mxu0 0.0
  %1289 = vmatpush1.msra.mxu0 0.0
  %1290 = vmatprep.subr.mxu0 0.0
  %1291 = vmatpush1.msra.mxu0 0.0
  %1292 = vmatprep.subr.mxu0 0.0
  %1293 = vmatpush1.msra.mxu0 0.0
  %1294 = vmatprep.subr.mxu0 0.0
  %1295 = vmatpush1.msra.mxu0 0.0
  %1296 = vmatprep.subr.mxu0 0.0
  %1297 = vmatpush1.msra.mxu0 0.0
  %1298 = vmatprep.subr.mxu0 0.0
  %1299 = vmatpush1.msra.mxu0 0.0
  %1300 = vmatprep.subr.mxu0 0.0
  %1301 = vmatpush1.msra.mxu0 0.0
  %1302 = vmatprep.subr.mxu0 0.0
  %1303 = vmatpush1.msra.mxu0 0.0
  %1304 = vmatprep.subr.mxu0 0.0
  %1305 = vmatpush1.msra.mxu0 0.0
  %1306 = vmatprep.subr.mxu0 0.0
  %1307 = vmatpush1.msra.mxu0 0.0
  %1308 = vmatprep.subr.mxu0 0.0
  %1309 = vmatpush1.msra.mxu0 0.0
  %1310 = vmatprep.subr.mxu0 0.0
  %1311 = vmatpush1.msra.mxu0 0.0
  %1312 = vmatprep.subr.mxu0 0.0
  %1313 = vmatpush1.msra.mxu0 0.0
  %1314 = vmatprep.mubr.f32.mxu0 0.0
  %1315 = vmatmul.mubr.f32.gmra.mrb[0].mxu0 %v1179
  %v1316 = vpop.f32.mrb[0].mxu0
  %v1317 = vadd.f32 %v78, %v1316
  %v1318 = vpop.f32.mrb[0].mxu0
  %v1319 = vadd.f32 %v82, %v1318
  %1320 = vdwg.mxu0
  %1321 = vmatprep.subr.mxu0 0.0
  %1322 = vmatpush1.msra.mxu0 %v24
  %1323 = vmatprep.subr.mxu0 0.0
  %1324 = vmatpush1.msra.mxu0 %v27
  %1325 = vmatprep.subr.mxu0 0.0
  %1326 = vmatpush1.msra.mxu0 %v30
  %1327 = vmatprep.subr.mxu0 0.0
  %1328 = vmatpush1.msra.mxu0 %v33
  %1329 = vmatprep.subr.mxu0 0.0
  %1330 = vmatpush1.msra.mxu0 %v36
  %1331 = vmatprep.subr.mxu0 0.0
  %1332 = vmatpush1.msra.mxu0 %v39
  %1333 = vmatprep.subr.mxu0 0.0
  %1334 = vmatpush1.msra.mxu0 %v42
  %1335 = vmatprep.subr.mxu0 0.0
  %1336 = vmatpush1.msra.mxu0 %v45
  %1337 = vmatprep.subr.mxu0 0.0
  %1338 = vmatpush1.msra.mxu0 %v48
  %1339 = vmatprep.subr.mxu0 0.0
  %1340 = vmatpush1.msra.mxu0 %v51
  %1341 = vmatprep.subr.mxu0 0.0
  %1342 = vmatpush1.msra.mxu0 %v54
  %1343 = vmatprep.subr.mxu0 0.0
  %1344 = vmatpush1.msra.mxu0 %v57
  %1345 = vmatprep.subr.mxu0 0.0
  %1346 = vmatpush1.msra.mxu0 %v60
  %1347 = vmatprep.subr.mxu0 0.0
  %1348 = vmatpush1.msra.mxu0 %v63
  %1349 = vmatprep.subr.mxu0 0.0
  %1350 = vmatpush1.msra.mxu0 %v66
  %1351 = vmatprep.subr.mxu0 0.0
  %1352 = vmatpush1.msra.mxu0 %v69
  %1353 = vmatprep.subr.mxu0 0.0
  %1354 = vmatpush1.msra.mxu0 0.0
  %1355 = vmatprep.subr.mxu0 0.0
  %1356 = vmatpush1.msra.mxu0 0.0
  %1357 = vmatprep.subr.mxu0 0.0
  %1358 = vmatpush1.msra.mxu0 0.0
  %1359 = vmatprep.subr.mxu0 0.0
  %1360 = vmatpush1.msra.mxu0 0.0
  %1361 = vmatprep.subr.mxu0 0.0
  %1362 = vmatpush1.msra.mxu0 0.0
  %1363 = vmatprep.subr.mxu0 0.0
  %1364 = vmatpush1.msra.mxu0 0.0
  %1365 = vmatprep.subr.mxu0 0.0
  %1366 = vmatpush1.msra.mxu0 0.0
  %1367 = vmatprep.subr.mxu0 0.0
  %1368 = vmatpush1.msra.mxu0 0.0
  %1369 = vmatprep.subr.mxu0 0.0
  %1370 = vmatpush1.msra.mxu0 0.0
  %1371 = vmatprep.subr.mxu0 0.0
  %1372 = vmatpush1.msra.mxu0 0.0
  %1373 = vmatprep.subr.mxu0 0.0
  %1374 = vmatpush1.msra.mxu0 0.0
  %1375 = vmatprep.subr.mxu0 0.0
  %1376 = vmatpush1.msra.mxu0 0.0
  %1377 = vmatprep.subr.mxu0 0.0
  %1378 = vmatpush1.msra.mxu0 0.0
  %1379 = vmatprep.subr.mxu0 0.0
  %1380 = vmatpush1.msra.mxu0 0.0
  %1381 = vmatprep.subr.mxu0 0.0
  %1382 = vmatpush1.msra.mxu0 0.0
  %1383 = vmatprep.subr.mxu0 0.0
  %1384 = vmatpush1.msra.mxu0 0.0
  %1385 = vmatprep.mubr.f32.mxu0 0.0
  %1386 = vmatmul.mubr.f32.gmra.mrb[0].mxu0 %v1179
  %v1387 = vpop.f32.mrb[0].mxu0
  %v1388 = vadd.f32 %v86, %v1387
  %v1389 = vpop.f32.mrb[0].mxu0
  %1390 = vdwg.mxu0
  %v1391 = vadd.f32 %v1247, %v1317
  %v1392 = vxor.u32 %v1391, 2147483648
  %v1393 = vmul.f32 %v1392, 1.442695
  %v1394 = vpow.pop %v1393
  %v1395 = vadd.f32 %v1394, 1.0
  %v1396 = vrcp.pop %v1395
  %v1397 = vmul.f32 1.0, %v1396
  %v1398 = vadd.f32 %v1248, %v1319
  %v1399 = vxor.u32 %v1398, 2147483648
  %v1400 = vmul.f32 %v1399, 1.442695
  %v1401 = vpow.pop %v1400
  %v1402 = vadd.f32 %v1401, 1.0
  %v1403 = vrcp.pop %v1402
  %v1404 = vmul.f32 1.0, %v1403
  %v1405 = vmul.f32 %v1397, %v1388
  %v1406 = vadd.f32 %v1249, %v1405
  %v1407 = vtanh.pop %v1406
  %v1408 = vsub.f32 1.0, %v1404
  %v1409 = vmul.f32 %v1408, %v1407
  %v1410 = vmul.f32 %v1404, %v1179
  %v1411 = vadd.f32 %v1409, %v1410
  %v1413 = vcombine.high %v1411, %v1411
  %v1415 = vunpack.c.l.s4 1966171168
  %v1416 = vunpack.c.0.s8 %v1415
  %v1417 = vlaneseq
  %v1418 = vshrl.u32 %v1417, 7
  %v1419 = vsub.s32 %v1416, %v1418
  %v1420 = vrot.slane %v1411, %v1419
  %v1422 = vunpack.c.l.s4 1966171168
  %v1423 = vunpack.c.0.s8 %v1422
  %v1424 = vlaneseq
  %v1425 = vshrl.u32 %v1424, 7
  %v1426 = vsub.s32 %v1423, %v1425
  %v1427 = vrot.slane %v1413, %v1426
  %v1428 = vcombine.high %v1420, %v1420
  %v1429 = vcombine.high %v1427, %v1427
  %v1431 = vunpack.c.l.s4 1966171168
  %v1432 = vunpack.c.0.s8 %v1431
  %v1433 = vlaneseq
  %v1434 = vshrl.u32 %v1433, 7
  %v1435 = vsub.s32 %v1432, %v1434
  %v1436 = vrot.slane %v1420, %v1435
  %v1438 = vunpack.c.l.s4 1966171168
  %v1439 = vunpack.c.0.s8 %v1438
  %v1440 = vlaneseq
  %v1441 = vshrl.u32 %v1440, 7
  %v1442 = vsub.s32 %v1439, %v1441
  %v1443 = vrot.slane %v1427, %v1442
  %v1445 = vunpack.c.l.s4 1966171168
  %v1446 = vunpack.c.0.s8 %v1445
  %v1447 = vlaneseq
  %v1448 = vshrl.u32 %v1447, 7
  %v1449 = vsub.s32 %v1446, %v1448
  %v1450 = vrot.slane %v1428, %v1449
  %v1452 = vunpack.c.l.s4 1966171168
  %v1453 = vunpack.c.0.s8 %v1452
  %v1454 = vlaneseq
  %v1455 = vshrl.u32 %v1454, 7
  %v1456 = vsub.s32 %v1453, %v1455
  %v1457 = vrot.slane %v1429, %v1456
  %v1458 = vcombine.high %v1436, %v1436
  %v1459 = vcombine.high %v1443, %v1443
  %v1460 = vcombine.high %v1450, %v1450
  %v1461 = vcombine.high %v1457, %v1457
  %1470 = vst [vmem:[%s3 + $0x5] sm:$0x1] %v1436
  %1471 = vst [vmem:[%s3 + $0xd] sm:$0x1] %v1450
  %1472 = vst [vmem:[%s3 + $0x15] sm:$0x1] %v1458
  %1473 = vst [vmem:[%s3 + $0x1d] sm:$0x1] %v1460
  %1474 = vst [vmem:[%s3 + $0x25] sm:$0x1] %v1443
  %1475 = vst [vmem:[%s3 + $0x2d] sm:$0x1] %v1457
  %1476 = vst [vmem:[%s3 + $0x35] sm:$0x1] %v1459
  %1477 = vst [vmem:[%s3 + $0x3d] sm:$0x1] %v1461
  %s1478 = scalar_lea.vmem %s0, 144
  %v1479 = vld [vmem:[%s1478] sm:$0xff]
  %v1480 = vld [vmem:[%s1478 + $0x8] sm:$0xff]
  %v1481 = vld [vmem:[%s1478 + $0x10] sm:$0xff]
  %1482 = vmatprep.subr.mxu0 %v23
  %1483 = vmatpush1.msra.mxu0 %v22
  %1484 = vmatprep.subr.mxu0 %v26
  %1485 = vmatpush1.msra.mxu0 %v25
  %1486 = vmatprep.subr.mxu0 %v29
  %1487 = vmatpush1.msra.mxu0 %v28
  %1488 = vmatprep.subr.mxu0 %v32
  %1489 = vmatpush1.msra.mxu0 %v31
  %1490 = vmatprep.subr.mxu0 %v35
  %1491 = vmatpush1.msra.mxu0 %v34
  %1492 = vmatprep.subr.mxu0 %v38
  %1493 = vmatpush1.msra.mxu0 %v37
  %1494 = vmatprep.subr.mxu0 %v41
  %1495 = vmatpush1.msra.mxu0 %v40
  %1496 = vmatprep.subr.mxu0 %v44
  %1497 = vmatpush1.msra.mxu0 %v43
  %1498 = vmatprep.subr.mxu0 %v47
  %1499 = vmatpush1.msra.mxu0 %v46
  %1500 = vmatprep.subr.mxu0 %v50
  %1501 = vmatpush1.msra.mxu0 %v49
  %1502 = vmatprep.subr.mxu0 %v53
  %1503 = vmatpush1.msra.mxu0 %v52
  %1504 = vmatprep.subr.mxu0 %v56
  %1505 = vmatpush1.msra.mxu0 %v55
  %1506 = vmatprep.subr.mxu0 %v59
  %1507 = vmatpush1.msra.mxu0 %v58
  %1508 = vmatprep.subr.mxu0 %v62
  %1509 = vmatpush1.msra.mxu0 %v61
  %1510 = vmatprep.subr.mxu0 %v65
  %1511 = vmatpush1.msra.mxu0 %v64
  %1512 = vmatprep.subr.mxu0 %v68
  %1513 = vmatpush1.msra.mxu0 %v67
  %1514 = vmatprep.subr.mxu0 0.0
  %1515 = vmatpush1.msra.mxu0 0.0
  %1516 = vmatprep.subr.mxu0 0.0
  %1517 = vmatpush1.msra.mxu0 0.0
  %1518 = vmatprep.subr.mxu0 0.0
  %1519 = vmatpush1.msra.mxu0 0.0
  %1520 = vmatprep.subr.mxu0 0.0
  %1521 = vmatpush1.msra.mxu0 0.0
  %1522 = vmatprep.subr.mxu0 0.0
  %1523 = vmatpush1.msra.mxu0 0.0
  %1524 = vmatprep.subr.mxu0 0.0
  %1525 = vmatpush1.msra.mxu0 0.0
  %1526 = vmatprep.subr.mxu0 0.0
  %1527 = vmatpush1.msra.mxu0 0.0
  %1528 = vmatprep.subr.mxu0 0.0
  %1529 = vmatpush1.msra.mxu0 0.0
  %1530 = vmatprep.subr.mxu0 0.0
  %1531 = vmatpush1.msra.mxu0 0.0
  %1532 = vmatprep.subr.mxu0 0.0
  %1533 = vmatpush1.msra.mxu0 0.0
  %1534 = vmatprep.subr.mxu0 0.0
  %1535 = vmatpush1.msra.mxu0 0.0
  %1536 = vmatprep.subr.mxu0 0.0
  %1537 = vmatpush1.msra.mxu0 0.0
  %1538 = vmatprep.subr.mxu0 0.0
  %1539 = vmatpush1.msra.mxu0 0.0
  %1540 = vmatprep.subr.mxu0 0.0
  %1541 = vmatpush1.msra.mxu0 0.0
  %1542 = vmatprep.subr.mxu0 0.0
  %1543 = vmatpush1.msra.mxu0 0.0
  %1544 = vmatprep.subr.mxu0 0.0
  %1545 = vmatpush1.msra.mxu0 0.0
  %1546 = vmatprep.mubr.f32.mxu0 0.0
  %1547 = vmatmul.mubr.f32.gmra.mrb[0].mxu0 %v1411
  %v1548 = vpop.f32.mrb[0].mxu0
  %v1549 = vadd.f32 %v78, %v1548
  %v1550 = vpop.f32.mrb[0].mxu0
  %v1551 = vadd.f32 %v82, %v1550
  %1552 = vdwg.mxu0
  %1553 = vmatprep.subr.mxu0 0.0
  %1554 = vmatpush1.msra.mxu0 %v24
  %1555 = vmatprep.subr.mxu0 0.0
  %1556 = vmatpush1.msra.mxu0 %v27
  %1557 = vmatprep.subr.mxu0 0.0
  %1558 = vmatpush1.msra.mxu0 %v30
  %1559 = vmatprep.subr.mxu0 0.0
  %1560 = vmatpush1.msra.mxu0 %v33
  %1561 = vmatprep.subr.mxu0 0.0
  %1562 = vmatpush1.msra.mxu0 %v36
  %1563 = vmatprep.subr.mxu0 0.0
  %1564 = vmatpush1.msra.mxu0 %v39
  %1565 = vmatprep.subr.mxu0 0.0
  %1566 = vmatpush1.msra.mxu0 %v42
  %1567 = vmatprep.subr.mxu0 0.0
  %1568 = vmatpush1.msra.mxu0 %v45
  %1569 = vmatprep.subr.mxu0 0.0
  %1570 = vmatpush1.msra.mxu0 %v48
  %1571 = vmatprep.subr.mxu0 0.0
  %1572 = vmatpush1.msra.mxu0 %v51
  %1573 = vmatprep.subr.mxu0 0.0
  %1574 = vmatpush1.msra.mxu0 %v54
  %1575 = vmatprep.subr.mxu0 0.0
  %1576 = vmatpush1.msra.mxu0 %v57
  %1577 = vmatprep.subr.mxu0 0.0
  %1578 = vmatpush1.msra.mxu0 %v60
  %1579 = vmatprep.subr.mxu0 0.0
  %1580 = vmatpush1.msra.mxu0 %v63
  %1581 = vmatprep.subr.mxu0 0.0
  %1582 = vmatpush1.msra.mxu0 %v66
  %1583 = vmatprep.subr.mxu0 0.0
  %1584 = vmatpush1.msra.mxu0 %v69
  %1585 = vmatprep.subr.mxu0 0.0
  %1586 = vmatpush1.msra.mxu0 0.0
  %1587 = vmatprep.subr.mxu0 0.0
  %1588 = vmatpush1.msra.mxu0 0.0
  %1589 = vmatprep.subr.mxu0 0.0
  %1590 = vmatpush1.msra.mxu0 0.0
  %1591 = vmatprep.subr.mxu0 0.0
  %1592 = vmatpush1.msra.mxu0 0.0
  %1593 = vmatprep.subr.mxu0 0.0
  %1594 = vmatpush1.msra.mxu0 0.0
  %1595 = vmatprep.subr.mxu0 0.0
  %1596 = vmatpush1.msra.mxu0 0.0
  %1597 = vmatprep.subr.mxu0 0.0
  %1598 = vmatpush1.msra.mxu0 0.0
  %1599 = vmatprep.subr.mxu0 0.0
  %1600 = vmatpush1.msra.mxu0 0.0
  %1601 = vmatprep.subr.mxu0 0.0
  %1602 = vmatpush1.msra.mxu0 0.0
  %1603 = vmatprep.subr.mxu0 0.0
  %1604 = vmatpush1.msra.mxu0 0.0
  %1605 = vmatprep.subr.mxu0 0.0
  %1606 = vmatpush1.msra.mxu0 0.0
  %1607 = vmatprep.subr.mxu0 0.0
  %1608 = vmatpush1.msra.mxu0 0.0
  %1609 = vmatprep.subr.mxu0 0.0
  %1610 = vmatpush1.msra.mxu0 0.0
  %1611 = vmatprep.subr.mxu0 0.0
  %1612 = vmatpush1.msra.mxu0 0.0
  %1613 = vmatprep.subr.mxu0 0.0
  %1614 = vmatpush1.msra.mxu0 0.0
  %1615 = vmatprep.subr.mxu0 0.0
  %1616 = vmatpush1.msra.mxu0 0.0
  %1617 = vmatprep.mubr.f32.mxu0 0.0
  %1618 = vmatmul.mubr.f32.gmra.mrb[0].mxu0 %v1411
  %v1619 = vpop.f32.mrb[0].mxu0
  %v1620 = vadd.f32 %v86, %v1619
  %v1621 = vpop.f32.mrb[0].mxu0
  %1622 = vdwg.mxu0
  %v1623 = vadd.f32 %v1479, %v1549
  %v1624 = vxor.u32 %v1623, 2147483648
  %v1625 = vmul.f32 %v1624, 1.442695
  %v1626 = vpow.pop %v1625
  %v1627 = vadd.f32 %v1626, 1.0
  %v1628 = vrcp.pop %v1627
  %v1629 = vmul.f32 1.0, %v1628
  %v1630 = vadd.f32 %v1480, %v1551
  %v1631 = vxor.u32 %v1630, 2147483648
  %v1632 = vmul.f32 %v1631, 1.442695
  %v1633 = vpow.pop %v1632
  %v1634 = vadd.f32 %v1633, 1.0
  %v1635 = vrcp.pop %v1634
  %v1636 = vmul.f32 1.0, %v1635
  %v1637 = vmul.f32 %v1629, %v1620
  %v1638 = vadd.f32 %v1481, %v1637
  %v1639 = vtanh.pop %v1638
  %v1640 = vsub.f32 1.0, %v1636
  %v1641 = vmul.f32 %v1640, %v1639
  %v1642 = vmul.f32 %v1636, %v1411
  %v1643 = vadd.f32 %v1641, %v1642
  %v1645 = vcombine.high %v1643, %v1643
  %v1647 = vunpack.c.l.s4 1966171168
  %v1648 = vunpack.c.0.s8 %v1647
  %v1649 = vlaneseq
  %v1650 = vshrl.u32 %v1649, 7
  %v1651 = vsub.s32 %v1648, %v1650
  %v1652 = vrot.slane %v1643, %v1651
  %v1654 = vunpack.c.l.s4 1966171168
  %v1655 = vunpack.c.0.s8 %v1654
  %v1656 = vlaneseq
  %v1657 = vshrl.u32 %v1656, 7
  %v1658 = vsub.s32 %v1655, %v1657
  %v1659 = vrot.slane %v1645, %v1658
  %v1660 = vcombine.high %v1652, %v1652
  %v1661 = vcombine.high %v1659, %v1659
  %v1663 = vunpack.c.l.s4 1966171168
  %v1664 = vunpack.c.0.s8 %v1663
  %v1665 = vlaneseq
  %v1666 = vshrl.u32 %v1665, 7
  %v1667 = vsub.s32 %v1664, %v1666
  %v1668 = vrot.slane %v1652, %v1667
  %v1670 = vunpack.c.l.s4 1966171168
  %v1671 = vunpack.c.0.s8 %v1670
  %v1672 = vlaneseq
  %v1673 = vshrl.u32 %v1672, 7
  %v1674 = vsub.s32 %v1671, %v1673
  %v1675 = vrot.slane %v1659, %v1674
  %v1677 = vunpack.c.l.s4 1966171168
  %v1678 = vunpack.c.0.s8 %v1677
  %v1679 = vlaneseq
  %v1680 = vshrl.u32 %v1679, 7
  %v1681 = vsub.s32 %v1678, %v1680
  %v1682 = vrot.slane %v1660, %v1681
  %v1684 = vunpack.c.l.s4 1966171168
  %v1685 = vunpack.c.0.s8 %v1684
  %v1686 = vlaneseq
  %v1687 = vshrl.u32 %v1686, 7
  %v1688 = vsub.s32 %v1685, %v1687
  %v1689 = vrot.slane %v1661, %v1688
  %v1690 = vcombine.high %v1668, %v1668
  %v1691 = vcombine.high %v1675, %v1675
  %v1692 = vcombine.high %v1682, %v1682
  %v1693 = vcombine.high %v1689, %v1689
  %1702 = vst [vmem:[%s3 + $0x6] sm:$0x1] %v1668
  %1703 = vst [vmem:[%s3 + $0xe] sm:$0x1] %v1682
  %1704 = vst [vmem:[%s3 + $0x16] sm:$0x1] %v1690
  %1705 = vst [vmem:[%s3 + $0x1e] sm:$0x1] %v1692
  %1706 = vst [vmem:[%s3 + $0x26] sm:$0x1] %v1675
  %1707 = vst [vmem:[%s3 + $0x2e] sm:$0x1] %v1689
  %1708 = vst [vmem:[%s3 + $0x36] sm:$0x1] %v1691
  %1709 = vst [vmem:[%s3 + $0x3e] sm:$0x1] %v1693
  %s1710 = scalar_lea.vmem %s0, 168
  %v1711 = vld [vmem:[%s1710] sm:$0xff]
  %v1712 = vld [vmem:[%s1710 + $0x8] sm:$0xff]
  %v1713 = vld [vmem:[%s1710 + $0x10] sm:$0xff]
  %1714 = vmatprep.subr.mxu0 %v23
  %1715 = vmatpush1.msra.mxu0 %v22
  %1716 = vmatprep.subr.mxu0 %v26
  %1717 = vmatpush1.msra.mxu0 %v25
  %1718 = vmatprep.subr.mxu0 %v29
  %1719 = vmatpush1.msra.mxu0 %v28
  %1720 = vmatprep.subr.mxu0 %v32
  %1721 = vmatpush1.msra.mxu0 %v31
  %1722 = vmatprep.subr.mxu0 %v35
  %1723 = vmatpush1.msra.mxu0 %v34
  %1724 = vmatprep.subr.mxu0 %v38
  %1725 = vmatpush1.msra.mxu0 %v37
  %1726 = vmatprep.subr.mxu0 %v41
  %1727 = vmatpush1.msra.mxu0 %v40
  %1728 = vmatprep.subr.mxu0 %v44
  %1729 = vmatpush1.msra.mxu0 %v43
  %1730 = vmatprep.subr.mxu0 %v47
  %1731 = vmatpush1.msra.mxu0 %v46
  %1732 = vmatprep.subr.mxu0 %v50
  %1733 = vmatpush1.msra.mxu0 %v49
  %1734 = vmatprep.subr.mxu0 %v53
  %1735 = vmatpush1.msra.mxu0 %v52
  %1736 = vmatprep.subr.mxu0 %v56
  %1737 = vmatpush1.msra.mxu0 %v55
  %1738 = vmatprep.subr.mxu0 %v59
  %1739 = vmatpush1.msra.mxu0 %v58
  %1740 = vmatprep.subr.mxu0 %v62
  %1741 = vmatpush1.msra.mxu0 %v61
  %1742 = vmatprep.subr.mxu0 %v65
  %1743 = vmatpush1.msra.mxu0 %v64
  %1744 = vmatprep.subr.mxu0 %v68
  %1745 = vmatpush1.msra.mxu0 %v67
  %1746 = vmatprep.subr.mxu0 0.0
  %1747 = vmatpush1.msra.mxu0 0.0
  %1748 = vmatprep.subr.mxu0 0.0
  %1749 = vmatpush1.msra.mxu0 0.0
  %1750 = vmatprep.subr.mxu0 0.0
  %1751 = vmatpush1.msra.mxu0 0.0
  %1752 = vmatprep.subr.mxu0 0.0
  %1753 = vmatpush1.msra.mxu0 0.0
  %1754 = vmatprep.subr.mxu0 0.0
  %1755 = vmatpush1.msra.mxu0 0.0
  %1756 = vmatprep.subr.mxu0 0.0
  %1757 = vmatpush1.msra.mxu0 0.0
  %1758 = vmatprep.subr.mxu0 0.0
  %1759 = vmatpush1.msra.mxu0 0.0
  %1760 = vmatprep.subr.mxu0 0.0
  %1761 = vmatpush1.msra.mxu0 0.0
  %1762 = vmatprep.subr.mxu0 0.0
  %1763 = vmatpush1.msra.mxu0 0.0
  %1764 = vmatprep.subr.mxu0 0.0
  %1765 = vmatpush1.msra.mxu0 0.0
  %1766 = vmatprep.subr.mxu0 0.0
  %1767 = vmatpush1.msra.mxu0 0.0
  %1768 = vmatprep.subr.mxu0 0.0
  %1769 = vmatpush1.msra.mxu0 0.0
  %1770 = vmatprep.subr.mxu0 0.0
  %1771 = vmatpush1.msra.mxu0 0.0
  %1772 = vmatprep.subr.mxu0 0.0
  %1773 = vmatpush1.msra.mxu0 0.0
  %1774 = vmatprep.subr.mxu0 0.0
  %1775 = vmatpush1.msra.mxu0 0.0
  %1776 = vmatprep.subr.mxu0 0.0
  %1777 = vmatpush1.msra.mxu0 0.0
  %1778 = vmatprep.mubr.f32.mxu0 0.0
  %1779 = vmatmul.mubr.f32.gmra.mrb[0].mxu0 %v1643
  %v1780 = vpop.f32.mrb[0].mxu0
  %v1781 = vadd.f32 %v78, %v1780
  %v1782 = vpop.f32.mrb[0].mxu0
  %v1783 = vadd.f32 %v82, %v1782
  %1784 = vdwg.mxu0
  %1785 = vmatprep.subr.mxu0 0.0
  %1786 = vmatpush1.msra.mxu0 %v24
  %1787 = vmatprep.subr.mxu0 0.0
  %1788 = vmatpush1.msra.mxu0 %v27
  %1789 = vmatprep.subr.mxu0 0.0
  %1790 = vmatpush1.msra.mxu0 %v30
  %1791 = vmatprep.subr.mxu0 0.0
  %1792 = vmatpush1.msra.mxu0 %v33
  %1793 = vmatprep.subr.mxu0 0.0
  %1794 = vmatpush1.msra.mxu0 %v36
  %1795 = vmatprep.subr.mxu0 0.0
  %1796 = vmatpush1.msra.mxu0 %v39
  %1797 = vmatprep.subr.mxu0 0.0
  %1798 = vmatpush1.msra.mxu0 %v42
  %1799 = vmatprep.subr.mxu0 0.0
  %1800 = vmatpush1.msra.mxu0 %v45
  %1801 = vmatprep.subr.mxu0 0.0
  %1802 = vmatpush1.msra.mxu0 %v48
  %1803 = vmatprep.subr.mxu0 0.0
  %1804 = vmatpush1.msra.mxu0 %v51
  %1805 = vmatprep.subr.mxu0 0.0
  %1806 = vmatpush1.msra.mxu0 %v54
  %1807 = vmatprep.subr.mxu0 0.0
  %1808 = vmatpush1.msra.mxu0 %v57
  %1809 = vmatprep.subr.mxu0 0.0
  %1810 = vmatpush1.msra.mxu0 %v60
  %1811 = vmatprep.subr.mxu0 0.0
  %1812 = vmatpush1.msra.mxu0 %v63
  %1813 = vmatprep.subr.mxu0 0.0
  %1814 = vmatpush1.msra.mxu0 %v66
  %1815 = vmatprep.subr.mxu0 0.0
  %1816 = vmatpush1.msra.mxu0 %v69
  %1817 = vmatprep.subr.mxu0 0.0
  %1818 = vmatpush1.msra.mxu0 0.0
  %1819 = vmatprep.subr.mxu0 0.0
  %1820 = vmatpush1.msra.mxu0 0.0
  %1821 = vmatprep.subr.mxu0 0.0
  %1822 = vmatpush1.msra.mxu0 0.0
  %1823 = vmatprep.subr.mxu0 0.0
  %1824 = vmatpush1.msra.mxu0 0.0
  %1825 = vmatprep.subr.mxu0 0.0
  %1826 = vmatpush1.msra.mxu0 0.0
  %1827 = vmatprep.subr.mxu0 0.0
  %1828 = vmatpush1.msra.mxu0 0.0
  %1829 = vmatprep.subr.mxu0 0.0
  %1830 = vmatpush1.msra.mxu0 0.0
  %1831 = vmatprep.subr.mxu0 0.0
  %1832 = vmatpush1.msra.mxu0 0.0
  %1833 = vmatprep.subr.mxu0 0.0
  %1834 = vmatpush1.msra.mxu0 0.0
  %1835 = vmatprep.subr.mxu0 0.0
  %1836 = vmatpush1.msra.mxu0 0.0
  %1837 = vmatprep.subr.mxu0 0.0
  %1838 = vmatpush1.msra.mxu0 0.0
  %1839 = vmatprep.subr.mxu0 0.0
  %1840 = vmatpush1.msra.mxu0 0.0
  %1841 = vmatprep.subr.mxu0 0.0
  %1842 = vmatpush1.msra.mxu0 0.0
  %1843 = vmatprep.subr.mxu0 0.0
  %1844 = vmatpush1.msra.mxu0 0.0
  %1845 = vmatprep.subr.mxu0 0.0
  %1846 = vmatpush1.msra.mxu0 0.0
  %1847 = vmatprep.subr.mxu0 0.0
  %1848 = vmatpush1.msra.mxu0 0.0
  %1849 = vmatprep.mubr.f32.mxu0 0.0
  %1850 = vmatmul.mubr.f32.gmra.mrb[0].mxu0 %v1643
  %v1851 = vpop.f32.mrb[0].mxu0
  %v1852 = vadd.f32 %v86, %v1851
  %v1853 = vpop.f32.mrb[0].mxu0
  %1854 = vdwg.mxu0
  %v1855 = vadd.f32 %v1711, %v1781
  %v1856 = vxor.u32 %v1855, 2147483648
  %v1857 = vmul.f32 %v1856, 1.442695
  %v1858 = vpow.pop %v1857
  %v1859 = vadd.f32 %v1858, 1.0
  %v1860 = vrcp.pop %v1859
  %v1861 = vmul.f32 1.0, %v1860
  %v1862 = vadd.f32 %v1712, %v1783
  %v1863 = vxor.u32 %v1862, 2147483648
  %v1864 = vmul.f32 %v1863, 1.442695
  %v1865 = vpow.pop %v1864
  %v1866 = vadd.f32 %v1865, 1.0
  %v1867 = vrcp.pop %v1866
  %v1868 = vmul.f32 1.0, %v1867
  %v1869 = vmul.f32 %v1861, %v1852
  %v1870 = vadd.f32 %v1713, %v1869
  %v1871 = vtanh.pop %v1870
  %v1872 = vsub.f32 1.0, %v1868
  %v1873 = vmul.f32 %v1872, %v1871
  %v1874 = vmul.f32 %v1868, %v1643
  %v1875 = vadd.f32 %v1873, %v1874
  %v1877 = vcombine.high %v1875, %v1875
  %v1879 = vunpack.c.l.s4 1966171168
  %v1880 = vunpack.c.0.s8 %v1879
  %v1881 = vlaneseq
  %v1882 = vshrl.u32 %v1881, 7
  %v1883 = vsub.s32 %v1880, %v1882
  %v1884 = vrot.slane %v1875, %v1883
  %v1886 = vunpack.c.l.s4 1966171168
  %v1887 = vunpack.c.0.s8 %v1886
  %v1888 = vlaneseq
  %v1889 = vshrl.u32 %v1888, 7
  %v1890 = vsub.s32 %v1887, %v1889
  %v1891 = vrot.slane %v1877, %v1890
  %v1892 = vcombine.high %v1884, %v1884
  %v1893 = vcombine.high %v1891, %v1891
  %v1895 = vunpack.c.l.s4 1966171168
  %v1896 = vunpack.c.0.s8 %v1895
  %v1897 = vlaneseq
  %v1898 = vshrl.u32 %v1897, 7
  %v1899 = vsub.s32 %v1896, %v1898
  %v1900 = vrot.slane %v1884, %v1899
  %v1902 = vunpack.c.l.s4 1966171168
  %v1903 = vunpack.c.0.s8 %v1902
  %v1904 = vlaneseq
  %v1905 = vshrl.u32 %v1904, 7
  %v1906 = vsub.s32 %v1903, %v1905
  %v1907 = vrot.slane %v1891, %v1906
  %v1909 = vunpack.c.l.s4 1966171168
  %v1910 = vunpack.c.0.s8 %v1909
  %v1911 = vlaneseq
  %v1912 = vshrl.u32 %v1911, 7
  %v1913 = vsub.s32 %v1910, %v1912
  %v1914 = vrot.slane %v1892, %v1913
  %v1916 = vunpack.c.l.s4 1966171168
  %v1917 = vunpack.c.0.s8 %v1916
  %v1918 = vlaneseq
  %v1919 = vshrl.u32 %v1918, 7
  %v1920 = vsub.s32 %v1917, %v1919
  %v1921 = vrot.slane %v1893, %v1920
  %v1922 = vcombine.high %v1900, %v1900
  %v1923 = vcombine.high %v1907, %v1907
  %v1924 = vcombine.high %v1914, %v1914
  %v1925 = vcombine.high %v1921, %v1921
  %1934 = vst [vmem:[%s3 + $0x7] sm:$0x1] %v1900
  %1935 = vst [vmem:[%s3 + $0xf] sm:$0x1] %v1914
  %1936 = vst [vmem:[%s3 + $0x17] sm:$0x1] %v1922
  %1937 = vst [vmem:[%s3 + $0x1f] sm:$0x1] %v1924
  %1938 = vst [vmem:[%s3 + $0x27] sm:$0x1] %v1907
  %1939 = vst [vmem:[%s3 + $0x2f] sm:$0x1] %v1921
  %1940 = vst [vmem:[%s3 + $0x37] sm:$0x1] %v1923
  %1941 = vst [vmem:[%s3 + $0x3f] sm:$0x1] %v1925
  %1942 = vst [vmem:[#allocation2] sm:$0xff] %v1875
  %1943 = vst [vmem:[%s4] sm:$0xff] %v1875
  // Predicated region
  $region18: #{seq2seq_forward.2} parent=0 // pred_check
    _
  $region19: #{seq2seq_forward.2} parent=0 // pred_check_branch
    %1945 = sbr.rel (0) target = $region21
  $region20: #{seq2seq_forward.2} parent=0 // pred_region
    _
  $region21: #{seq2seq_forward.2} parent=0 // pred_fallthru
    _
  // Predicated region
  $region22: #{seq2seq_forward.2} parent=0 // pred_check
    _
  $region23: #{seq2seq_forward.2} parent=0 // pred_check_branch
    %1947 = sbr.rel (0) target = $region25
  $region24: #{seq2seq_forward.2} parent=0 // pred_region
    _
  $region25: #{seq2seq_forward.2} parent=0 // pred_fallthru
    _
  // Predicated region
  $region26: #{seq2seq_forward.2} parent=0 // pred_check
    _
  $region27: #{seq2seq_forward.2} parent=0 // pred_check_branch
    %1949 = sbr.rel (0) target = $region29
  $region28: #{seq2seq_forward.2} parent=0 // pred_region
    _
  $region29: #{seq2seq_forward.2} parent=0 // pred_fallthru
    _
  // Predicated region
  $region30: #{seq2seq_forward.2} parent=0 // pred_check
    _
  $region31: #{seq2seq_forward.2} parent=0 // pred_check_branch
    %1951 = sbr.rel (0) target = $region33
  $region32: #{seq2seq_forward.2} parent=0 // pred_region
    _
  $region33: #{seq2seq_forward.2} parent=0 // pred_fallthru
    _

// kernel: seq2seq_forward.3
$region0: #{seq2seq_forward.3}
  #allocation0 [shape = 'u32[]', space=smem, size = 0x4, offset = 0x4, fixed_abs, tag = 'smem constant byte address 0x4 - core index']
  #allocation1 [shape = 'u32[144,128]{1,0:T(1,128)}', space=vmem, size = 0x12000, scoped, tag = 'internal scratch']
  #allocation2 [shape = 'f32[8,128]{1,0:T(8,128)}', space=vmem, size = 0x1000, scoped, tag = 'scratch operand']
  #allocation3 [shape = 'f32[8,128]{1,0:T(8,128)}', space=vmem, size = 0x1000, scoped, tag = 'scratch operand']
  %s0 = inlined_call_operand.vmem [shape: f32[8,8,128], index: 0, kind: input, shape index: {}]
  %s1 = inlined_call_operand.vmem [shape: f32[8,8], index: 1, kind: input, shape index: {}]
  %s2 = inlined_call_operand.vmem [shape: f32[8,128], index: 2, kind: input, shape index: {}]
  %s3 = inlined_call_operand.vmem [shape: f32[128,128], index: 3, kind: input, shape index: {}]
  %s4 = inlined_call_operand.vmem [shape: f32[128,384], index: 4, kind: input, shape index: {}]
  %s5 = inlined_call_operand.vmem [shape: f32[128,384], index: 5, kind: input, shape index: {}]
  %s6 = inlined_call_operand.vmem [shape: f32[128,384], index: 6, kind: input, shape index: {}]
  %s7 = inlined_call_operand.vmem [shape: f32[1,384], index: 7, kind: input, shape index: {}]
  %s8 = inlined_call_operand.vmem [shape: f32[1,384], index: 8, kind: input, shape index: {}]
  %s9 = inlined_call_operand.vmem [shape: f32[128,128], index: 9, kind: input, shape index: {}]
  %s10 = inlined_call_operand.vmem [shape: f32[128,128], index: 10, kind: input, shape index: {}]
  %s11 = inlined_call_operand.vmem [shape: f32[1,128], index: 11, kind: input, shape index: {}]
  %s12 = inlined_call_operand.vmem [shape: f32[8,8,128], index: 12, kind: output, shape index: {0}]
  %s13 = inlined_call_operand.vmem [shape: f32[8,8,8], index: 13, kind: output, shape index: {1}]
  %14 = xla_tuple %s12, %s13
  %s15 = sld [smem:[#allocation0]]
  $region93: #{seq2seq_forward.3} parent=0
    _
  %s17 = ssub.s32 1, %s15
  %s18 = scalar_select 0, %s17, %s15
  loop: start=0, step=1, limit=10
  $region2: #{seq2seq_forward.3} parent=0 // loop_pre_header
    _
  $region3: #{seq2seq_forward.3} parent=0 // loop_header
    %s20 = sphi 0, %s24
    %p21 = scmp.ge.s32.totalorder %s20, 10
    %s28 = sphi 0, %s28
    %s30 = sphi 0, %s28
    %s31 = sphi 0, %s30
    %s45 = sphi 0, %s31
    %s49 = sphi 0, %s49
    %s51 = sphi 0, %s49
    %s52 = sphi 0, %s51
    %s66 = sphi 0, %s52
    %s70 = sphi 0, %s70
    %s72 = sphi 0, %s70
    %s73 = sphi 0, %s72
    %s87 = sphi 0, %s73
    %s91 = sphi 0, %s91
    %s93 = sphi 0, %s91
    %s94 = sphi 0, %s93
    %s108 = sphi 0, %s94
    %s112 = sphi 0, %s112
    %s114 = sphi 0, %s112
    %s115 = sphi 0, %s114
    %s129 = sphi 0, %s115
    %s133 = sphi 0, %s133
    %s135 = sphi 0, %s133
    %s136 = sphi 0, %s135
    %s150 = sphi 0, %s136
    %s154 = sphi 0, %s154
    %s156 = sphi 0, %s154
    %s157 = sphi 0, %s156
    %s171 = sphi 0, %s157
    %s175 = sphi 0, %s175
    %s177 = sphi 0, %s175
    %s178 = sphi 0, %s177
    %s192 = sphi 0, %s178
    %s196 = sphi 0, %s196
    %s198 = sphi 0, %s196
    %s199 = sphi 0, %s198
    %s213 = sphi 0, %s199
    %s217 = sphi 0, %s217
    %s219 = sphi 0, %s217
    %s220 = sphi 0, %s219
    %s234 = sphi 0, %s220
    %s238 = sphi 0, %s238
    %s240 = sphi 0, %s238
    %s241 = sphi 0, %s240
    %s255 = sphi 0, %s241
    %s259 = sphi 0, %s259
    %s261 = sphi 0, %s259
    %s262 = sphi 0, %s261
    %s276 = sphi 0, %s262
    %s282 = sphi 0, %s284
    %s285 = sphi 0, %s282
    %s286 = sphi 0, %s285
    %s302 = sphi 0, %s286
    %s308 = sphi 0, %s310
    %s311 = sphi 0, %s308
    %s312 = sphi 0, %s311
    %s328 = sphi 0, %s312
  $region4: #{seq2seq_forward.3} parent=0 // loop_header_branch
    %23 = sbr.rel (%p21) target = $region8
  $region5: #{seq2seq_forward.3} parent=0 // loop_body
    %s25 = ssub.s32 %s20, 1
    %s26 = ssub.s32 %s20, 2
    %s27 = sadd.s32 %s20, 1
    %s29 = sadd.s32 %s28, 1
    %p32 = scmp.eq.s32.totalorder %s20, 7
    %p33 = scmp.ne.s32.totalorder %s28, %s30
    %p34 = scmp.eq.s32.totalorder %s20, 0
    %p35 = por %p33, %p34
    %p36 = scmp.ne.s32.totalorder %s28, %s30
    %p37 = scmp.eq.s32.totalorder %s25, 7
    %p38 = por %p36, %p37
    %p39 = scmp.ne.s32.totalorder %s30, %s31
    %p40 = scmp.eq.s32.totalorder %s25, 0
    %p41 = por %p39, %p40
    %p42 = scmp.ne.s32.totalorder %s30, %s31
    %p43 = scmp.eq.s32.totalorder %s26, 7
    %p44 = por %p42, %p43
    %p46 = scmp.ne.s32.totalorder %s31, %s45
    %p47 = scmp.eq.s32.totalorder %s26, 0
    %p48 = por %p46, %p47
    %s50 = sadd.s32 %s49, 1
    %p53 = scmp.eq.s32.totalorder %s20, 7
    %p54 = scmp.ne.s32.totalorder %s49, %s51
    %p55 = scmp.eq.s32.totalorder %s20, 0
    %p56 = por %p54, %p55
    %p57 = scmp.ne.s32.totalorder %s49, %s51
    %p58 = scmp.eq.s32.totalorder %s25, 7
    %p59 = por %p57, %p58
    %p60 = scmp.ne.s32.totalorder %s51, %s52
    %p61 = scmp.eq.s32.totalorder %s25, 0
    %p62 = por %p60, %p61
    %p63 = scmp.ne.s32.totalorder %s51, %s52
    %p64 = scmp.eq.s32.totalorder %s26, 7
    %p65 = por %p63, %p64
    %p67 = scmp.ne.s32.totalorder %s52, %s66
    %p68 = scmp.eq.s32.totalorder %s26, 0
    %p69 = por %p67, %p68
    %s71 = sadd.s32 %s70, 1
    %p74 = scmp.eq.s32.totalorder %s20, 7
    %p75 = scmp.ne.s32.totalorder %s70, %s72
    %p76 = scmp.eq.s32.totalorder %s20, 0
    %p77 = por %p75, %p76
    %p78 = scmp.ne.s32.totalorder %s70, %s72
    %p79 = scmp.eq.s32.totalorder %s25, 7
    %p80 = por %p78, %p79
    %p81 = scmp.ne.s32.totalorder %s72, %s73
    %p82 = scmp.eq.s32.totalorder %s25, 0
    %p83 = por %p81, %p82
    %p84 = scmp.ne.s32.totalorder %s72, %s73
    %p85 = scmp.eq.s32.totalorder %s26, 7
    %p86 = por %p84, %p85
    %p88 = scmp.ne.s32.totalorder %s73, %s87
    %p89 = scmp.eq.s32.totalorder %s26, 0
    %p90 = por %p88, %p89
    %s92 = sadd.s32 %s91, 1
    %p95 = scmp.eq.s32.totalorder %s20, 7
    %p96 = scmp.ne.s32.totalorder %s91, %s93
    %p97 = scmp.eq.s32.totalorder %s20, 0
    %p98 = por %p96, %p97
    %p99 = scmp.ne.s32.totalorder %s91, %s93
    %p100 = scmp.eq.s32.totalorder %s25, 7
    %p101 = por %p99, %p100
    %p102 = scmp.ne.s32.totalorder %s93, %s94
    %p103 = scmp.eq.s32.totalorder %s25, 0
    %p104 = por %p102, %p103
    %p105 = scmp.ne.s32.totalorder %s93, %s94
    %p106 = scmp.eq.s32.totalorder %s26, 7
    %p107 = por %p105, %p106
    %p109 = scmp.ne.s32.totalorder %s94, %s108
    %p110 = scmp.eq.s32.totalorder %s26, 0
    %p111 = por %p109, %p110
    %s113 = sadd.s32 %s112, 1
    %p116 = scmp.eq.s32.totalorder %s20, 7
    %p117 = scmp.ne.s32.totalorder %s112, %s114
    %p118 = scmp.eq.s32.totalorder %s20, 0
    %p119 = por %p117, %p118
    %p120 = scmp.ne.s32.totalorder %s112, %s114
    %p121 = scmp.eq.s32.totalorder %s25, 7
    %p122 = por %p120, %p121
    %p123 = scmp.ne.s32.totalorder %s114, %s115
    %p124 = scmp.eq.s32.totalorder %s25, 0
    %p125 = por %p123, %p124
    %p126 = scmp.ne.s32.totalorder %s114, %s115
    %p127 = scmp.eq.s32.totalorder %s26, 7
    %p128 = por %p126, %p127
    %p130 = scmp.ne.s32.totalorder %s115, %s129
    %p131 = scmp.eq.s32.totalorder %s26, 0
    %p132 = por %p130, %p131
    %s134 = sadd.s32 %s133, 1
    %p137 = scmp.eq.s32.totalorder %s20, 7
    %p138 = scmp.ne.s32.totalorder %s133, %s135
    %p139 = scmp.eq.s32.totalorder %s20, 0
    %p140 = por %p138, %p139
    %p141 = scmp.ne.s32.totalorder %s133, %s135
    %p142 = scmp.eq.s32.totalorder %s25, 7
    %p143 = por %p141, %p142
    %p144 = scmp.ne.s32.totalorder %s135, %s136
    %p145 = scmp.eq.s32.totalorder %s25, 0
    %p146 = por %p144, %p145
    %p147 = scmp.ne.s32.totalorder %s135, %s136
    %p148 = scmp.eq.s32.totalorder %s26, 7
    %p149 = por %p147, %p148
    %p151 = scmp.ne.s32.totalorder %s136, %s150
    %p152 = scmp.eq.s32.totalorder %s26, 0
    %p153 = por %p151, %p152
    %s155 = sadd.s32 %s154, 1
    %p158 = scmp.eq.s32.totalorder %s20, 7
    %p159 = scmp.ne.s32.totalorder %s154, %s156
    %p160 = scmp.eq.s32.totalorder %s20, 0
    %p161 = por %p159, %p160
    %p162 = scmp.ne.s32.totalorder %s154, %s156
    %p163 = scmp.eq.s32.totalorder %s25, 7
    %p164 = por %p162, %p163
    %p165 = scmp.ne.s32.totalorder %s156, %s157
    %p166 = scmp.eq.s32.totalorder %s25, 0
    %p167 = por %p165, %p166
    %p168 = scmp.ne.s32.totalorder %s156, %s157
    %p169 = scmp.eq.s32.totalorder %s26, 7
    %p170 = por %p168, %p169
    %p172 = scmp.ne.s32.totalorder %s157, %s171
    %p173 = scmp.eq.s32.totalorder %s26, 0
    %p174 = por %p172, %p173
    %s176 = sadd.s32 %s175, 1
    %p179 = scmp.eq.s32.totalorder %s20, 7
    %p180 = scmp.ne.s32.totalorder %s175, %s177
    %p181 = scmp.eq.s32.totalorder %s20, 0
    %p182 = por %p180, %p181
    %p183 = scmp.ne.s32.totalorder %s175, %s177
    %p184 = scmp.eq.s32.totalorder %s25, 7
    %p185 = por %p183, %p184
    %p186 = scmp.ne.s32.totalorder %s177, %s178
    %p187 = scmp.eq.s32.totalorder %s25, 0
    %p188 = por %p186, %p187
    %p189 = scmp.ne.s32.totalorder %s177, %s178
    %p190 = scmp.eq.s32.totalorder %s26, 7
    %p191 = por %p189, %p190
    %p193 = scmp.ne.s32.totalorder %s178, %s192
    %p194 = scmp.eq.s32.totalorder %s26, 0
    %p195 = por %p193, %p194
    %s197 = sadd.s32 %s196, 1
    %p200 = scmp.eq.s32.totalorder %s20, 7
    %p201 = scmp.ne.s32.totalorder %s196, %s198
    %p202 = scmp.eq.s32.totalorder %s20, 0
    %p203 = por %p201, %p202
    %p204 = scmp.ne.s32.totalorder %s196, %s198
    %p205 = scmp.eq.s32.totalorder %s25, 7
    %p206 = por %p204, %p205
    %p207 = scmp.ne.s32.totalorder %s198, %s199
    %p208 = scmp.eq.s32.totalorder %s25, 0
    %p209 = por %p207, %p208
    %p210 = scmp.ne.s32.totalorder %s198, %s199
    %p211 = scmp.eq.s32.totalorder %s26, 7
    %p212 = por %p210, %p211
    %p214 = scmp.ne.s32.totalorder %s199, %s213
    %p215 = scmp.eq.s32.totalorder %s26, 0
    %p216 = por %p214, %p215
    %s218 = sadd.s32 %s217, 1
    %p221 = scmp.eq.s32.totalorder %s20, 7
    %p222 = scmp.ne.s32.totalorder %s217, %s219
    %p223 = scmp.eq.s32.totalorder %s20, 0
    %p224 = por %p222, %p223
    %p225 = scmp.ne.s32.totalorder %s217, %s219
    %p226 = scmp.eq.s32.totalorder %s25, 7
    %p227 = por %p225, %p226
    %p228 = scmp.ne.s32.totalorder %s219, %s220
    %p229 = scmp.eq.s32.totalorder %s25, 0
    %p230 = por %p228, %p229
    %p231 = scmp.ne.s32.totalorder %s219, %s220
    %p232 = scmp.eq.s32.totalorder %s26, 7
    %p233 = por %p231, %p232
    %p235 = scmp.ne.s32.totalorder %s220, %s234
    %p236 = scmp.eq.s32.totalorder %s26, 0
    %p237 = por %p235, %p236
    %s239 = sadd.s32 %s238, 1
    %p242 = scmp.eq.s32.totalorder %s20, 7
    %p243 = scmp.ne.s32.totalorder %s238, %s240
    %p244 = scmp.eq.s32.totalorder %s20, 0
    %p245 = por %p243, %p244
    %p246 = scmp.ne.s32.totalorder %s238, %s240
    %p247 = scmp.eq.s32.totalorder %s25, 7
    %p248 = por %p246, %p247
    %p249 = scmp.ne.s32.totalorder %s240, %s241
    %p250 = scmp.eq.s32.totalorder %s25, 0
    %p251 = por %p249, %p250
    %p252 = scmp.ne.s32.totalorder %s240, %s241
    %p253 = scmp.eq.s32.totalorder %s26, 7
    %p254 = por %p252, %p253
    %p256 = scmp.ne.s32.totalorder %s241, %s255
    %p257 = scmp.eq.s32.totalorder %s26, 0
    %p258 = por %p256, %p257
    %s260 = sadd.s32 %s259, 1
    %p263 = scmp.eq.s32.totalorder %s20, 7
    %p264 = scmp.ne.s32.totalorder %s259, %s261
    %p265 = scmp.eq.s32.totalorder %s20, 0
    %p266 = por %p264, %p265
    %p267 = scmp.ne.s32.totalorder %s259, %s261
    %p268 = scmp.eq.s32.totalorder %s25, 7
    %p269 = por %p267, %p268
    %p270 = scmp.ne.s32.totalorder %s261, %s262
    %p271 = scmp.eq.s32.totalorder %s25, 0
    %p272 = por %p270, %p271
    %p273 = scmp.ne.s32.totalorder %s261, %s262
    %p274 = scmp.eq.s32.totalorder %s26, 7
    %p275 = por %p273, %p274
    %p277 = scmp.ne.s32.totalorder %s262, %s276
    %p278 = scmp.eq.s32.totalorder %s26, 0
    %p279 = por %p277, %p278
    %s280 = ssub.s32 %s20, %s27
    %p281 = scmp.eq.s32.totalorder %s280, 0
    %s283 = sadd.s32 %s282, 1
    %s284 = scalar_select %p281, %s282, %s283
    %p287 = pneg %p281
    %p288 = scmp.eq.s32.totalorder %s20, 7
    %p289 = por %p287, %p288
    %p290 = scmp.ne.s32.totalorder %s282, %s285
    %p291 = scmp.eq.s32.totalorder %s20, 0
    %p292 = por %p290, %p291
    %p293 = scmp.ne.s32.totalorder %s282, %s285
    %p294 = scmp.eq.s32.totalorder %s25, 7
    %p295 = por %p293, %p294
    %p296 = scmp.ne.s32.totalorder %s285, %s286
    %p297 = scmp.eq.s32.totalorder %s25, 0
    %p298 = por %p296, %p297
    %p299 = scmp.ne.s32.totalorder %s285, %s286
    %p300 = scmp.eq.s32.totalorder %s26, 7
    %p301 = por %p299, %p300
    %p303 = scmp.ne.s32.totalorder %s286, %s302
    %p304 = scmp.eq.s32.totalorder %s26, 0
    %p305 = por %p303, %p304
    %s306 = ssub.s32 %s20, %s27
    %p307 = scmp.eq.s32.totalorder %s306, 0
    %s309 = sadd.s32 %s308, 1
    %s310 = scalar_select %p307, %s308, %s309
    %p313 = pneg %p307
    %p314 = scmp.eq.s32.totalorder %s20, 7
    %p315 = por %p313, %p314
    %p316 = scmp.ne.s32.totalorder %s308, %s311
    %p317 = scmp.eq.s32.totalorder %s20, 0
    %p318 = por %p316, %p317
    %p319 = scmp.ne.s32.totalorder %s308, %s311
    %p320 = scmp.eq.s32.totalorder %s25, 7
    %p321 = por %p319, %p320
    %p322 = scmp.ne.s32.totalorder %s311, %s312
    %p323 = scmp.eq.s32.totalorder %s25, 0
    %p324 = por %p322, %p323
    %p325 = scmp.ne.s32.totalorder %s311, %s312
    %p326 = scmp.eq.s32.totalorder %s26, 7
    %p327 = por %p325, %p326
    %p329 = scmp.ne.s32.totalorder %s312, %s328
    %p330 = scmp.eq.s32.totalorder %s26, 0
    %p331 = por %p329, %p330
    %p332 = scmp.le.s32.totalorder 1, %s20
    %p333 = scmp.lt.s32.totalorder %s20, 9
    %p334 = pnand %p332, %p333
    %p335 = pneg %p334
    // Predicated region
    $region9: #{seq2seq_forward.3} parent=5 // pred_check
      _
    $region10: #{seq2seq_forward.3} parent=5 // pred_check_branch
      %337 = sbr.rel (%p334) target = $region12
    $region11: #{seq2seq_forward.3} parent=5 // pred_region
      %s338 = ssub.s32 %s20, 1
      // Predicated region
      $region13: #{seq2seq_forward.3} parent=11 // pred_check
        %p339 = pneg %p41
      $region14: #{seq2seq_forward.3} parent=11 // pred_check_branch
        %341 = sbr.rel (%p339) target = $region16
      $region15: #{seq2seq_forward.3} parent=11 // pred_region
        _
      $region16: #{seq2seq_forward.3} parent=11 // pred_fallthru
        _
      // Predicated region
      $region17: #{seq2seq_forward.3} parent=11 // pred_check
        %p342 = pneg %p62
      $region18: #{seq2seq_forward.3} parent=11 // pred_check_branch
        %344 = sbr.rel (%p342) target = $region20
      $region19: #{seq2seq_forward.3} parent=11 // pred_region
        _
      $region20: #{seq2seq_forward.3} parent=11 // pred_fallthru
        _
      // Predicated region
      $region21: #{seq2seq_forward.3} parent=11 // pred_check
        %p345 = pneg %p83
      $region22: #{seq2seq_forward.3} parent=11 // pred_check_branch
        %347 = sbr.rel (%p345) target = $region24
      $region23: #{seq2seq_forward.3} parent=11 // pred_region
        _
      $region24: #{seq2seq_forward.3} parent=11 // pred_fallthru
        _
      // Predicated region
      $region25: #{seq2seq_forward.3} parent=11 // pred_check
        %p348 = pneg %p104
      $region26: #{seq2seq_forward.3} parent=11 // pred_check_branch
        %350 = sbr.rel (%p348) target = $region28
      $region27: #{seq2seq_forward.3} parent=11 // pred_region
        _
      $region28: #{seq2seq_forward.3} parent=11 // pred_fallthru
        _
      // Predicated region
      $region29: #{seq2seq_forward.3} parent=11 // pred_check
        %p351 = pneg %p125
      $region30: #{seq2seq_forward.3} parent=11 // pred_check_branch
        %353 = sbr.rel (%p351) target = $region32
      $region31: #{seq2seq_forward.3} parent=11 // pred_region
        _
      $region32: #{seq2seq_forward.3} parent=11 // pred_fallthru
        _
      // Predicated region
      $region33: #{seq2seq_forward.3} parent=11 // pred_check
        %p354 = pneg %p146
      $region34: #{seq2seq_forward.3} parent=11 // pred_check_branch
        %356 = sbr.rel (%p354) target = $region36
      $region35: #{seq2seq_forward.3} parent=11 // pred_region
        _
      $region36: #{seq2seq_forward.3} parent=11 // pred_fallthru
        _
      // Predicated region
      $region37: #{seq2seq_forward.3} parent=11 // pred_check
        %p357 = pneg %p167
      $region38: #{seq2seq_forward.3} parent=11 // pred_check_branch
        %359 = sbr.rel (%p357) target = $region40
      $region39: #{seq2seq_forward.3} parent=11 // pred_region
        _
      $region40: #{seq2seq_forward.3} parent=11 // pred_fallthru
        _
      // Predicated region
      $region41: #{seq2seq_forward.3} parent=11 // pred_check
        %p360 = pneg %p188
      $region42: #{seq2seq_forward.3} parent=11 // pred_check_branch
        %362 = sbr.rel (%p360) target = $region44
      $region43: #{seq2seq_forward.3} parent=11 // pred_region
        _
      $region44: #{seq2seq_forward.3} parent=11 // pred_fallthru
        _
      // Predicated region
      $region45: #{seq2seq_forward.3} parent=11 // pred_check
        %p363 = pneg %p209
      $region46: #{seq2seq_forward.3} parent=11 // pred_check_branch
        %365 = sbr.rel (%p363) target = $region48
      $region47: #{seq2seq_forward.3} parent=11 // pred_region
        _
      $region48: #{seq2seq_forward.3} parent=11 // pred_fallthru
        _
      // Predicated region
      $region49: #{seq2seq_forward.3} parent=11 // pred_check
        %p366 = pneg %p230
      $region50: #{seq2seq_forward.3} parent=11 // pred_check_branch
        %368 = sbr.rel (%p366) target = $region52
      $region51: #{seq2seq_forward.3} parent=11 // pred_region
        _
      $region52: #{seq2seq_forward.3} parent=11 // pred_fallthru
        _
      // Predicated region
      $region53: #{seq2seq_forward.3} parent=11 // pred_check
        %p369 = pneg %p251
      $region54: #{seq2seq_forward.3} parent=11 // pred_check_branch
        %371 = sbr.rel (%p369) target = $region56
      $region55: #{seq2seq_forward.3} parent=11 // pred_region
        _
      $region56: #{seq2seq_forward.3} parent=11 // pred_fallthru
        _
      // Predicated region
      $region57: #{seq2seq_forward.3} parent=11 // pred_check
        %p372 = pneg %p272
      $region58: #{seq2seq_forward.3} parent=11 // pred_check_branch
        %374 = sbr.rel (%p372) target = $region60
      $region59: #{seq2seq_forward.3} parent=11 // pred_region
        _
      $region60: #{seq2seq_forward.3} parent=11 // pred_fallthru
        _
    $region12: #{seq2seq_forward.3} parent=5 // pred_fallthru
      _
    %p375 = scmp.lt.s32.totalorder %s20, 8
    // Predicated region
    $region61: #{seq2seq_forward.3} parent=5 // pred_check
      %p376 = pneg %p375
    $region62: #{seq2seq_forward.3} parent=5 // pred_check_branch
      %378 = sbr.rel (%p376) target = $region64
    $region63: #{seq2seq_forward.3} parent=5 // pred_region
      _
    $region64: #{seq2seq_forward.3} parent=5 // pred_fallthru
      _
    %p379 = scmp.le.s32.totalorder 1, %s20
    %p380 = scmp.lt.s32.totalorder %s20, 9
    %p381 = pnand %p379, %p380
    %p382 = pneg %p381
    // Predicated region
    $region65: #{seq2seq_forward.3} parent=5 // pred_check
      _
    $region66: #{seq2seq_forward.3} parent=5 // pred_check_branch
      %384 = sbr.rel (%p381) target = $region68
    $region67: #{seq2seq_forward.3} parent=5 // pred_region
      %s385 = ssub.s32 %s20, 1
      %p386 = pneg %p41
      %p387 = pneg %p38
      %p388 = pneg %p62
      %p389 = pneg %p59
      %p390 = pneg %p83
      %p391 = pneg %p80
      %p392 = pneg %p104
      %p393 = pneg %p101
      %p394 = pneg %p125
      %p395 = pneg %p122
      %p396 = pneg %p146
      %p397 = pneg %p143
      %p398 = pneg %p167
      %p399 = pneg %p164
      %p400 = pneg %p188
      %p401 = pneg %p185
      %p402 = pneg %p209
      %p403 = pneg %p206
      %p404 = pneg %p230
      %p405 = pneg %p227
      %p406 = pneg %p251
      %p407 = pneg %p248
      %p408 = pneg %p272
      %p409 = pneg %p269
      %p410 = pneg %p298
      %p411 = pneg %p295
      %p412 = scmp.lt.s32.totalorder %s25, 7
      %s413 = scalar_select %p412, %s25, 7
      %s414 = smul.addr %s413, 8
      %s415 = scalar_lea.vmem %s12, %s414
      %p416 = pneg %p324
      %p417 = pneg %p321
      %p418 = scmp.lt.s32.totalorder %s25, 7
      %s419 = scalar_select %p418, %s25, 7
      %s420 = smul.addr %s419, 8
      %s421 = scalar_lea.vmem %s13, %s420
      %p422 = scmp.lt.s32.totalorder %s25, 7
      %s423 = scalar_select %p422, %s25, 7
      %s424 = smul.addr %s423, 8
      %s425 = scalar_lea.vmem %s12, %s424
      %p426 = scmp.lt.s32.totalorder %s25, 7
      %s427 = scalar_select %p426, %s25, 7
      %s428 = smul.addr %s427, 8
      %s429 = scalar_lea.vmem %s13, %s428
      %v430 = vlaneseq
      %v431 = vand.u32 %v430, 127
      %p432 = scmp.eq.s32.totalorder %s25, 0
      // Predicated region
      $region69: #{seq2seq_forward.3} parent=67 // pred_check
        %p433 = pneg %p432
      $region70: #{seq2seq_forward.3} parent=67 // pred_check_branch
        %435 = sbr.rel (%p433) target = $region72
      $region71: #{seq2seq_forward.3} parent=67 // pred_region
        %v436 = vld [vmem:[%s2] sm:$0xff]
        %437 = vst [vmem:[#allocation2] sm:$0xff] %v436
        %vm438 = vcmp.eq.s32.totalorder %v431, 0
        %v439 = vsel %vm438, 1, 0
        %v440 = vcvt.s32.f32 %v439
        %441 = vst [vmem:[#allocation3] sm:$0xff] %v440
      $region72: #{seq2seq_forward.3} parent=67 // pred_fallthru
        _
      %v442 = vld [vmem:[#allocation2] sm:$0xff]
      %v443 = vld [vmem:[#allocation3] sm:$0xff]
      %v444 = vld [vmem:[%s3] sm:$0xff]
      %v445 = vld [vmem:[%s3 + $0x8] sm:$0xff]
      %v446 = vld [vmem:[%s3 + $0x10] sm:$0xff]
      %v447 = vld [vmem:[%s3 + $0x18] sm:$0xff]
      %v448 = vld [vmem:[%s3 + $0x20] sm:$0xff]
      %v449 = vld [vmem:[%s3 + $0x28] sm:$0xff]
      %v450 = vld [vmem:[%s3 + $0x30] sm:$0xff]
      %v451 = vld [vmem:[%s3 + $0x38] sm:$0xff]
      %v452 = vld [vmem:[%s3 + $0x40] sm:$0xff]
      %v453 = vld [vmem:[%s3 + $0x48] sm:$0xff]
      %v454 = vld [vmem:[%s3 + $0x50] sm:$0xff]
      %v455 = vld [vmem:[%s3 + $0x58] sm:$0xff]
      %v456 = vld [vmem:[%s3 + $0x60] sm:$0xff]
      %v457 = vld [vmem:[%s3 + $0x68] sm:$0xff]
      %v458 = vld [vmem:[%s3 + $0x70] sm:$0xff]
      %v459 = vld [vmem:[%s3 + $0x78] sm:$0xff]
      %460 = vmatprep.subr.mxu0 0.0
      %461 = vmatpush1.msra.mxu0 %v444
      %462 = vmatprep.subr.mxu0 0.0
      %463 = vmatpush1.msra.mxu0 %v445
      %464 = vmatprep.subr.mxu0 0.0
      %465 = vmatpush1.msra.mxu0 %v446
      %466 = vmatprep.subr.mxu0 0.0
      %467 = vmatpush1.msra.mxu0 %v447
      %468 = vmatprep.subr.mxu0 0.0
      %469 = vmatpush1.msra.mxu0 %v448
      %470 = vmatprep.subr.mxu0 0.0
      %471 = vmatpush1.msra.mxu0 %v449
      %472 = vmatprep.subr.mxu0 0.0
      %473 = vmatpush1.msra.mxu0 %v450
      %474 = vmatprep.subr.mxu0 0.0
      %475 = vmatpush1.msra.mxu0 %v451
      %476 = vmatprep.subr.mxu0 0.0
      %477 = vmatpush1.msra.mxu0 %v452
      %478 = vmatprep.subr.mxu0 0.0
      %479 = vmatpush1.msra.mxu0 %v453
      %480 = vmatprep.subr.mxu0 0.0
      %481 = vmatpush1.msra.mxu0 %v454
      %482 = vmatprep.subr.mxu0 0.0
      %483 = vmatpush1.msra.mxu0 %v455
      %484 = vmatprep.subr.mxu0 0.0
      %485 = vmatpush1.msra.mxu0 %v456
      %486 = vmatprep.subr.mxu0 0.0
      %487 = vmatpush1.msra.mxu0 %v457
      %488 = vmatprep.subr.mxu0 0.0
      %489 = vmatpush1.msra.mxu0 %v458
      %490 = vmatprep.subr.mxu0 0.0
      %491 = vmatpush1.msra.mxu0 %v459
      %492 = vmatprep.subr.mxu0 0.0
      %493 = vmatpush1.msra.mxu0 0.0
      %494 = vmatprep.subr.mxu0 0.0
      %495 = vmatpush1.msra.mxu0 0.0
      %496 = vmatprep.subr.mxu0 0.0
      %497 = vmatpush1.msra.mxu0 0.0
      %498 = vmatprep.subr.mxu0 0.0
      %499 = vmatpush1.msra.mxu0 0.0
      %500 = vmatprep.subr.mxu0 0.0
      %501 = vmatpush1.msra.mxu0 0.0
      %502 = vmatprep.subr.mxu0 0.0
      %503 = vmatpush1.msra.mxu0 0.0
      %504 = vmatprep.subr.mxu0 0.0
      %505 = vmatpush1.msra.mxu0 0.0
      %506 = vmatprep.subr.mxu0 0.0
      %507 = vmatpush1.msra.mxu0 0.0
      %508 = vmatprep.subr.mxu0 0.0
      %509 = vmatpush1.msra.mxu0 0.0
      %510 = vmatprep.subr.mxu0 0.0
      %511 = vmatpush1.msra.mxu0 0.0
      %512 = vmatprep.subr.mxu0 0.0
      %513 = vmatpush1.msra.mxu0 0.0
      %514 = vmatprep.subr.mxu0 0.0
      %515 = vmatpush1.msra.mxu0 0.0
      %516 = vmatprep.subr.mxu0 0.0
      %517 = vmatpush1.msra.mxu0 0.0
      %518 = vmatprep.subr.mxu0 0.0
      %519 = vmatpush1.msra.mxu0 0.0
      %520 = vmatprep.subr.mxu0 0.0
      %521 = vmatpush1.msra.mxu0 0.0
      %522 = vmatprep.subr.mxu0 0.0
      %523 = vmatpush1.msra.mxu0 0.0
      %524 = vmatprep.mubr.f32.mxu0 0.0
      %525 = vmatmul.mubr.f32.gmra.mrb[0].mxu0 %v443
      %v526 = vpop.f32.mrb[0].mxu0
      %v527 = vadd.f32 0.0, %v526
      %v528 = vpop.f32.mrb[0].mxu0
      %529 = vdwg.mxu0
      %v530 = vld [vmem:[%s0] sm:$0xff]
      %v531 = vld [vmem:[%s0 + $0x8] sm:$0xff]
      %v532 = vld [vmem:[%s0 + $0x10] sm:$0xff]
      %v533 = vld [vmem:[%s0 + $0x18] sm:$0xff]
      %v534 = vld [vmem:[%s0 + $0x20] sm:$0xff]
      %v535 = vld [vmem:[%s0 + $0x28] sm:$0xff]
      %v536 = vld [vmem:[%s0 + $0x30] sm:$0xff]
      %v537 = vld [vmem:[%s0 + $0x38] sm:$0xff]
      %v539 = vcombine.high %v442, %v442
      %v541 = vunpack.c.l.s4 1966171168
      %v542 = vunpack.c.0.s8 %v541
      %v543 = vlaneseq
      %v544 = vshrl.u32 %v543, 7
      %v545 = vsub.s32 %v542, %v544
      %v546 = vrot.slane %v442, %v545
      %v548 = vunpack.c.l.s4 1966171168
      %v549 = vunpack.c.0.s8 %v548
      %v550 = vlaneseq
      %v551 = vshrl.u32 %v550, 7
      %v552 = vsub.s32 %v549, %v551
      %v553 = vrot.slane %v539, %v552
      %v554 = vcombine.high %v546, %v546
      %v555 = vcombine.high %v553, %v553
      %v557 = vunpack.c.l.s4 1966171168
      %v558 = vunpack.c.0.s8 %v557
      %v559 = vlaneseq
      %v560 = vshrl.u32 %v559, 7
      %v561 = vsub.s32 %v558, %v560
      %v562 = vrot.slane %v546, %v561
      %v564 = vunpack.c.l.s4 1966171168
      %v565 = vunpack.c.0.s8 %v564
      %v566 = vlaneseq
      %v567 = vshrl.u32 %v566, 7
      %v568 = vsub.s32 %v565, %v567
      %v569 = vrot.slane %v553, %v568
      %v571 = vunpack.c.l.s4 1966171168
      %v572 = vunpack.c.0.s8 %v571
      %v573 = vlaneseq
      %v574 = vshrl.u32 %v573, 7
      %v575 = vsub.s32 %v572, %v574
      %v576 = vrot.slane %v554, %v575
      %v578 = vunpack.c.l.s4 1966171168
      %v579 = vunpack.c.0.s8 %v578
      %v580 = vlaneseq
      %v581 = vshrl.u32 %v580, 7
      %v582 = vsub.s32 %v579, %v581
      %v583 = vrot.slane %v555, %v582
      %v584 = vcombine.high %v562, %v562
      %v585 = vcombine.high %v569, %v569
      %v586 = vcombine.high %v576, %v576
      %v587 = vcombine.high %v583, %v583
      %596 = vmatprep.subr.mxu0 0.0
      %597 = vmatpush1.xpose.msra.mxu0 %v530
      %598 = vmatprep.subr.mxu0 0.0
      %599 = vmatpush1.xpose.msra.mxu0 0.0
      %600 = vmatprep.subr.mxu0 0.0
      %601 = vmatpush1.xpose.msra.mxu0 0.0
      %602 = vmatprep.subr.mxu0 0.0
      %603 = vmatpush1.xpose.msra.mxu0 0.0
      %604 = vmatprep.subr.mxu0 0.0
      %605 = vmatpush1.xpose.msra.mxu0 0.0
      %606 = vmatprep.subr.mxu0 0.0
      %607 = vmatpush1.xpose.msra.mxu0 0.0
      %608 = vmatprep.subr.mxu0 0.0
      %609 = vmatpush1.xpose.msra.mxu0 0.0
      %610 = vmatprep.subr.mxu0 0.0
      %611 = vmatpush1.xpose.msra.mxu0 0.0
      %612 = vmatprep.subr.mxu0 0.0
      %613 = vmatpush1.xpose.msra.mxu0 0.0
      %614 = vmatprep.subr.mxu0 0.0
      %615 = vmatpush1.xpose.msra.mxu0 0.0
      %616 = vmatprep.subr.mxu0 0.0
      %617 = vmatpush1.xpose.msra.mxu0 0.0
      %618 = vmatprep.subr.mxu0 0.0
      %619 = vmatpush1.xpose.msra.mxu0 0.0
      %620 = vmatprep.subr.mxu0 0.0
      %621 = vmatpush1.xpose.msra.mxu0 0.0
      %622 = vmatprep.subr.mxu0 0.0
      %623 = vmatpush1.xpose.msra.mxu0 0.0
      %624 = vmatprep.subr.mxu0 0.0
      %625 = vmatpush1.xpose.msra.mxu0 0.0
      %626 = vmatprep.subr.mxu0 0.0
      %627 = vmatpush1.xpose.msra.mxu0 0.0
      %628 = vmatprep.subr.mxu0 0.0
      %629 = vmatpush1.xpose.msra.mxu0 0.0
      %630 = vmatprep.subr.mxu0 0.0
      %631 = vmatpush1.xpose.msra.mxu0 0.0
      %632 = vmatprep.subr.mxu0 0.0
      %633 = vmatpush1.xpose.msra.mxu0 0.0
      %634 = vmatprep.subr.mxu0 0.0
      %635 = vmatpush1.xpose.msra.mxu0 0.0
      %636 = vmatprep.subr.mxu0 0.0
      %637 = vmatpush1.xpose.msra.mxu0 0.0
      %638 = vmatprep.subr.mxu0 0.0
      %639 = vmatpush1.xpose.msra.mxu0 0.0
      %640 = vmatprep.subr.mxu0 0.0
      %641 = vmatpush1.xpose.msra.mxu0 0.0
      %642 = vmatprep.subr.mxu0 0.0
      %643 = vmatpush1.xpose.msra.mxu0 0.0
      %644 = vmatprep.subr.mxu0 0.0
      %645 = vmatpush1.xpose.msra.mxu0 0.0
      %646 = vmatprep.subr.mxu0 0.0
      %647 = vmatpush1.xpose.msra.mxu0 0.0
      %648 = vmatprep.subr.mxu0 0.0
      %649 = vmatpush1.xpose.msra.mxu0 0.0
      %650 = vmatprep.subr.mxu0 0.0
      %651 = vmatpush1.xpose.msra.mxu0 0.0
      %652 = vmatprep.subr.mxu0 0.0
      %653 = vmatpush1.xpose.msra.mxu0 0.0
      %654 = vmatprep.subr.mxu0 0.0
      %655 = vmatpush1.xpose.msra.mxu0 0.0
      %656 = vmatprep.subr.mxu0 0.0
      %657 = vmatpush1.xpose.msra.mxu0 0.0
      %658 = vmatprep.subr.mxu0 0.0
      %659 = vmatpush1.xpose.msra.mxu0 0.0
      %660 = vmatprep.mubr.f32.mxu0 0.0
      %661 = vmatmul.mubr.f32.gmra.mrb[0].mxu0 %v562
      %v662 = vpop.f32.mrb[0].mxu0
      %v663 = vadd.f32 0.0, %v662
      %v664 = vpop.f32.mrb[0].mxu0
      %665 = vdwg.mxu0
      %666 = vmatprep.subr.mxu0 0.0
      %667 = vmatpush1.xpose.msra.mxu0 %v531
      %668 = vmatprep.subr.mxu0 0.0
      %669 = vmatpush1.xpose.msra.mxu0 0.0
      %670 = vmatprep.subr.mxu0 0.0
      %671 = vmatpush1.xpose.msra.mxu0 0.0
      %672 = vmatprep.subr.mxu0 0.0
      %673 = vmatpush1.xpose.msra.mxu0 0.0
      %674 = vmatprep.subr.mxu0 0.0
      %675 = vmatpush1.xpose.msra.mxu0 0.0
      %676 = vmatprep.subr.mxu0 0.0
      %677 = vmatpush1.xpose.msra.mxu0 0.0
      %678 = vmatprep.subr.mxu0 0.0
      %679 = vmatpush1.xpose.msra.mxu0 0.0
      %680 = vmatprep.subr.mxu0 0.0
      %681 = vmatpush1.xpose.msra.mxu0 0.0
      %682 = vmatprep.subr.mxu0 0.0
      %683 = vmatpush1.xpose.msra.mxu0 0.0
      %684 = vmatprep.subr.mxu0 0.0
      %685 = vmatpush1.xpose.msra.mxu0 0.0
      %686 = vmatprep.subr.mxu0 0.0
      %687 = vmatpush1.xpose.msra.mxu0 0.0
      %688 = vmatprep.subr.mxu0 0.0
      %689 = vmatpush1.xpose.msra.mxu0 0.0
      %690 = vmatprep.subr.mxu0 0.0
      %691 = vmatpush1.xpose.msra.mxu0 0.0
      %692 = vmatprep.subr.mxu0 0.0
      %693 = vmatpush1.xpose.msra.mxu0 0.0
      %694 = vmatprep.subr.mxu0 0.0
      %695 = vmatpush1.xpose.msra.mxu0 0.0
      %696 = vmatprep.subr.mxu0 0.0
      %697 = vmatpush1.xpose.msra.mxu0 0.0
      %698 = vmatprep.subr.mxu0 0.0
      %699 = vmatpush1.xpose.msra.mxu0 0.0
      %700 = vmatprep.subr.mxu0 0.0
      %701 = vmatpush1.xpose.msra.mxu0 0.0
      %702 = vmatprep.subr.mxu0 0.0
      %703 = vmatpush1.xpose.msra.mxu0 0.0
      %704 = vmatprep.subr.mxu0 0.0
      %705 = vmatpush1.xpose.msra.mxu0 0.0
      %706 = vmatprep.subr.mxu0 0.0
      %707 = vmatpush1.xpose.msra.mxu0 0.0
      %708 = vmatprep.subr.mxu0 0.0
      %709 = vmatpush1.xpose.msra.mxu0 0.0
      %710 = vmatprep.subr.mxu0 0.0
      %711 = vmatpush1.xpose.msra.mxu0 0.0
      %712 = vmatprep.subr.mxu0 0.0
      %713 = vmatpush1.xpose.msra.mxu0 0.0
      %714 = vmatprep.subr.mxu0 0.0
      %715 = vmatpush1.xpose.msra.mxu0 0.0
      %716 = vmatprep.subr.mxu0 0.0
      %717 = vmatpush1.xpose.msra.mxu0 0.0
      %718 = vmatprep.subr.mxu0 0.0
      %719 = vmatpush1.xpose.msra.mxu0 0.0
      %720 = vmatprep.subr.mxu0 0.0
      %721 = vmatpush1.xpose.msra.mxu0 0.0
      %722 = vmatprep.subr.mxu0 0.0
      %723 = vmatpush1.xpose.msra.mxu0 0.0
      %724 = vmatprep.subr.mxu0 0.0
      %725 = vmatpush1.xpose.msra.mxu0 0.0
      %726 = vmatprep.subr.mxu0 0.0
      %727 = vmatpush1.xpose.msra.mxu0 0.0
      %728 = vmatprep.subr.mxu0 0.0
      %729 = vmatpush1.xpose.msra.mxu0 0.0
      %730 = vmatprep.mubr.f32.mxu0 0.0
      %731 = vmatmul.mubr.f32.gmra.mrb[0].mxu0 %v576
      %v732 = vpop.f32.mrb[0].mxu0
      %v733 = vadd.f32 0.0, %v732
      %v734 = vpop.f32.mrb[0].mxu0
      %735 = vdwg.mxu0
      %736 = vmatprep.subr.mxu0 0.0
      %737 = vmatpush1.xpose.msra.mxu0 %v532
      %738 = vmatprep.subr.mxu0 0.0
      %739 = vmatpush1.xpose.msra.mxu0 0.0
      %740 = vmatprep.subr.mxu0 0.0
      %741 = vmatpush1.xpose.msra.mxu0 0.0
      %742 = vmatprep.subr.mxu0 0.0
      %743 = vmatpush1.xpose.msra.mxu0 0.0
      %744 = vmatprep.subr.mxu0 0.0
      %745 = vmatpush1.xpose.msra.mxu0 0.0
      %746 = vmatprep.subr.mxu0 0.0
      %747 = vmatpush1.xpose.msra.mxu0 0.0
      %748 = vmatprep.subr.mxu0 0.0
      %749 = vmatpush1.xpose.msra.mxu0 0.0
      %750 = vmatprep.subr.mxu0 0.0
      %751 = vmatpush1.xpose.msra.mxu0 0.0
      %752 = vmatprep.subr.mxu0 0.0
      %753 = vmatpush1.xpose.msra.mxu0 0.0
      %754 = vmatprep.subr.mxu0 0.0
      %755 = vmatpush1.xpose.msra.mxu0 0.0
      %756 = vmatprep.subr.mxu0 0.0
      %757 = vmatpush1.xpose.msra.mxu0 0.0
      %758 = vmatprep.subr.mxu0 0.0
      %759 = vmatpush1.xpose.msra.mxu0 0.0
      %760 = vmatprep.subr.mxu0 0.0
      %761 = vmatpush1.xpose.msra.mxu0 0.0
      %762 = vmatprep.subr.mxu0 0.0
      %763 = vmatpush1.xpose.msra.mxu0 0.0
      %764 = vmatprep.subr.mxu0 0.0
      %765 = vmatpush1.xpose.msra.mxu0 0.0
      %766 = vmatprep.subr.mxu0 0.0
      %767 = vmatpush1.xpose.msra.mxu0 0.0
      %768 = vmatprep.subr.mxu0 0.0
      %769 = vmatpush1.xpose.msra.mxu0 0.0
      %770 = vmatprep.subr.mxu0 0.0
      %771 = vmatpush1.xpose.msra.mxu0 0.0
      %772 = vmatprep.subr.mxu0 0.0
      %773 = vmatpush1.xpose.msra.mxu0 0.0
      %774 = vmatprep.subr.mxu0 0.0
      %775 = vmatpush1.xpose.msra.mxu0 0.0
      %776 = vmatprep.subr.mxu0 0.0
      %777 = vmatpush1.xpose.msra.mxu0 0.0
      %778 = vmatprep.subr.mxu0 0.0
      %779 = vmatpush1.xpose.msra.mxu0 0.0
      %780 = vmatprep.subr.mxu0 0.0
      %781 = vmatpush1.xpose.msra.mxu0 0.0
      %782 = vmatprep.subr.mxu0 0.0
      %783 = vmatpush1.xpose.msra.mxu0 0.0
      %784 = vmatprep.subr.mxu0 0.0
      %785 = vmatpush1.xpose.msra.mxu0 0.0
      %786 = vmatprep.subr.mxu0 0.0
      %787 = vmatpush1.xpose.msra.mxu0 0.0
      %788 = vmatprep.subr.mxu0 0.0
      %789 = vmatpush1.xpose.msra.mxu0 0.0
      %790 = vmatprep.subr.mxu0 0.0
      %791 = vmatpush1.xpose.msra.mxu0 0.0
      %792 = vmatprep.subr.mxu0 0.0
      %793 = vmatpush1.xpose.msra.mxu0 0.0
      %794 = vmatprep.subr.mxu0 0.0
      %795 = vmatpush1.xpose.msra.mxu0 0.0
      %796 = vmatprep.subr.mxu0 0.0
      %797 = vmatpush1.xpose.msra.mxu0 0.0
      %798 = vmatprep.subr.mxu0 0.0
      %799 = vmatpush1.xpose.msra.mxu0 0.0
      %800 = vmatprep.mubr.f32.mxu0 0.0
      %801 = vmatmul.mubr.f32.gmra.mrb[0].mxu0 %v584
      %v802 = vpop.f32.mrb[0].mxu0
      %v803 = vadd.f32 0.0, %v802
      %v804 = vpop.f32.mrb[0].mxu0
      %805 = vdwg.mxu0
      %806 = vmatprep.subr.mxu0 0.0
      %807 = vmatpush1.xpose.msra.mxu0 %v533
      %808 = vmatprep.subr.mxu0 0.0
      %809 = vmatpush1.xpose.msra.mxu0 0.0
      %810 = vmatprep.subr.mxu0 0.0
      %811 = vmatpush1.xpose.msra.mxu0 0.0
      %812 = vmatprep.subr.mxu0 0.0
      %813 = vmatpush1.xpose.msra.mxu0 0.0
      %814 = vmatprep.subr.mxu0 0.0
      %815 = vmatpush1.xpose.msra.mxu0 0.0
      %816 = vmatprep.subr.mxu0 0.0
      %817 = vmatpush1.xpose.msra.mxu0 0.0
      %818 = vmatprep.subr.mxu0 0.0
      %819 = vmatpush1.xpose.msra.mxu0 0.0
      %820 = vmatprep.subr.mxu0 0.0
      %821 = vmatpush1.xpose.msra.mxu0 0.0
      %822 = vmatprep.subr.mxu0 0.0
      %823 = vmatpush1.xpose.msra.mxu0 0.0
      %824 = vmatprep.subr.mxu0 0.0
      %825 = vmatpush1.xpose.msra.mxu0 0.0
      %826 = vmatprep.subr.mxu0 0.0
      %827 = vmatpush1.xpose.msra.mxu0 0.0
      %828 = vmatprep.subr.mxu0 0.0
      %829 = vmatpush1.xpose.msra.mxu0 0.0
      %830 = vmatprep.subr.mxu0 0.0
      %831 = vmatpush1.xpose.msra.mxu0 0.0
      %832 = vmatprep.subr.mxu0 0.0
      %833 = vmatpush1.xpose.msra.mxu0 0.0
      %834 = vmatprep.subr.mxu0 0.0
      %835 = vmatpush1.xpose.msra.mxu0 0.0
      %836 = vmatprep.subr.mxu0 0.0
      %837 = vmatpush1.xpose.msra.mxu0 0.0
      %838 = vmatprep.subr.mxu0 0.0
      %839 = vmatpush1.xpose.msra.mxu0 0.0
      %840 = vmatprep.subr.mxu0 0.0
      %841 = vmatpush1.xpose.msra.mxu0 0.0
      %842 = vmatprep.subr.mxu0 0.0
      %843 = vmatpush1.xpose.msra.mxu0 0.0
      %844 = vmatprep.subr.mxu0 0.0
      %845 = vmatpush1.xpose.msra.mxu0 0.0
      %846 = vmatprep.subr.mxu0 0.0
      %847 = vmatpush1.xpose.msra.mxu0 0.0
      %848 = vmatprep.subr.mxu0 0.0
      %849 = vmatpush1.xpose.msra.mxu0 0.0
      %850 = vmatprep.subr.mxu0 0.0
      %851 = vmatpush1.xpose.msra.mxu0 0.0
      %852 = vmatprep.subr.mxu0 0.0
      %853 = vmatpush1.xpose.msra.mxu0 0.0
      %854 = vmatprep.subr.mxu0 0.0
      %855 = vmatpush1.xpose.msra.mxu0 0.0
      %856 = vmatprep.subr.mxu0 0.0
      %857 = vmatpush1.xpose.msra.mxu0 0.0
      %858 = vmatprep.subr.mxu0 0.0
      %859 = vmatpush1.xpose.msra.mxu0 0.0
      %860 = vmatprep.subr.mxu0 0.0
      %861 = vmatpush1.xpose.msra.mxu0 0.0
      %862 = vmatprep.subr.mxu0 0.0
      %863 = vmatpush1.xpose.msra.mxu0 0.0
      %864 = vmatprep.subr.mxu0 0.0
      %865 = vmatpush1.xpose.msra.mxu0 0.0
      %866 = vmatprep.subr.mxu0 0.0
      %867 = vmatpush1.xpose.msra.mxu0 0.0
      %868 = vmatprep.subr.mxu0 0.0
      %869 = vmatpush1.xpose.msra.mxu0 0.0
      %870 = vmatprep.mubr.f32.mxu0 0.0
      %871 = vmatmul.mubr.f32.gmra.mrb[0].mxu0 %v586
      %v872 = vpop.f32.mrb[0].mxu0
      %v873 = vadd.f32 0.0, %v872
      %v874 = vpop.f32.mrb[0].mxu0
      %875 = vdwg.mxu0
      %876 = vmatprep.subr.mxu0 0.0
      %877 = vmatpush1.xpose.msra.mxu0 %v534
      %878 = vmatprep.subr.mxu0 0.0
      %879 = vmatpush1.xpose.msra.mxu0 0.0
      %880 = vmatprep.subr.mxu0 0.0
      %881 = vmatpush1.xpose.msra.mxu0 0.0
      %882 = vmatprep.subr.mxu0 0.0
      %883 = vmatpush1.xpose.msra.mxu0 0.0
      %884 = vmatprep.subr.mxu0 0.0
      %885 = vmatpush1.xpose.msra.mxu0 0.0
      %886 = vmatprep.subr.mxu0 0.0
      %887 = vmatpush1.xpose.msra.mxu0 0.0
      %888 = vmatprep.subr.mxu0 0.0
      %889 = vmatpush1.xpose.msra.mxu0 0.0
      %890 = vmatprep.subr.mxu0 0.0
      %891 = vmatpush1.xpose.msra.mxu0 0.0
      %892 = vmatprep.subr.mxu0 0.0
      %893 = vmatpush1.xpose.msra.mxu0 0.0
      %894 = vmatprep.subr.mxu0 0.0
      %895 = vmatpush1.xpose.msra.mxu0 0.0
      %896 = vmatprep.subr.mxu0 0.0
      %897 = vmatpush1.xpose.msra.mxu0 0.0
      %898 = vmatprep.subr.mxu0 0.0
      %899 = vmatpush1.xpose.msra.mxu0 0.0
      %900 = vmatprep.subr.mxu0 0.0
      %901 = vmatpush1.xpose.msra.mxu0 0.0
      %902 = vmatprep.subr.mxu0 0.0
      %903 = vmatpush1.xpose.msra.mxu0 0.0
      %904 = vmatprep.subr.mxu0 0.0
      %905 = vmatpush1.xpose.msra.mxu0 0.0
      %906 = vmatprep.subr.mxu0 0.0
      %907 = vmatpush1.xpose.msra.mxu0 0.0
      %908 = vmatprep.subr.mxu0 0.0
      %909 = vmatpush1.xpose.msra.mxu0 0.0
      %910 = vmatprep.subr.mxu0 0.0
      %911 = vmatpush1.xpose.msra.mxu0 0.0
      %912 = vmatprep.subr.mxu0 0.0
      %913 = vmatpush1.xpose.msra.mxu0 0.0
      %914 = vmatprep.subr.mxu0 0.0
      %915 = vmatpush1.xpose.msra.mxu0 0.0
      %916 = vmatprep.subr.mxu0 0.0
      %917 = vmatpush1.xpose.msra.mxu0 0.0
      %918 = vmatprep.subr.mxu0 0.0
      %919 = vmatpush1.xpose.msra.mxu0 0.0
      %920 = vmatprep.subr.mxu0 0.0
      %921 = vmatpush1.xpose.msra.mxu0 0.0
      %922 = vmatprep.subr.mxu0 0.0
      %923 = vmatpush1.xpose.msra.mxu0 0.0
      %924 = vmatprep.subr.mxu0 0.0
      %925 = vmatpush1.xpose.msra.mxu0 0.0
      %926 = vmatprep.subr.mxu0 0.0
      %927 = vmatpush1.xpose.msra.mxu0 0.0
      %928 = vmatprep.subr.mxu0 0.0
      %929 = vmatpush1.xpose.msra.mxu0 0.0
      %930 = vmatprep.subr.mxu0 0.0
      %931 = vmatpush1.xpose.msra.mxu0 0.0
      %932 = vmatprep.subr.mxu0 0.0
      %933 = vmatpush1.xpose.msra.mxu0 0.0
      %934 = vmatprep.subr.mxu0 0.0
      %935 = vmatpush1.xpose.msra.mxu0 0.0
      %936 = vmatprep.subr.mxu0 0.0
      %937 = vmatpush1.xpose.msra.mxu0 0.0
      %938 = vmatprep.subr.mxu0 0.0
      %939 = vmatpush1.xpose.msra.mxu0 0.0
      %940 = vmatprep.mubr.f32.mxu0 0.0
      %941 = vmatmul.mubr.f32.gmra.mrb[0].mxu0 %v569
      %v942 = vpop.f32.mrb[0].mxu0
      %v943 = vadd.f32 0.0, %v942
      %v944 = vpop.f32.mrb[0].mxu0
      %945 = vdwg.mxu0
      %946 = vmatprep.subr.mxu0 0.0
      %947 = vmatpush1.xpose.msra.mxu0 %v535
      %948 = vmatprep.subr.mxu0 0.0
      %949 = vmatpush1.xpose.msra.mxu0 0.0
      %950 = vmatprep.subr.mxu0 0.0
      %951 = vmatpush1.xpose.msra.mxu0 0.0
      %952 = vmatprep.subr.mxu0 0.0
      %953 = vmatpush1.xpose.msra.mxu0 0.0
      %954 = vmatprep.subr.mxu0 0.0
      %955 = vmatpush1.xpose.msra.mxu0 0.0
      %956 = vmatprep.subr.mxu0 0.0
      %957 = vmatpush1.xpose.msra.mxu0 0.0
      %958 = vmatprep.subr.mxu0 0.0
      %959 = vmatpush1.xpose.msra.mxu0 0.0
      %960 = vmatprep.subr.mxu0 0.0
      %961 = vmatpush1.xpose.msra.mxu0 0.0
      %962 = vmatprep.subr.mxu0 0.0
      %963 = vmatpush1.xpose.msra.mxu0 0.0
      %964 = vmatprep.subr.mxu0 0.0
      %965 = vmatpush1.xpose.msra.mxu0 0.0
      %966 = vmatprep.subr.mxu0 0.0
      %967 = vmatpush1.xpose.msra.mxu0 0.0
      %968 = vmatprep.subr.mxu0 0.0
      %969 = vmatpush1.xpose.msra.mxu0 0.0
      %970 = vmatprep.subr.mxu0 0.0
      %971 = vmatpush1.xpose.msra.mxu0 0.0
      %972 = vmatprep.subr.mxu0 0.0
      %973 = vmatpush1.xpose.msra.mxu0 0.0
      %974 = vmatprep.subr.mxu0 0.0
      %975 = vmatpush1.xpose.msra.mxu0 0.0
      %976 = vmatprep.subr.mxu0 0.0
      %977 = vmatpush1.xpose.msra.mxu0 0.0
      %978 = vmatprep.subr.mxu0 0.0
      %979 = vmatpush1.xpose.msra.mxu0 0.0
      %980 = vmatprep.subr.mxu0 0.0
      %981 = vmatpush1.xpose.msra.mxu0 0.0
      %982 = vmatprep.subr.mxu0 0.0
      %983 = vmatpush1.xpose.msra.mxu0 0.0
      %984 = vmatprep.subr.mxu0 0.0
      %985 = vmatpush1.xpose.msra.mxu0 0.0
      %986 = vmatprep.subr.mxu0 0.0
      %987 = vmatpush1.xpose.msra.mxu0 0.0
      %988 = vmatprep.subr.mxu0 0.0
      %989 = vmatpush1.xpose.msra.mxu0 0.0
      %990 = vmatprep.subr.mxu0 0.0
      %991 = vmatpush1.xpose.msra.mxu0 0.0
      %992 = vmatprep.subr.mxu0 0.0
      %993 = vmatpush1.xpose.msra.mxu0 0.0
      %994 = vmatprep.subr.mxu0 0.0
      %995 = vmatpush1.xpose.msra.mxu0 0.0
      %996 = vmatprep.subr.mxu0 0.0
      %997 = vmatpush1.xpose.msra.mxu0 0.0
      %998 = vmatprep.subr.mxu0 0.0
      %999 = vmatpush1.xpose.msra.mxu0 0.0
      %1000 = vmatprep.subr.mxu0 0.0
      %1001 = vmatpush1.xpose.msra.mxu0 0.0
      %1002 = vmatprep.subr.mxu0 0.0
      %1003 = vmatpush1.xpose.msra.mxu0 0.0
      %1004 = vmatprep.subr.mxu0 0.0
      %1005 = vmatpush1.xpose.msra.mxu0 0.0
      %1006 = vmatprep.subr.mxu0 0.0
      %1007 = vmatpush1.xpose.msra.mxu0 0.0
      %1008 = vmatprep.subr.mxu0 0.0
      %1009 = vmatpush1.xpose.msra.mxu0 0.0
      %1010 = vmatprep.mubr.f32.mxu0 0.0
      %1011 = vmatmul.mubr.f32.gmra.mrb[0].mxu0 %v583
      %v1012 = vpop.f32.mrb[0].mxu0
      %v1013 = vadd.f32 0.0, %v1012
      %v1014 = vpop.f32.mrb[0].mxu0
      %1015 = vdwg.mxu0
      %1016 = vmatprep.subr.mxu0 0.0
      %1017 = vmatpush1.xpose.msra.mxu0 %v536
      %1018 = vmatprep.subr.mxu0 0.0
      %1019 = vmatpush1.xpose.msra.mxu0 0.0
      %1020 = vmatprep.subr.mxu0 0.0
      %1021 = vmatpush1.xpose.msra.mxu0 0.0
      %1022 = vmatprep.subr.mxu0 0.0
      %1023 = vmatpush1.xpose.msra.mxu0 0.0
      %1024 = vmatprep.subr.mxu0 0.0
      %1025 = vmatpush1.xpose.msra.mxu0 0.0
      %1026 = vmatprep.subr.mxu0 0.0
      %1027 = vmatpush1.xpose.msra.mxu0 0.0
      %1028 = vmatprep.subr.mxu0 0.0
      %1029 = vmatpush1.xpose.msra.mxu0 0.0
      %1030 = vmatprep.subr.mxu0 0.0
      %1031 = vmatpush1.xpose.msra.mxu0 0.0
      %1032 = vmatprep.subr.mxu0 0.0
      %1033 = vmatpush1.xpose.msra.mxu0 0.0
      %1034 = vmatprep.subr.mxu0 0.0
      %1035 = vmatpush1.xpose.msra.mxu0 0.0
      %1036 = vmatprep.subr.mxu0 0.0
      %1037 = vmatpush1.xpose.msra.mxu0 0.0
      %1038 = vmatprep.subr.mxu0 0.0
      %1039 = vmatpush1.xpose.msra.mxu0 0.0
      %1040 = vmatprep.subr.mxu0 0.0
      %1041 = vmatpush1.xpose.msra.mxu0 0.0
      %1042 = vmatprep.subr.mxu0 0.0
      %1043 = vmatpush1.xpose.msra.mxu0 0.0
      %1044 = vmatprep.subr.mxu0 0.0
      %1045 = vmatpush1.xpose.msra.mxu0 0.0
      %1046 = vmatprep.subr.mxu0 0.0
      %1047 = vmatpush1.xpose.msra.mxu0 0.0
      %1048 = vmatprep.subr.mxu0 0.0
      %1049 = vmatpush1.xpose.msra.mxu0 0.0
      %1050 = vmatprep.subr.mxu0 0.0
      %1051 = vmatpush1.xpose.msra.mxu0 0.0
      %1052 = vmatprep.subr.mxu0 0.0
      %1053 = vmatpush1.xpose.msra.mxu0 0.0
      %1054 = vmatprep.subr.mxu0 0.0
      %1055 = vmatpush1.xpose.msra.mxu0 0.0
      %1056 = vmatprep.subr.mxu0 0.0
      %1057 = vmatpush1.xpose.msra.mxu0 0.0
      %1058 = vmatprep.subr.mxu0 0.0
      %1059 = vmatpush1.xpose.msra.mxu0 0.0
      %1060 = vmatprep.subr.mxu0 0.0
      %1061 = vmatpush1.xpose.msra.mxu0 0.0
      %1062 = vmatprep.subr.mxu0 0.0
      %1063 = vmatpush1.xpose.msra.mxu0 0.0
      %1064 = vmatprep.subr.mxu0 0.0
      %1065 = vmatpush1.xpose.msra.mxu0 0.0
      %1066 = vmatprep.subr.mxu0 0.0
      %1067 = vmatpush1.xpose.msra.mxu0 0.0
      %1068 = vmatprep.subr.mxu0 0.0
      %1069 = vmatpush1.xpose.msra.mxu0 0.0
      %1070 = vmatprep.subr.mxu0 0.0
      %1071 = vmatpush1.xpose.msra.mxu0 0.0
      %1072 = vmatprep.subr.mxu0 0.0
      %1073 = vmatpush1.xpose.msra.mxu0 0.0
      %1074 = vmatprep.subr.mxu0 0.0
      %1075 = vmatpush1.xpose.msra.mxu0 0.0
      %1076 = vmatprep.subr.mxu0 0.0
      %1077 = vmatpush1.xpose.msra.mxu0 0.0
      %1078 = vmatprep.subr.mxu0 0.0
      %1079 = vmatpush1.xpose.msra.mxu0 0.0
      %1080 = vmatprep.mubr.f32.mxu0 0.0
      %1081 = vmatmul.mubr.f32.gmra.mrb[0].mxu0 %v585
      %v1082 = vpop.f32.mrb[0].mxu0
      %v1083 = vadd.f32 0.0, %v1082
      %v1084 = vpop.f32.mrb[0].mxu0
      %1085 = vdwg.mxu0
      %1086 = vmatprep.subr.mxu0 0.0
      %1087 = vmatpush1.xpose.msra.mxu0 %v537
      %1088 = vmatprep.subr.mxu0 0.0
      %1089 = vmatpush1.xpose.msra.mxu0 0.0
      %1090 = vmatprep.subr.mxu0 0.0
      %1091 = vmatpush1.xpose.msra.mxu0 0.0
      %1092 = vmatprep.subr.mxu0 0.0
      %1093 = vmatpush1.xpose.msra.mxu0 0.0
      %1094 = vmatprep.subr.mxu0 0.0
      %1095 = vmatpush1.xpose.msra.mxu0 0.0
      %1096 = vmatprep.subr.mxu0 0.0
      %1097 = vmatpush1.xpose.msra.mxu0 0.0
      %1098 = vmatprep.subr.mxu0 0.0
      %1099 = vmatpush1.xpose.msra.mxu0 0.0
      %1100 = vmatprep.subr.mxu0 0.0
      %1101 = vmatpush1.xpose.msra.mxu0 0.0
      %1102 = vmatprep.subr.mxu0 0.0
      %1103 = vmatpush1.xpose.msra.mxu0 0.0
      %1104 = vmatprep.subr.mxu0 0.0
      %1105 = vmatpush1.xpose.msra.mxu0 0.0
      %1106 = vmatprep.subr.mxu0 0.0
      %1107 = vmatpush1.xpose.msra.mxu0 0.0
      %1108 = vmatprep.subr.mxu0 0.0
      %1109 = vmatpush1.xpose.msra.mxu0 0.0
      %1110 = vmatprep.subr.mxu0 0.0
      %1111 = vmatpush1.xpose.msra.mxu0 0.0
      %1112 = vmatprep.subr.mxu0 0.0
      %1113 = vmatpush1.xpose.msra.mxu0 0.0
      %1114 = vmatprep.subr.mxu0 0.0
      %1115 = vmatpush1.xpose.msra.mxu0 0.0
      %1116 = vmatprep.subr.mxu0 0.0
      %1117 = vmatpush1.xpose.msra.mxu0 0.0
      %1118 = vmatprep.subr.mxu0 0.0
      %1119 = vmatpush1.xpose.msra.mxu0 0.0
      %1120 = vmatprep.subr.mxu0 0.0
      %1121 = vmatpush1.xpose.msra.mxu0 0.0
      %1122 = vmatprep.subr.mxu0 0.0
      %1123 = vmatpush1.xpose.msra.mxu0 0.0
      %1124 = vmatprep.subr.mxu0 0.0
      %1125 = vmatpush1.xpose.msra.mxu0 0.0
      %1126 = vmatprep.subr.mxu0 0.0
      %1127 = vmatpush1.xpose.msra.mxu0 0.0
      %1128 = vmatprep.subr.mxu0 0.0
      %1129 = vmatpush1.xpose.msra.mxu0 0.0
      %1130 = vmatprep.subr.mxu0 0.0
      %1131 = vmatpush1.xpose.msra.mxu0 0.0
      %1132 = vmatprep.subr.mxu0 0.0
      %1133 = vmatpush1.xpose.msra.mxu0 0.0
      %1134 = vmatprep.subr.mxu0 0.0
      %1135 = vmatpush1.xpose.msra.mxu0 0.0
      %1136 = vmatprep.subr.mxu0 0.0
      %1137 = vmatpush1.xpose.msra.mxu0 0.0
      %1138 = vmatprep.subr.mxu0 0.0
      %1139 = vmatpush1.xpose.msra.mxu0 0.0
      %1140 = vmatprep.subr.mxu0 0.0
      %1141 = vmatpush1.xpose.msra.mxu0 0.0
      %1142 = vmatprep.subr.mxu0 0.0
      %1143 = vmatpush1.xpose.msra.mxu0 0.0
      %1144 = vmatprep.subr.mxu0 0.0
      %1145 = vmatpush1.xpose.msra.mxu0 0.0
      %1146 = vmatprep.subr.mxu0 0.0
      %1147 = vmatpush1.xpose.msra.mxu0 0.0
      %1148 = vmatprep.subr.mxu0 0.0
      %1149 = vmatpush1.xpose.msra.mxu0 0.0
      %1150 = vmatprep.mubr.f32.mxu0 0.0
      %1151 = vmatmul.mubr.f32.gmra.mrb[0].mxu0 %v587
      %v1152 = vpop.f32.mrb[0].mxu0
      %v1153 = vadd.f32 0.0, %v1152
      %v1154 = vpop.f32.mrb[0].mxu0
      %1155 = vdwg.mxu0
      %v1156 = vld [vmem:[%s1] sm:$0xff]
      %v1158 = vcombine.high %v1156, %v1156
      %v1160 = vunpack.c.l.s4 1966171168
      %v1161 = vunpack.c.0.s8 %v1160
      %v1162 = vlaneseq
      %v1163 = vshrl.u32 %v1162, 7
      %v1164 = vsub.s32 %v1161, %v1163
      %v1165 = vrot.slane %v1156, %v1164
      %v1167 = vunpack.c.l.s4 1966171168
      %v1168 = vunpack.c.0.s8 %v1167
      %v1169 = vlaneseq
      %v1170 = vshrl.u32 %v1169, 7
      %v1171 = vsub.s32 %v1168, %v1170
      %v1172 = vrot.slane %v1158, %v1171
      %v1173 = vcombine.high %v1165, %v1165
      %v1174 = vcombine.high %v1172, %v1172
      %v1176 = vunpack.c.l.s4 1966171168
      %v1177 = vunpack.c.0.s8 %v1176
      %v1178 = vlaneseq
      %v1179 = vshrl.u32 %v1178, 7
      %v1180 = vsub.s32 %v1177, %v1179
      %v1181 = vrot.slane %v1165, %v1180
      %v1183 = vunpack.c.l.s4 1966171168
      %v1184 = vunpack.c.0.s8 %v1183
      %v1185 = vlaneseq
      %v1186 = vshrl.u32 %v1185, 7
      %v1187 = vsub.s32 %v1184, %v1186
      %v1188 = vrot.slane %v1172, %v1187
      %v1190 = vunpack.c.l.s4 1966171168
      %v1191 = vunpack.c.0.s8 %v1190
      %v1192 = vlaneseq
      %v1193 = vshrl.u32 %v1192, 7
      %v1194 = vsub.s32 %v1191, %v1193
      %v1195 = vrot.slane %v1173, %v1194
      %v1197 = vunpack.c.l.s4 1966171168
      %v1198 = vunpack.c.0.s8 %v1197
      %v1199 = vlaneseq
      %v1200 = vshrl.u32 %v1199, 7
      %v1201 = vsub.s32 %v1198, %v1200
      %v1202 = vrot.slane %v1174, %v1201
      %v1203 = vcombine.high %v1181, %v1181
      %v1204 = vcombine.high %v1188, %v1188
      %v1205 = vcombine.high %v1195, %v1195
      %v1206 = vcombine.high %v1202, %v1202
      %vm1215 = vcmp.gt.f32.partialorder %v1181, 0.5
      %vm1216 = vcmp.gt.f32.partialorder %v1195, 0.5
      %vm1217 = vcmp.gt.f32.partialorder %v1203, 0.5
      %vm1218 = vcmp.gt.f32.partialorder %v1205, 0.5
      %vm1219 = vcmp.gt.f32.partialorder %v1188, 0.5
      %vm1220 = vcmp.gt.f32.partialorder %v1202, 0.5
      %vm1221 = vcmp.gt.f32.partialorder %v1204, 0.5
      %vm1222 = vcmp.gt.f32.partialorder %v1206, 0.5
      %v1223 = vsel %vm1215, %v663, -1e+30
      %v1224 = vsel %vm1216, %v733, -1e+30
      %v1225 = vsel %vm1217, %v803, -1e+30
      %v1226 = vsel %vm1218, %v873, -1e+30
      %v1227 = vsel %vm1219, %v943, -1e+30
      %v1228 = vsel %vm1220, %v1013, -1e+30
      %v1229 = vsel %vm1221, %v1083, -1e+30
      %v1230 = vsel %vm1222, %v1153, -1e+30
      %vm1231 = vcmask 57344
      %v1232 = vsel %vm1231, %v1223, -inf
      %1233 = vmax.xlane.f32.xlu0 %v1232
      %v1234 = vpop.xlane.xlu0 %1233
      %v1235 = vsel %vm1231, %v1224, -inf
      %1236 = vmax.xlane.f32.xlu0 %v1235
      %v1237 = vpop.xlane.xlu0 %1236
      %v1238 = vsel %vm1231, %v1225, -inf
      %1239 = vmax.xlane.f32.xlu0 %v1238
      %v1240 = vpop.xlane.xlu0 %1239
      %v1241 = vsel %vm1231, %v1226, -inf
      %1242 = vmax.xlane.f32.xlu0 %v1241
      %v1243 = vpop.xlane.xlu0 %1242
      %v1244 = vsel %vm1231, %v1227, -inf
      %1245 = vmax.xlane.f32.xlu0 %v1244
      %v1246 = vpop.xlane.xlu0 %1245
      %v1247 = vsel %vm1231, %v1228, -inf
      %1248 = vmax.xlane.f32.xlu0 %v1247
      %v1249 = vpop.xlane.xlu0 %1248
      %v1250 = vsel %vm1231, %v1229, -inf
      %1251 = vmax.xlane.f32.xlu0 %v1250
      %v1252 = vpop.xlane.xlu0 %1251
      %v1253 = vsel %vm1231, %v1230, -inf
      %1254 = vmax.xlane.f32.xlu0 %v1253
      %v1255 = vpop.xlane.xlu0 %1254
      %v1256 = vsub.f32 %v1223, %v1234
      %v1257 = vsub.f32 %v1224, %v1237
      %v1258 = vsub.f32 %v1225, %v1240
      %v1259 = vsub.f32 %v1226, %v1243
      %v1260 = vsub.f32 %v1227, %v1246
      %v1261 = vsub.f32 %v1228, %v1249
      %v1262 = vsub.f32 %v1229, %v1252
      %v1263 = vsub.f32 %v1230, %v1255
      %v1264 = vmul.f32 %v1256, 1.442695
      %v1265 = vpow.pop %v1264
      %v1266 = vmul.f32 %v1257, 1.442695
      %v1267 = vpow.pop %v1266
      %v1268 = vmul.f32 %v1258, 1.442695
      %v1269 = vpow.pop %v1268
      %v1270 = vmul.f32 %v1259, 1.442695
      %v1271 = vpow.pop %v1270
      %v1272 = vmul.f32 %v1260, 1.442695
      %v1273 = vpow.pop %v1272
      %v1274 = vmul.f32 %v1261, 1.442695
      %v1275 = vpow.pop %v1274
      %v1276 = vmul.f32 %v1262, 1.442695
      %v1277 = vpow.pop %v1276
      %v1278 = vmul.f32 %v1263, 1.442695
      %v1279 = vpow.pop %v1278
      %v1280 = vsel %vm1231, %v1265, 0.0
      %1281 = vadd.xlane.f32.xlu0 %v1280
      %v1282 = vpop.xlane.xlu0 %1281
      %v1283 = vsel %vm1231, %v1267, 0.0
      %1284 = vadd.xlane.f32.xlu0 %v1283
      %v1285 = vpop.xlane.xlu0 %1284
      %v1286 = vsel %vm1231, %v1269, 0.0
      %1287 = vadd.xlane.f32.xlu0 %v1286
      %v1288 = vpop.xlane.xlu0 %1287
      %v1289 = vsel %vm1231, %v1271, 0.0
      %1290 = vadd.xlane.f32.xlu0 %v1289
      %v1291 = vpop.xlane.xlu0 %1290
      %v1292 = vsel %vm1231, %v1273, 0.0
      %1293 = vadd.xlane.f32.xlu0 %v1292
      %v1294 = vpop.xlane.xlu0 %1293
      %v1295 = vsel %vm1231, %v1275, 0.0
      %1296 = vadd.xlane.f32.xlu0 %v1295
      %v1297 = vpop.xlane.xlu0 %1296
      %v1298 = vsel %vm1231, %v1277, 0.0
      %1299 = vadd.xlane.f32.xlu0 %v1298
      %v1300 = vpop.xlane.xlu0 %1299
      %v1301 = vsel %vm1231, %v1279, 0.0
      %1302 = vadd.xlane.f32.xlu0 %v1301
      %v1303 = vpop.xlane.xlu0 %1302
      %v1304 = vrcp.pop %v1282
      %v1305 = vmul.f32 %v1265, %v1304
      %v1306 = vrcp.pop %v1285
      %v1307 = vmul.f32 %v1267, %v1306
      %v1308 = vrcp.pop %v1288
      %v1309 = vmul.f32 %v1269, %v1308
      %v1310 = vrcp.pop %v1291
      %v1311 = vmul.f32 %v1271, %v1310
      %v1312 = vrcp.pop %v1294
      %v1313 = vmul.f32 %v1273, %v1312
      %v1314 = vrcp.pop %v1297
      %v1315 = vmul.f32 %v1275, %v1314
      %v1316 = vrcp.pop %v1300
      %v1317 = vmul.f32 %v1277, %v1316
      %v1318 = vrcp.pop %v1303
      %v1319 = vmul.f32 %v1279, %v1318
      %vm1320 = vcmask 64512
      %v1322 = vsel %vm1320, %v1305, 0
      %1324 = vmatprep.subr.mxu0 0.0
      %1325 = vmatpush1.msra.mxu0 %v530
      %1326 = vmatprep.subr.mxu0 0.0
      %1327 = vmatpush1.msra.mxu0 0.0
      %1328 = vmatprep.subr.mxu0 0.0
      %1329 = vmatpush1.msra.mxu0 0.0
      %1330 = vmatprep.subr.mxu0 0.0
      %1331 = vmatpush1.msra.mxu0 0.0
      %1332 = vmatprep.subr.mxu0 0.0
      %1333 = vmatpush1.msra.mxu0 0.0
      %1334 = vmatprep.subr.mxu0 0.0
      %1335 = vmatpush1.msra.mxu0 0.0
      %1336 = vmatprep.subr.mxu0 0.0
      %1337 = vmatpush1.msra.mxu0 0.0
      %1338 = vmatprep.subr.mxu0 0.0
      %1339 = vmatpush1.msra.mxu0 0.0
      %1340 = vmatprep.subr.mxu0 0.0
      %1341 = vmatpush1.msra.mxu0 0.0
      %1342 = vmatprep.subr.mxu0 0.0
      %1343 = vmatpush1.msra.mxu0 0.0
      %1344 = vmatprep.subr.mxu0 0.0
      %1345 = vmatpush1.msra.mxu0 0.0
      %1346 = vmatprep.subr.mxu0 0.0
      %1347 = vmatpush1.msra.mxu0 0.0
      %1348 = vmatprep.subr.mxu0 0.0
      %1349 = vmatpush1.msra.mxu0 0.0
      %1350 = vmatprep.subr.mxu0 0.0
      %1351 = vmatpush1.msra.mxu0 0.0
      %1352 = vmatprep.subr.mxu0 0.0
      %1353 = vmatpush1.msra.mxu0 0.0
      %1354 = vmatprep.subr.mxu0 0.0
      %1355 = vmatpush1.msra.mxu0 0.0
      %1356 = vmatprep.subr.mxu0 0.0
      %1357 = vmatpush1.msra.mxu0 0.0
      %1358 = vmatprep.subr.mxu0 0.0
      %1359 = vmatpush1.msra.mxu0 0.0
      %1360 = vmatprep.subr.mxu0 0.0
      %1361 = vmatpush1.msra.mxu0 0.0
      %1362 = vmatprep.subr.mxu0 0.0
      %1363 = vmatpush1.msra.mxu0 0.0
      %1364 = vmatprep.subr.mxu0 0.0
      %1365 = vmatpush1.msra.mxu0 0.0
      %1366 = vmatprep.subr.mxu0 0.0
      %1367 = vmatpush1.msra.mxu0 0.0
      %1368 = vmatprep.subr.mxu0 0.0
      %1369 = vmatpush1.msra.mxu0 0.0
      %1370 = vmatprep.subr.mxu0 0.0
      %1371 = vmatpush1.msra.mxu0 0.0
      %1372 = vmatprep.subr.mxu0 0.0
      %1373 = vmatpush1.msra.mxu0 0.0
      %1374 = vmatprep.subr.mxu0 0.0
      %1375 = vmatpush1.msra.mxu0 0.0
      %1376 = vmatprep.subr.mxu0 0.0
      %1377 = vmatpush1.msra.mxu0 0.0
      %1378 = vmatprep.subr.mxu0 0.0
      %1379 = vmatpush1.msra.mxu0 0.0
      %1380 = vmatprep.subr.mxu0 0.0
      %1381 = vmatpush1.msra.mxu0 0.0
      %1382 = vmatprep.subr.mxu0 0.0
      %1383 = vmatpush1.msra.mxu0 0.0
      %1384 = vmatprep.subr.mxu0 0.0
      %1385 = vmatpush1.msra.mxu0 0.0
      %1386 = vmatprep.subr.mxu0 0.0
      %1387 = vmatpush1.msra.mxu0 0.0
      %1388 = vmatprep.mubr.f32.mxu0 0.0
      %1389 = vmatmul.mubr.f32.gmra.mrb[0].mxu0 %v1322
      %v1390 = vpop.f32.mrb[0].mxu0
      %v1391 = vadd.f32 0.0, %v1390
      %v1392 = vpop.f32.mrb[0].mxu0
      %1393 = vdwg.mxu0
      %v1395 = vsel %vm1320, %v1307, 0
      %1397 = vmatprep.subr.mxu0 0.0
      %1398 = vmatpush1.msra.mxu0 %v531
      %1399 = vmatprep.subr.mxu0 0.0
      %1400 = vmatpush1.msra.mxu0 0.0
      %1401 = vmatprep.subr.mxu0 0.0
      %1402 = vmatpush1.msra.mxu0 0.0
      %1403 = vmatprep.subr.mxu0 0.0
      %1404 = vmatpush1.msra.mxu0 0.0
      %1405 = vmatprep.subr.mxu0 0.0
      %1406 = vmatpush1.msra.mxu0 0.0
      %1407 = vmatprep.subr.mxu0 0.0
      %1408 = vmatpush1.msra.mxu0 0.0
      %1409 = vmatprep.subr.mxu0 0.0
      %1410 = vmatpush1.msra.mxu0 0.0
      %1411 = vmatprep.subr.mxu0 0.0
      %1412 = vmatpush1.msra.mxu0 0.0
      %1413 = vmatprep.subr.mxu0 0.0
      %1414 = vmatpush1.msra.mxu0 0.0
      %1415 = vmatprep.subr.mxu0 0.0
      %1416 = vmatpush1.msra.mxu0 0.0
      %1417 = vmatprep.subr.mxu0 0.0
      %1418 = vmatpush1.msra.mxu0 0.0
      %1419 = vmatprep.subr.mxu0 0.0
      %1420 = vmatpush1.msra.mxu0 0.0
      %1421 = vmatprep.subr.mxu0 0.0
      %1422 = vmatpush1.msra.mxu0 0.0
      %1423 = vmatprep.subr.mxu0 0.0
      %1424 = vmatpush1.msra.mxu0 0.0
      %1425 = vmatprep.subr.mxu0 0.0
      %1426 = vmatpush1.msra.mxu0 0.0
      %1427 = vmatprep.subr.mxu0 0.0
      %1428 = vmatpush1.msra.mxu0 0.0
      %1429 = vmatprep.subr.mxu0 0.0
      %1430 = vmatpush1.msra.mxu0 0.0
      %1431 = vmatprep.subr.mxu0 0.0
      %1432 = vmatpush1.msra.mxu0 0.0
      %1433 = vmatprep.subr.mxu0 0.0
      %1434 = vmatpush1.msra.mxu0 0.0
      %1435 = vmatprep.subr.mxu0 0.0
      %1436 = vmatpush1.msra.mxu0 0.0
      %1437 = vmatprep.subr.mxu0 0.0
      %1438 = vmatpush1.msra.mxu0 0.0
      %1439 = vmatprep.subr.mxu0 0.0
      %1440 = vmatpush1.msra.mxu0 0.0
      %1441 = vmatprep.subr.mxu0 0.0
      %1442 = vmatpush1.msra.mxu0 0.0
      %1443 = vmatprep.subr.mxu0 0.0
      %1444 = vmatpush1.msra.mxu0 0.0
      %1445 = vmatprep.subr.mxu0 0.0
      %1446 = vmatpush1.msra.mxu0 0.0
      %1447 = vmatprep.subr.mxu0 0.0
      %1448 = vmatpush1.msra.mxu0 0.0
      %1449 = vmatprep.subr.mxu0 0.0
      %1450 = vmatpush1.msra.mxu0 0.0
      %1451 = vmatprep.subr.mxu0 0.0
      %1452 = vmatpush1.msra.mxu0 0.0
      %1453 = vmatprep.subr.mxu0 0.0
      %1454 = vmatpush1.msra.mxu0 0.0
      %1455 = vmatprep.subr.mxu0 0.0
      %1456 = vmatpush1.msra.mxu0 0.0
      %1457 = vmatprep.subr.mxu0 0.0
      %1458 = vmatpush1.msra.mxu0 0.0
      %1459 = vmatprep.subr.mxu0 0.0
      %1460 = vmatpush1.msra.mxu0 0.0
      %1461 = vmatprep.mubr.f32.mxu0 0.0
      %1462 = vmatmul.mubr.f32.gmra.mrb[0].mxu0 %v1395
      %v1463 = vpop.f32.mrb[0].mxu0
      %v1464 = vadd.f32 0.0, %v1463
      %v1465 = vpop.f32.mrb[0].mxu0
      %1466 = vdwg.mxu0
      %v1468 = vsel %vm1320, %v1309, 0
      %1470 = vmatprep.subr.mxu0 0.0
      %1471 = vmatpush1.msra.mxu0 %v532
      %1472 = vmatprep.subr.mxu0 0.0
      %1473 = vmatpush1.msra.mxu0 0.0
      %1474 = vmatprep.subr.mxu0 0.0
      %1475 = vmatpush1.msra.mxu0 0.0
      %1476 = vmatprep.subr.mxu0 0.0
      %1477 = vmatpush1.msra.mxu0 0.0
      %1478 = vmatprep.subr.mxu0 0.0
      %1479 = vmatpush1.msra.mxu0 0.0
      %1480 = vmatprep.subr.mxu0 0.0
      %1481 = vmatpush1.msra.mxu0 0.0
      %1482 = vmatprep.subr.mxu0 0.0
      %1483 = vmatpush1.msra.mxu0 0.0
      %1484 = vmatprep.subr.mxu0 0.0
      %1485 = vmatpush1.msra.mxu0 0.0
      %1486 = vmatprep.subr.mxu0 0.0
      %1487 = vmatpush1.msra.mxu0 0.0
      %1488 = vmatprep.subr.mxu0 0.0
      %1489 = vmatpush1.msra.mxu0 0.0
      %1490 = vmatprep.subr.mxu0 0.0
      %1491 = vmatpush1.msra.mxu0 0.0
      %1492 = vmatprep.subr.mxu0 0.0
      %1493 = vmatpush1.msra.mxu0 0.0
      %1494 = vmatprep.subr.mxu0 0.0
      %1495 = vmatpush1.msra.mxu0 0.0
      %1496 = vmatprep.subr.mxu0 0.0
      %1497 = vmatpush1.msra.mxu0 0.0
      %1498 = vmatprep.subr.mxu0 0.0
      %1499 = vmatpush1.msra.mxu0 0.0
      %1500 = vmatprep.subr.mxu0 0.0
      %1501 = vmatpush1.msra.mxu0 0.0
      %1502 = vmatprep.subr.mxu0 0.0
      %1503 = vmatpush1.msra.mxu0 0.0
      %1504 = vmatprep.subr.mxu0 0.0
      %1505 = vmatpush1.msra.mxu0 0.0
      %1506 = vmatprep.subr.mxu0 0.0
      %1507 = vmatpush1.msra.mxu0 0.0
      %1508 = vmatprep.subr.mxu0 0.0
      %1509 = vmatpush1.msra.mxu0 0.0
      %1510 = vmatprep.subr.mxu0 0.0
      %1511 = vmatpush1.msra.mxu0 0.0
      %1512 = vmatprep.subr.mxu0 0.0
      %1513 = vmatpush1.msra.mxu0 0.0
      %1514 = vmatprep.subr.mxu0 0.0
      %1515 = vmatpush1.msra.mxu0 0.0
      %1516 = vmatprep.subr.mxu0 0.0
      %1517 = vmatpush1.msra.mxu0 0.0
      %1518 = vmatprep.subr.mxu0 0.0
      %1519 = vmatpush1.msra.mxu0 0.0
      %1520 = vmatprep.subr.mxu0 0.0
      %1521 = vmatpush1.msra.mxu0 0.0
      %1522 = vmatprep.subr.mxu0 0.0
      %1523 = vmatpush1.msra.mxu0 0.0
      %1524 = vmatprep.subr.mxu0 0.0
      %1525 = vmatpush1.msra.mxu0 0.0
      %1526 = vmatprep.subr.mxu0 0.0
      %1527 = vmatpush1.msra.mxu0 0.0
      %1528 = vmatprep.subr.mxu0 0.0
      %1529 = vmatpush1.msra.mxu0 0.0
      %1530 = vmatprep.subr.mxu0 0.0
      %1531 = vmatpush1.msra.mxu0 0.0
      %1532 = vmatprep.subr.mxu0 0.0
      %1533 = vmatpush1.msra.mxu0 0.0
      %1534 = vmatprep.mubr.f32.mxu0 0.0
      %1535 = vmatmul.mubr.f32.gmra.mrb[0].mxu0 %v1468
      %v1536 = vpop.f32.mrb[0].mxu0
      %v1537 = vadd.f32 0.0, %v1536
      %v1538 = vpop.f32.mrb[0].mxu0
      %1539 = vdwg.mxu0
      %v1541 = vsel %vm1320, %v1311, 0
      %1543 = vmatprep.subr.mxu0 0.0
      %1544 = vmatpush1.msra.mxu0 %v533
      %1545 = vmatprep.subr.mxu0 0.0
      %1546 = vmatpush1.msra.mxu0 0.0
      %1547 = vmatprep.subr.mxu0 0.0
      %1548 = vmatpush1.msra.mxu0 0.0
      %1549 = vmatprep.subr.mxu0 0.0
      %1550 = vmatpush1.msra.mxu0 0.0
      %1551 = vmatprep.subr.mxu0 0.0
      %1552 = vmatpush1.msra.mxu0 0.0
      %1553 = vmatprep.subr.mxu0 0.0
      %1554 = vmatpush1.msra.mxu0 0.0
      %1555 = vmatprep.subr.mxu0 0.0
      %1556 = vmatpush1.msra.mxu0 0.0
      %1557 = vmatprep.subr.mxu0 0.0
      %1558 = vmatpush1.msra.mxu0 0.0
      %1559 = vmatprep.subr.mxu0 0.0
      %1560 = vmatpush1.msra.mxu0 0.0
      %1561 = vmatprep.subr.mxu0 0.0
      %1562 = vmatpush1.msra.mxu0 0.0
      %1563 = vmatprep.subr.mxu0 0.0
      %1564 = vmatpush1.msra.mxu0 0.0
      %1565 = vmatprep.subr.mxu0 0.0
      %1566 = vmatpush1.msra.mxu0 0.0
      %1567 = vmatprep.subr.mxu0 0.0
      %1568 = vmatpush1.msra.mxu0 0.0
      %1569 = vmatprep.subr.mxu0 0.0
      %1570 = vmatpush1.msra.mxu0 0.0
      %1571 = vmatprep.subr.mxu0 0.0
      %1572 = vmatpush1.msra.mxu0 0.0
      %1573 = vmatprep.subr.mxu0 0.0
      %1574 = vmatpush1.msra.mxu0 0.0
      %1575 = vmatprep.subr.mxu0 0.0
      %1576 = vmatpush1.msra.mxu0 0.0
      %1577 = vmatprep.subr.mxu0 0.0
      %1578 = vmatpush1.msra.mxu0 0.0
      %1579 = vmatprep.subr.mxu0 0.0
      %1580 = vmatpush1.msra.mxu0 0.0
      %1581 = vmatprep.subr.mxu0 0.0
      %1582 = vmatpush1.msra.mxu0 0.0
      %1583 = vmatprep.subr.mxu0 0.0
      %1584 = vmatpush1.msra.mxu0 0.0
      %1585 = vmatprep.subr.mxu0 0.0
      %1586 = vmatpush1.msra.mxu0 0.0
      %1587 = vmatprep.subr.mxu0 0.0
      %1588 = vmatpush1.msra.mxu0 0.0
      %1589 = vmatprep.subr.mxu0 0.0
      %1590 = vmatpush1.msra.mxu0 0.0
      %1591 = vmatprep.subr.mxu0 0.0
      %1592 = vmatpush1.msra.mxu0 0.0
      %1593 = vmatprep.subr.mxu0 0.0
      %1594 = vmatpush1.msra.mxu0 0.0
      %1595 = vmatprep.subr.mxu0 0.0
      %1596 = vmatpush1.msra.mxu0 0.0
      %1597 = vmatprep.subr.mxu0 0.0
      %1598 = vmatpush1.msra.mxu0 0.0
      %1599 = vmatprep.subr.mxu0 0.0
      %1600 = vmatpush1.msra.mxu0 0.0
      %1601 = vmatprep.subr.mxu0 0.0
      %1602 = vmatpush1.msra.mxu0 0.0
      %1603 = vmatprep.subr.mxu0 0.0
      %1604 = vmatpush1.msra.mxu0 0.0
      %1605 = vmatprep.subr.mxu0 0.0
      %1606 = vmatpush1.msra.mxu0 0.0
      %1607 = vmatprep.mubr.f32.mxu0 0.0
      %1608 = vmatmul.mubr.f32.gmra.mrb[0].mxu0 %v1541
      %v1609 = vpop.f32.mrb[0].mxu0
      %v1610 = vadd.f32 0.0, %v1609
      %v1611 = vpop.f32.mrb[0].mxu0
      %1612 = vdwg.mxu0
      %v1614 = vsel %vm1320, %v1313, 0
      %1616 = vmatprep.subr.mxu0 0.0
      %1617 = vmatpush1.msra.mxu0 %v534
      %1618 = vmatprep.subr.mxu0 0.0
      %1619 = vmatpush1.msra.mxu0 0.0
      %1620 = vmatprep.subr.mxu0 0.0
      %1621 = vmatpush1.msra.mxu0 0.0
      %1622 = vmatprep.subr.mxu0 0.0
      %1623 = vmatpush1.msra.mxu0 0.0
      %1624 = vmatprep.subr.mxu0 0.0
      %1625 = vmatpush1.msra.mxu0 0.0
      %1626 = vmatprep.subr.mxu0 0.0
      %1627 = vmatpush1.msra.mxu0 0.0
      %1628 = vmatprep.subr.mxu0 0.0
      %1629 = vmatpush1.msra.mxu0 0.0
      %1630 = vmatprep.subr.mxu0 0.0
      %1631 = vmatpush1.msra.mxu0 0.0
      %1632 = vmatprep.subr.mxu0 0.0
      %1633 = vmatpush1.msra.mxu0 0.0
      %1634 = vmatprep.subr.mxu0 0.0
      %1635 = vmatpush1.msra.mxu0 0.0
      %1636 = vmatprep.subr.mxu0 0.0
      %1637 = vmatpush1.msra.mxu0 0.0
      %1638 = vmatprep.subr.mxu0 0.0
      %1639 = vmatpush1.msra.mxu0 0.0
      %1640 = vmatprep.subr.mxu0 0.0
      %1641 = vmatpush1.msra.mxu0 0.0
      %1642 = vmatprep.subr.mxu0 0.0
      %1643 = vmatpush1.msra.mxu0 0.0
      %1644 = vmatprep.subr.mxu0 0.0
      %1645 = vmatpush1.msra.mxu0 0.0
      %1646 = vmatprep.subr.mxu0 0.0
      %1647 = vmatpush1.msra.mxu0 0.0
      %1648 = vmatprep.subr.mxu0 0.0
      %1649 = vmatpush1.msra.mxu0 0.0
      %1650 = vmatprep.subr.mxu0 0.0
      %1651 = vmatpush1.msra.mxu0 0.0
      %1652 = vmatprep.subr.mxu0 0.0
      %1653 = vmatpush1.msra.mxu0 0.0
      %1654 = vmatprep.subr.mxu0 0.0
      %1655 = vmatpush1.msra.mxu0 0.0
      %1656 = vmatprep.subr.mxu0 0.0
      %1657 = vmatpush1.msra.mxu0 0.0
      %1658 = vmatprep.subr.mxu0 0.0
      %1659 = vmatpush1.msra.mxu0 0.0
      %1660 = vmatprep.subr.mxu0 0.0
      %1661 = vmatpush1.msra.mxu0 0.0
      %1662 = vmatprep.subr.mxu0 0.0
      %1663 = vmatpush1.msra.mxu0 0.0
      %1664 = vmatprep.subr.mxu0 0.0
      %1665 = vmatpush1.msra.mxu0 0.0
      %1666 = vmatprep.subr.mxu0 0.0
      %1667 = vmatpush1.msra.mxu0 0.0
      %1668 = vmatprep.subr.mxu0 0.0
      %1669 = vmatpush1.msra.mxu0 0.0
      %1670 = vmatprep.subr.mxu0 0.0
      %1671 = vmatpush1.msra.mxu0 0.0
      %1672 = vmatprep.subr.mxu0 0.0
      %1673 = vmatpush1.msra.mxu0 0.0
      %1674 = vmatprep.subr.mxu0 0.0
      %1675 = vmatpush1.msra.mxu0 0.0
      %1676 = vmatprep.subr.mxu0 0.0
      %1677 = vmatpush1.msra.mxu0 0.0
      %1678 = vmatprep.subr.mxu0 0.0
      %1679 = vmatpush1.msra.mxu0 0.0
      %1680 = vmatprep.mubr.f32.mxu0 0.0
      %1681 = vmatmul.mubr.f32.gmra.mrb[0].mxu0 %v1614
      %v1682 = vpop.f32.mrb[0].mxu0
      %v1683 = vadd.f32 0.0, %v1682
      %v1684 = vpop.f32.mrb[0].mxu0
      %1685 = vdwg.mxu0
      %v1687 = vsel %vm1320, %v1315, 0
      %1689 = vmatprep.subr.mxu0 0.0
      %1690 = vmatpush1.msra.mxu0 %v535
      %1691 = vmatprep.subr.mxu0 0.0
      %1692 = vmatpush1.msra.mxu0 0.0
      %1693 = vmatprep.subr.mxu0 0.0
      %1694 = vmatpush1.msra.mxu0 0.0
      %1695 = vmatprep.subr.mxu0 0.0
      %1696 = vmatpush1.msra.mxu0 0.0
      %1697 = vmatprep.subr.mxu0 0.0
      %1698 = vmatpush1.msra.mxu0 0.0
      %1699 = vmatprep.subr.mxu0 0.0
      %1700 = vmatpush1.msra.mxu0 0.0
      %1701 = vmatprep.subr.mxu0 0.0
      %1702 = vmatpush1.msra.mxu0 0.0
      %1703 = vmatprep.subr.mxu0 0.0
      %1704 = vmatpush1.msra.mxu0 0.0
      %1705 = vmatprep.subr.mxu0 0.0
      %1706 = vmatpush1.msra.mxu0 0.0
      %1707 = vmatprep.subr.mxu0 0.0
      %1708 = vmatpush1.msra.mxu0 0.0
      %1709 = vmatprep.subr.mxu0 0.0
      %1710 = vmatpush1.msra.mxu0 0.0
      %1711 = vmatprep.subr.mxu0 0.0
      %1712 = vmatpush1.msra.mxu0 0.0
      %1713 = vmatprep.subr.mxu0 0.0
      %1714 = vmatpush1.msra.mxu0 0.0
      %1715 = vmatprep.subr.mxu0 0.0
      %1716 = vmatpush1.msra.mxu0 0.0
      %1717 = vmatprep.subr.mxu0 0.0
      %1718 = vmatpush1.msra.mxu0 0.0
      %1719 = vmatprep.subr.mxu0 0.0
      %1720 = vmatpush1.msra.mxu0 0.0
      %1721 = vmatprep.subr.mxu0 0.0
      %1722 = vmatpush1.msra.mxu0 0.0
      %1723 = vmatprep.subr.mxu0 0.0
      %1724 = vmatpush1.msra.mxu0 0.0
      %1725 = vmatprep.subr.mxu0 0.0
      %1726 = vmatpush1.msra.mxu0 0.0
      %1727 = vmatprep.subr.mxu0 0.0
      %1728 = vmatpush1.msra.mxu0 0.0
      %1729 = vmatprep.subr.mxu0 0.0
      %1730 = vmatpush1.msra.mxu0 0.0
      %1731 = vmatprep.subr.mxu0 0.0
      %1732 = vmatpush1.msra.mxu0 0.0
      %1733 = vmatprep.subr.mxu0 0.0
      %1734 = vmatpush1.msra.mxu0 0.0
      %1735 = vmatprep.subr.mxu0 0.0
      %1736 = vmatpush1.msra.mxu0 0.0
      %1737 = vmatprep.subr.mxu0 0.0
      %1738 = vmatpush1.msra.mxu0 0.0
      %1739 = vmatprep.subr.mxu0 0.0
      %1740 = vmatpush1.msra.mxu0 0.0
      %1741 = vmatprep.subr.mxu0 0.0
      %1742 = vmatpush1.msra.mxu0 0.0
      %1743 = vmatprep.subr.mxu0 0.0
      %1744 = vmatpush1.msra.mxu0 0.0
      %1745 = vmatprep.subr.mxu0 0.0
      %1746 = vmatpush1.msra.mxu0 0.0
      %1747 = vmatprep.subr.mxu0 0.0
      %1748 = vmatpush1.msra.mxu0 0.0
      %1749 = vmatprep.subr.mxu0 0.0
      %1750 = vmatpush1.msra.mxu0 0.0
      %1751 = vmatprep.subr.mxu0 0.0
      %1752 = vmatpush1.msra.mxu0 0.0
      %1753 = vmatprep.mubr.f32.mxu0 0.0
      %1754 = vmatmul.mubr.f32.gmra.mrb[0].mxu0 %v1687
      %v1755 = vpop.f32.mrb[0].mxu0
      %v1756 = vadd.f32 0.0, %v1755
      %v1757 = vpop.f32.mrb[0].mxu0
      %1758 = vdwg.mxu0
      %v1760 = vsel %vm1320, %v1317, 0
      %1762 = vmatprep.subr.mxu0 0.0
      %1763 = vmatpush1.msra.mxu0 %v536
      %1764 = vmatprep.subr.mxu0 0.0
      %1765 = vmatpush1.msra.mxu0 0.0
      %1766 = vmatprep.subr.mxu0 0.0
      %1767 = vmatpush1.msra.mxu0 0.0
      %1768 = vmatprep.subr.mxu0 0.0
      %1769 = vmatpush1.msra.mxu0 0.0
      %1770 = vmatprep.subr.mxu0 0.0
      %1771 = vmatpush1.msra.mxu0 0.0
      %1772 = vmatprep.subr.mxu0 0.0
      %1773 = vmatpush1.msra.mxu0 0.0
      %1774 = vmatprep.subr.mxu0 0.0
      %1775 = vmatpush1.msra.mxu0 0.0
      %1776 = vmatprep.subr.mxu0 0.0
      %1777 = vmatpush1.msra.mxu0 0.0
      %1778 = vmatprep.subr.mxu0 0.0
      %1779 = vmatpush1.msra.mxu0 0.0
      %1780 = vmatprep.subr.mxu0 0.0
      %1781 = vmatpush1.msra.mxu0 0.0
      %1782 = vmatprep.subr.mxu0 0.0
      %1783 = vmatpush1.msra.mxu0 0.0
      %1784 = vmatprep.subr.mxu0 0.0
      %1785 = vmatpush1.msra.mxu0 0.0
      %1786 = vmatprep.subr.mxu0 0.0
      %1787 = vmatpush1.msra.mxu0 0.0
      %1788 = vmatprep.subr.mxu0 0.0
      %1789 = vmatpush1.msra.mxu0 0.0
      %1790 = vmatprep.subr.mxu0 0.0
      %1791 = vmatpush1.msra.mxu0 0.0
      %1792 = vmatprep.subr.mxu0 0.0
      %1793 = vmatpush1.msra.mxu0 0.0
      %1794 = vmatprep.subr.mxu0 0.0
      %1795 = vmatpush1.msra.mxu0 0.0
      %1796 = vmatprep.subr.mxu0 0.0
      %1797 = vmatpush1.msra.mxu0 0.0
      %1798 = vmatprep.subr.mxu0 0.0
      %1799 = vmatpush1.msra.mxu0 0.0
      %1800 = vmatprep.subr.mxu0 0.0
      %1801 = vmatpush1.msra.mxu0 0.0
      %1802 = vmatprep.subr.mxu0 0.0
      %1803 = vmatpush1.msra.mxu0 0.0
      %1804 = vmatprep.subr.mxu0 0.0
      %1805 = vmatpush1.msra.mxu0 0.0
      %1806 = vmatprep.subr.mxu0 0.0
      %1807 = vmatpush1.msra.mxu0 0.0
      %1808 = vmatprep.subr.mxu0 0.0
      %1809 = vmatpush1.msra.mxu0 0.0
      %1810 = vmatprep.subr.mxu0 0.0
      %1811 = vmatpush1.msra.mxu0 0.0
      %1812 = vmatprep.subr.mxu0 0.0
      %1813 = vmatpush1.msra.mxu0 0.0
      %1814 = vmatprep.subr.mxu0 0.0
      %1815 = vmatpush1.msra.mxu0 0.0
      %1816 = vmatprep.subr.mxu0 0.0
      %1817 = vmatpush1.msra.mxu0 0.0
      %1818 = vmatprep.subr.mxu0 0.0
      %1819 = vmatpush1.msra.mxu0 0.0
      %1820 = vmatprep.subr.mxu0 0.0
      %1821 = vmatpush1.msra.mxu0 0.0
      %1822 = vmatprep.subr.mxu0 0.0
      %1823 = vmatpush1.msra.mxu0 0.0
      %1824 = vmatprep.subr.mxu0 0.0
      %1825 = vmatpush1.msra.mxu0 0.0
      %1826 = vmatprep.mubr.f32.mxu0 0.0
      %1827 = vmatmul.mubr.f32.gmra.mrb[0].mxu0 %v1760
      %v1828 = vpop.f32.mrb[0].mxu0
      %v1829 = vadd.f32 0.0, %v1828
      %v1830 = vpop.f32.mrb[0].mxu0
      %1831 = vdwg.mxu0
      %v1833 = vsel %vm1320, %v1319, 0
      %1835 = vmatprep.subr.mxu0 0.0
      %1836 = vmatpush1.msra.mxu0 %v537
      %1837 = vmatprep.subr.mxu0 0.0
      %1838 = vmatpush1.msra.mxu0 0.0
      %1839 = vmatprep.subr.mxu0 0.0
      %1840 = vmatpush1.msra.mxu0 0.0
      %1841 = vmatprep.subr.mxu0 0.0
      %1842 = vmatpush1.msra.mxu0 0.0
      %1843 = vmatprep.subr.mxu0 0.0
      %1844 = vmatpush1.msra.mxu0 0.0
      %1845 = vmatprep.subr.mxu0 0.0
      %1846 = vmatpush1.msra.mxu0 0.0
      %1847 = vmatprep.subr.mxu0 0.0
      %1848 = vmatpush1.msra.mxu0 0.0
      %1849 = vmatprep.subr.mxu0 0.0
      %1850 = vmatpush1.msra.mxu0 0.0
      %1851 = vmatprep.subr.mxu0 0.0
      %1852 = vmatpush1.msra.mxu0 0.0
      %1853 = vmatprep.subr.mxu0 0.0
      %1854 = vmatpush1.msra.mxu0 0.0
      %1855 = vmatprep.subr.mxu0 0.0
      %1856 = vmatpush1.msra.mxu0 0.0
      %1857 = vmatprep.subr.mxu0 0.0
      %1858 = vmatpush1.msra.mxu0 0.0
      %1859 = vmatprep.subr.mxu0 0.0
      %1860 = vmatpush1.msra.mxu0 0.0
      %1861 = vmatprep.subr.mxu0 0.0
      %1862 = vmatpush1.msra.mxu0 0.0
      %1863 = vmatprep.subr.mxu0 0.0
      %1864 = vmatpush1.msra.mxu0 0.0
      %1865 = vmatprep.subr.mxu0 0.0
      %1866 = vmatpush1.msra.mxu0 0.0
      %1867 = vmatprep.subr.mxu0 0.0
      %1868 = vmatpush1.msra.mxu0 0.0
      %1869 = vmatprep.subr.mxu0 0.0
      %1870 = vmatpush1.msra.mxu0 0.0
      %1871 = vmatprep.subr.mxu0 0.0
      %1872 = vmatpush1.msra.mxu0 0.0
      %1873 = vmatprep.subr.mxu0 0.0
      %1874 = vmatpush1.msra.mxu0 0.0
      %1875 = vmatprep.subr.mxu0 0.0
      %1876 = vmatpush1.msra.mxu0 0.0
      %1877 = vmatprep.subr.mxu0 0.0
      %1878 = vmatpush1.msra.mxu0 0.0
      %1879 = vmatprep.subr.mxu0 0.0
      %1880 = vmatpush1.msra.mxu0 0.0
      %1881 = vmatprep.subr.mxu0 0.0
      %1882 = vmatpush1.msra.mxu0 0.0
      %1883 = vmatprep.subr.mxu0 0.0
      %1884 = vmatpush1.msra.mxu0 0.0
      %1885 = vmatprep.subr.mxu0 0.0
      %1886 = vmatpush1.msra.mxu0 0.0
      %1887 = vmatprep.subr.mxu0 0.0
      %1888 = vmatpush1.msra.mxu0 0.0
      %1889 = vmatprep.subr.mxu0 0.0
      %1890 = vmatpush1.msra.mxu0 0.0
      %1891 = vmatprep.subr.mxu0 0.0
      %1892 = vmatpush1.msra.mxu0 0.0
      %1893 = vmatprep.subr.mxu0 0.0
      %1894 = vmatpush1.msra.mxu0 0.0
      %1895 = vmatprep.subr.mxu0 0.0
      %1896 = vmatpush1.msra.mxu0 0.0
      %1897 = vmatprep.subr.mxu0 0.0
      %1898 = vmatpush1.msra.mxu0 0.0
      %1899 = vmatprep.mubr.f32.mxu0 0.0
      %1900 = vmatmul.mubr.f32.gmra.mrb[0].mxu0 %v1833
      %v1901 = vpop.f32.mrb[0].mxu0
      %v1902 = vadd.f32 0.0, %v1901
      %v1903 = vpop.f32.mrb[0].mxu0
      %1904 = vdwg.mxu0
      %v1905 = vld [vmem:[%s4] sm:$0xff]
      %v1906 = vld [vmem:[%s4 + $0x8] sm:$0xff]
      %v1907 = vld [vmem:[%s4 + $0x10] sm:$0xff]
      %v1908 = vld [vmem:[%s4 + $0x18] sm:$0xff]
      %v1909 = vld [vmem:[%s4 + $0x20] sm:$0xff]
      %v1910 = vld [vmem:[%s4 + $0x28] sm:$0xff]
      %v1911 = vld [vmem:[%s4 + $0x30] sm:$0xff]
      %v1912 = vld [vmem:[%s4 + $0x38] sm:$0xff]
      %v1913 = vld [vmem:[%s4 + $0x40] sm:$0xff]
      %v1914 = vld [vmem:[%s4 + $0x48] sm:$0xff]
      %v1915 = vld [vmem:[%s4 + $0x50] sm:$0xff]
      %v1916 = vld [vmem:[%s4 + $0x58] sm:$0xff]
      %v1917 = vld [vmem:[%s4 + $0x60] sm:$0xff]
      %v1918 = vld [vmem:[%s4 + $0x68] sm:$0xff]
      %v1919 = vld [vmem:[%s4 + $0x70] sm:$0xff]
      %v1920 = vld [vmem:[%s4 + $0x78] sm:$0xff]
      %v1921 = vld [vmem:[%s4 + $0x80] sm:$0xff]
      %v1922 = vld [vmem:[%s4 + $0x88] sm:$0xff]
      %v1923 = vld [vmem:[%s4 + $0x90] sm:$0xff]
      %v1924 = vld [vmem:[%s4 + $0x98] sm:$0xff]
      %v1925 = vld [vmem:[%s4 + $0xa0] sm:$0xff]
      %v1926 = vld [vmem:[%s4 + $0xa8] sm:$0xff]
      %v1927 = vld [vmem:[%s4 + $0xb0] sm:$0xff]
      %v1928 = vld [vmem:[%s4 + $0xb8] sm:$0xff]
      %v1929 = vld [vmem:[%s4 + $0xc0] sm:$0xff]
      %v1930 = vld [vmem:[%s4 + $0xc8] sm:$0xff]
      %v1931 = vld [vmem:[%s4 + $0xd0] sm:$0xff]
      %v1932 = vld [vmem:[%s4 + $0xd8] sm:$0xff]
      %v1933 = vld [vmem:[%s4 + $0xe0] sm:$0xff]
      %v1934 = vld [vmem:[%s4 + $0xe8] sm:$0xff]
      %v1935 = vld [vmem:[%s4 + $0xf0] sm:$0xff]
      %v1936 = vld [vmem:[%s4 + $0xf8] sm:$0xff]
      %v1937 = vld [vmem:[%s4 + $0x100] sm:$0xff]
      %v1938 = vld [vmem:[%s4 + $0x108] sm:$0xff]
      %v1939 = vld [vmem:[%s4 + $0x110] sm:$0xff]
      %v1940 = vld [vmem:[%s4 + $0x118] sm:$0xff]
      %v1941 = vld [vmem:[%s4 + $0x120] sm:$0xff]
      %v1942 = vld [vmem:[%s4 + $0x128] sm:$0xff]
      %v1943 = vld [vmem:[%s4 + $0x130] sm:$0xff]
      %v1944 = vld [vmem:[%s4 + $0x138] sm:$0xff]
      %v1945 = vld [vmem:[%s4 + $0x140] sm:$0xff]
      %v1946 = vld [vmem:[%s4 + $0x148] sm:$0xff]
      %v1947 = vld [vmem:[%s4 + $0x150] sm:$0xff]
      %v1948 = vld [vmem:[%s4 + $0x158] sm:$0xff]
      %v1949 = vld [vmem:[%s4 + $0x160] sm:$0xff]
      %v1950 = vld [vmem:[%s4 + $0x168] sm:$0xff]
      %v1951 = vld [vmem:[%s4 + $0x170] sm:$0xff]
      %v1952 = vld [vmem:[%s4 + $0x178] sm:$0xff]
      %v1953 = vld [vmem:[%s5] sm:$0xff]
      %v1954 = vld [vmem:[%s5 + $0x8] sm:$0xff]
      %v1955 = vld [vmem:[%s5 + $0x10] sm:$0xff]
      %v1956 = vld [vmem:[%s5 + $0x18] sm:$0xff]
      %v1957 = vld [vmem:[%s5 + $0x20] sm:$0xff]
      %v1958 = vld [vmem:[%s5 + $0x28] sm:$0xff]
      %v1959 = vld [vmem:[%s5 + $0x30] sm:$0xff]
      %v1960 = vld [vmem:[%s5 + $0x38] sm:$0xff]
      %v1961 = vld [vmem:[%s5 + $0x40] sm:$0xff]
      %v1962 = vld [vmem:[%s5 + $0x48] sm:$0xff]
      %v1963 = vld [vmem:[%s5 + $0x50] sm:$0xff]
      %v1964 = vld [vmem:[%s5 + $0x58] sm:$0xff]
      %v1965 = vld [vmem:[%s5 + $0x60] sm:$0xff]
      %v1966 = vld [vmem:[%s5 + $0x68] sm:$0xff]
      %v1967 = vld [vmem:[%s5 + $0x70] sm:$0xff]
      %v1968 = vld [vmem:[%s5 + $0x78] sm:$0xff]
      %v1969 = vld [vmem:[%s5 + $0x80] sm:$0xff]
      %v1970 = vld [vmem:[%s5 + $0x88] sm:$0xff]
      %v1971 = vld [vmem:[%s5 + $0x90] sm:$0xff]
      %v1972 = vld [vmem:[%s5 + $0x98] sm:$0xff]
      %v1973 = vld [vmem:[%s5 + $0xa0] sm:$0xff]
      %v1974 = vld [vmem:[%s5 + $0xa8] sm:$0xff]
      %v1975 = vld [vmem:[%s5 + $0xb0] sm:$0xff]
      %v1976 = vld [vmem:[%s5 + $0xb8] sm:$0xff]
      %v1977 = vld [vmem:[%s5 + $0xc0] sm:$0xff]
      %v1978 = vld [vmem:[%s5 + $0xc8] sm:$0xff]
      %v1979 = vld [vmem:[%s5 + $0xd0] sm:$0xff]
      %v1980 = vld [vmem:[%s5 + $0xd8] sm:$0xff]
      %v1981 = vld [vmem:[%s5 + $0xe0] sm:$0xff]
      %v1982 = vld [vmem:[%s5 + $0xe8] sm:$0xff]
      %v1983 = vld [vmem:[%s5 + $0xf0] sm:$0xff]
      %v1984 = vld [vmem:[%s5 + $0xf8] sm:$0xff]
      %v1985 = vld [vmem:[%s5 + $0x100] sm:$0xff]
      %v1986 = vld [vmem:[%s5 + $0x108] sm:$0xff]
      %v1987 = vld [vmem:[%s5 + $0x110] sm:$0xff]
      %v1988 = vld [vmem:[%s5 + $0x118] sm:$0xff]
      %v1989 = vld [vmem:[%s5 + $0x120] sm:$0xff]
      %v1990 = vld [vmem:[%s5 + $0x128] sm:$0xff]
      %v1991 = vld [vmem:[%s5 + $0x130] sm:$0xff]
      %v1992 = vld [vmem:[%s5 + $0x138] sm:$0xff]
      %v1993 = vld [vmem:[%s5 + $0x140] sm:$0xff]
      %v1994 = vld [vmem:[%s5 + $0x148] sm:$0xff]
      %v1995 = vld [vmem:[%s5 + $0x150] sm:$0xff]
      %v1996 = vld [vmem:[%s5 + $0x158] sm:$0xff]
      %v1997 = vld [vmem:[%s5 + $0x160] sm:$0xff]
      %v1998 = vld [vmem:[%s5 + $0x168] sm:$0xff]
      %v1999 = vld [vmem:[%s5 + $0x170] sm:$0xff]
      %v2000 = vld [vmem:[%s5 + $0x178] sm:$0xff]
      %v2009 = vrot.slane %v1464, 7
      %vm2010 = vcmask 1041409
      %v2011 = vsel %vm2010, %v2009, %v1391
      %v2012 = vrot.slane %v1537, 6
      %vm2013 = vcmask 1042434
      %v2014 = vsel %vm2013, %v2012, %v2011
      %v2015 = vrot.slane %v1610, 5
      %vm2016 = vcmask 1043459
      %v2017 = vsel %vm2016, %v2015, %v2014
      %v2018 = vrot.slane %v1683, 4
      %vm2019 = vcmask 1044484
      %v2020 = vsel %vm2019, %v2018, %v2017
      %v2021 = vrot.slane %v1756, 3
      %vm2022 = vcmask 1045509
      %v2023 = vsel %vm2022, %v2021, %v2020
      %v2024 = vrot.slane %v1829, 2
      %vm2025 = vcmask 1046534
      %v2026 = vsel %vm2025, %v2024, %v2023
      %v2027 = vrot.slane %v1902, 1
      %vm2028 = vcmask 1047559
      %v2029 = vsel %vm2028, %v2027, %v2026
      %2031 = vmatprep.subr.mxu0 %v1954
      %2032 = vmatpush1.msra.mxu0 %v1953
      %2033 = vmatprep.subr.mxu0 %v1957
      %2034 = vmatpush1.msra.mxu0 %v1956
      %2035 = vmatprep.subr.mxu0 %v1960
      %2036 = vmatpush1.msra.mxu0 %v1959
      %2037 = vmatprep.subr.mxu0 %v1963
      %2038 = vmatpush1.msra.mxu0 %v1962
      %2039 = vmatprep.subr.mxu0 %v1966
      %2040 = vmatpush1.msra.mxu0 %v1965
      %2041 = vmatprep.subr.mxu0 %v1969
      %2042 = vmatpush1.msra.mxu0 %v1968
      %2043 = vmatprep.subr.mxu0 %v1972
      %2044 = vmatpush1.msra.mxu0 %v1971
      %2045 = vmatprep.subr.mxu0 %v1975
      %2046 = vmatpush1.msra.mxu0 %v1974
      %2047 = vmatprep.subr.mxu0 %v1978
      %2048 = vmatpush1.msra.mxu0 %v1977
      %2049 = vmatprep.subr.mxu0 %v1981
      %2050 = vmatpush1.msra.mxu0 %v1980
      %2051 = vmatprep.subr.mxu0 %v1984
      %2052 = vmatpush1.msra.mxu0 %v1983
      %2053 = vmatprep.subr.mxu0 %v1987
      %2054 = vmatpush1.msra.mxu0 %v1986
      %2055 = vmatprep.subr.mxu0 %v1990
      %2056 = vmatpush1.msra.mxu0 %v1989
      %2057 = vmatprep.subr.mxu0 %v1993
      %2058 = vmatpush1.msra.mxu0 %v1992
      %2059 = vmatprep.subr.mxu0 %v1996
      %2060 = vmatpush1.msra.mxu0 %v1995
      %2061 = vmatprep.subr.mxu0 %v1999
      %2062 = vmatpush1.msra.mxu0 %v1998
      %2063 = vmatprep.subr.mxu0 0.0
      %2064 = vmatpush1.msra.mxu0 0.0
      %2065 = vmatprep.subr.mxu0 0.0
      %2066 = vmatpush1.msra.mxu0 0.0
      %2067 = vmatprep.subr.mxu0 0.0
      %2068 = vmatpush1.msra.mxu0 0.0
      %2069 = vmatprep.subr.mxu0 0.0
      %2070 = vmatpush1.msra.mxu0 0.0
      %2071 = vmatprep.subr.mxu0 0.0
      %2072 = vmatpush1.msra.mxu0 0.0
      %2073 = vmatprep.subr.mxu0 0.0
      %2074 = vmatpush1.msra.mxu0 0.0
      %2075 = vmatprep.subr.mxu0 0.0
      %2076 = vmatpush1.msra.mxu0 0.0
      %2077 = vmatprep.subr.mxu0 0.0
      %2078 = vmatpush1.msra.mxu0 0.0
      %2079 = vmatprep.subr.mxu0 0.0
      %2080 = vmatpush1.msra.mxu0 0.0
      %2081 = vmatprep.subr.mxu0 0.0
      %2082 = vmatpush1.msra.mxu0 0.0
      %2083 = vmatprep.subr.mxu0 0.0
      %2084 = vmatpush1.msra.mxu0 0.0
      %2085 = vmatprep.subr.mxu0 0.0
      %2086 = vmatpush1.msra.mxu0 0.0
      %2087 = vmatprep.subr.mxu0 0.0
      %2088 = vmatpush1.msra.mxu0 0.0
      %2089 = vmatprep.subr.mxu0 0.0
      %2090 = vmatpush1.msra.mxu0 0.0
      %2091 = vmatprep.subr.mxu0 0.0
      %2092 = vmatpush1.msra.mxu0 0.0
      %2093 = vmatprep.subr.mxu0 0.0
      %2094 = vmatpush1.msra.mxu0 0.0
      %2095 = vmatprep.mubr.f32.mxu0 0.0
      %2096 = vmatmul.mubr.f32.gmra.mrb[0].mxu0 %v2029
      %v2097 = vpop.f32.mrb[0].mxu0
      %v2098 = vadd.f32 0.0, %v2097
      %v2099 = vpop.f32.mrb[0].mxu0
      %v2100 = vadd.f32 0.0, %v2099
      %2101 = vdwg.mxu0
      %2102 = vmatprep.subr.mxu0 0.0
      %2103 = vmatpush1.msra.mxu0 %v1955
      %2104 = vmatprep.subr.mxu0 0.0
      %2105 = vmatpush1.msra.mxu0 %v1958
      %2106 = vmatprep.subr.mxu0 0.0
      %2107 = vmatpush1.msra.mxu0 %v1961
      %2108 = vmatprep.subr.mxu0 0.0
      %2109 = vmatpush1.msra.mxu0 %v1964
      %2110 = vmatprep.subr.mxu0 0.0
      %2111 = vmatpush1.msra.mxu0 %v1967
      %2112 = vmatprep.subr.mxu0 0.0
      %2113 = vmatpush1.msra.mxu0 %v1970
      %2114 = vmatprep.subr.mxu0 0.0
      %2115 = vmatpush1.msra.mxu0 %v1973
      %2116 = vmatprep.subr.mxu0 0.0
      %2117 = vmatpush1.msra.mxu0 %v1976
      %2118 = vmatprep.subr.mxu0 0.0
      %2119 = vmatpush1.msra.mxu0 %v1979
      %2120 = vmatprep.subr.mxu0 0.0
      %2121 = vmatpush1.msra.mxu0 %v1982
      %2122 = vmatprep.subr.mxu0 0.0
      %2123 = vmatpush1.msra.mxu0 %v1985
      %2124 = vmatprep.subr.mxu0 0.0
      %2125 = vmatpush1.msra.mxu0 %v1988
      %2126 = vmatprep.subr.mxu0 0.0
      %2127 = vmatpush1.msra.mxu0 %v1991
      %2128 = vmatprep.subr.mxu0 0.0
      %2129 = vmatpush1.msra.mxu0 %v1994
      %2130 = vmatprep.subr.mxu0 0.0
      %2131 = vmatpush1.msra.mxu0 %v1997
      %2132 = vmatprep.subr.mxu0 0.0
      %2133 = vmatpush1.msra.mxu0 %v2000
      %2134 = vmatprep.subr.mxu0 0.0
      %2135 = vmatpush1.msra.mxu0 0.0
      %2136 = vmatprep.subr.mxu0 0.0
      %2137 = vmatpush1.msra.mxu0 0.0
      %2138 = vmatprep.subr.mxu0 0.0
      %2139 = vmatpush1.msra.mxu0 0.0
      %2140 = vmatprep.subr.mxu0 0.0
      %2141 = vmatpush1.msra.mxu0 0.0
      %2142 = vmatprep.subr.mxu0 0.0
      %2143 = vmatpush1.msra.mxu0 0.0
      %2144 = vmatprep.subr.mxu0 0.0
      %2145 = vmatpush1.msra.mxu0 0.0
      %2146 = vmatprep.subr.mxu0 0.0
      %2147 = vmatpush1.msra.mxu0 0.0
      %2148 = vmatprep.subr.mxu0 0.0
      %2149 = vmatpush1.msra.mxu0 0.0
      %2150 = vmatprep.subr.mxu0 0.0
      %2151 = vmatpush1.msra.mxu0 0.0
      %2152 = vmatprep.subr.mxu0 0.0
      %2153 = vmatpush1.msra.mxu0 0.0
      %2154 = vmatprep.subr.mxu0 0.0
      %2155 = vmatpush1.msra.mxu0 0.0
      %2156 = vmatprep.subr.mxu0 0.0
      %2157 = vmatpush1.msra.mxu0 0.0
      %2158 = vmatprep.subr.mxu0 0.0
      %2159 = vmatpush1.msra.mxu0 0.0
      %2160 = vmatprep.subr.mxu0 0.0
      %2161 = vmatpush1.msra.mxu0 0.0
      %2162 = vmatprep.subr.mxu0 0.0
      %2163 = vmatpush1.msra.mxu0 0.0
      %2164 = vmatprep.subr.mxu0 0.0
      %2165 = vmatpush1.msra.mxu0 0.0
      %2166 = vmatprep.mubr.f32.mxu0 0.0
      %2167 = vmatmul.mubr.f32.gmra.mrb[0].mxu0 %v2029
      %v2168 = vpop.f32.mrb[0].mxu0
      %v2169 = vadd.f32 0.0, %v2168
      %v2170 = vpop.f32.mrb[0].mxu0
      %2171 = vdwg.mxu0
      %2172 = vmatprep.subr.mxu0 %v1906
      %2173 = vmatpush1.msra.mxu0 %v1905
      %2174 = vmatprep.subr.mxu0 %v1909
      %2175 = vmatpush1.msra.mxu0 %v1908
      %2176 = vmatprep.subr.mxu0 %v1912
      %2177 = vmatpush1.msra.mxu0 %v1911
      %2178 = vmatprep.subr.mxu0 %v1915
      %2179 = vmatpush1.msra.mxu0 %v1914
      %2180 = vmatprep.subr.mxu0 %v1918
      %2181 = vmatpush1.msra.mxu0 %v1917
      %2182 = vmatprep.subr.mxu0 %v1921
      %2183 = vmatpush1.msra.mxu0 %v1920
      %2184 = vmatprep.subr.mxu0 %v1924
      %2185 = vmatpush1.msra.mxu0 %v1923
      %2186 = vmatprep.subr.mxu0 %v1927
      %2187 = vmatpush1.msra.mxu0 %v1926
      %2188 = vmatprep.subr.mxu0 %v1930
      %2189 = vmatpush1.msra.mxu0 %v1929
      %2190 = vmatprep.subr.mxu0 %v1933
      %2191 = vmatpush1.msra.mxu0 %v1932
      %2192 = vmatprep.subr.mxu0 %v1936
      %2193 = vmatpush1.msra.mxu0 %v1935
      %2194 = vmatprep.subr.mxu0 %v1939
      %2195 = vmatpush1.msra.mxu0 %v1938
      %2196 = vmatprep.subr.mxu0 %v1942
      %2197 = vmatpush1.msra.mxu0 %v1941
      %2198 = vmatprep.subr.mxu0 %v1945
      %2199 = vmatpush1.msra.mxu0 %v1944
      %2200 = vmatprep.subr.mxu0 %v1948
      %2201 = vmatpush1.msra.mxu0 %v1947
      %2202 = vmatprep.subr.mxu0 %v1951
      %2203 = vmatpush1.msra.mxu0 %v1950
      %2204 = vmatprep.subr.mxu0 0.0
      %2205 = vmatpush1.msra.mxu0 0.0
      %2206 = vmatprep.subr.mxu0 0.0
      %2207 = vmatpush1.msra.mxu0 0.0
      %2208 = vmatprep.subr.mxu0 0.0
      %2209 = vmatpush1.msra.mxu0 0.0
      %2210 = vmatprep.subr.mxu0 0.0
      %2211 = vmatpush1.msra.mxu0 0.0
      %2212 = vmatprep.subr.mxu0 0.0
      %2213 = vmatpush1.msra.mxu0 0.0
      %2214 = vmatprep.subr.mxu0 0.0
      %2215 = vmatpush1.msra.mxu0 0.0
      %2216 = vmatprep.subr.mxu0 0.0
      %2217 = vmatpush1.msra.mxu0 0.0
      %2218 = vmatprep.subr.mxu0 0.0
      %2219 = vmatpush1.msra.mxu0 0.0
      %2220 = vmatprep.subr.mxu0 0.0
      %2221 = vmatpush1.msra.mxu0 0.0
      %2222 = vmatprep.subr.mxu0 0.0
      %2223 = vmatpush1.msra.mxu0 0.0
      %2224 = vmatprep.subr.mxu0 0.0
      %2225 = vmatpush1.msra.mxu0 0.0
      %2226 = vmatprep.subr.mxu0 0.0
      %2227 = vmatpush1.msra.mxu0 0.0
      %2228 = vmatprep.subr.mxu0 0.0
      %2229 = vmatpush1.msra.mxu0 0.0
      %2230 = vmatprep.subr.mxu0 0.0
      %2231 = vmatpush1.msra.mxu0 0.0
      %2232 = vmatprep.subr.mxu0 0.0
      %2233 = vmatpush1.msra.mxu0 0.0
      %2234 = vmatprep.subr.mxu0 0.0
      %2235 = vmatpush1.msra.mxu0 0.0
      %2236 = vmatprep.mubr.f32.mxu0 0.0
      %2237 = vmatmul.mubr.f32.gmra.mrb[0].mxu0 %v527
      %v2238 = vpop.f32.mrb[0].mxu0
      %v2239 = vadd.f32 %v2098, %v2238
      %v2240 = vpop.f32.mrb[0].mxu0
      %v2241 = vadd.f32 %v2100, %v2240
      %2242 = vdwg.mxu0
      %2243 = vmatprep.subr.mxu0 0.0
      %2244 = vmatpush1.msra.mxu0 %v1907
      %2245 = vmatprep.subr.mxu0 0.0
      %2246 = vmatpush1.msra.mxu0 %v1910
      %2247 = vmatprep.subr.mxu0 0.0
      %2248 = vmatpush1.msra.mxu0 %v1913
      %2249 = vmatprep.subr.mxu0 0.0
      %2250 = vmatpush1.msra.mxu0 %v1916
      %2251 = vmatprep.subr.mxu0 0.0
      %2252 = vmatpush1.msra.mxu0 %v1919
      %2253 = vmatprep.subr.mxu0 0.0
      %2254 = vmatpush1.msra.mxu0 %v1922
      %2255 = vmatprep.subr.mxu0 0.0
      %2256 = vmatpush1.msra.mxu0 %v1925
      %2257 = vmatprep.subr.mxu0 0.0
      %2258 = vmatpush1.msra.mxu0 %v1928
      %2259 = vmatprep.subr.mxu0 0.0
      %2260 = vmatpush1.msra.mxu0 %v1931
      %2261 = vmatprep.subr.mxu0 0.0
      %2262 = vmatpush1.msra.mxu0 %v1934
      %2263 = vmatprep.subr.mxu0 0.0
      %2264 = vmatpush1.msra.mxu0 %v1937
      %2265 = vmatprep.subr.mxu0 0.0
      %2266 = vmatpush1.msra.mxu0 %v1940
      %2267 = vmatprep.subr.mxu0 0.0
      %2268 = vmatpush1.msra.mxu0 %v1943
      %2269 = vmatprep.subr.mxu0 0.0
      %2270 = vmatpush1.msra.mxu0 %v1946
      %2271 = vmatprep.subr.mxu0 0.0
      %2272 = vmatpush1.msra.mxu0 %v1949
      %2273 = vmatprep.subr.mxu0 0.0
      %2274 = vmatpush1.msra.mxu0 %v1952
      %2275 = vmatprep.subr.mxu0 0.0
      %2276 = vmatpush1.msra.mxu0 0.0
      %2277 = vmatprep.subr.mxu0 0.0
      %2278 = vmatpush1.msra.mxu0 0.0
      %2279 = vmatprep.subr.mxu0 0.0
      %2280 = vmatpush1.msra.mxu0 0.0
      %2281 = vmatprep.subr.mxu0 0.0
      %2282 = vmatpush1.msra.mxu0 0.0
      %2283 = vmatprep.subr.mxu0 0.0
      %2284 = vmatpush1.msra.mxu0 0.0
      %2285 = vmatprep.subr.mxu0 0.0
      %2286 = vmatpush1.msra.mxu0 0.0
      %2287 = vmatprep.subr.mxu0 0.0
      %2288 = vmatpush1.msra.mxu0 0.0
      %2289 = vmatprep.subr.mxu0 0.0
      %2290 = vmatpush1.msra.mxu0 0.0
      %2291 = vmatprep.subr.mxu0 0.0
      %2292 = vmatpush1.msra.mxu0 0.0
      %2293 = vmatprep.subr.mxu0 0.0
      %2294 = vmatpush1.msra.mxu0 0.0
      %2295 = vmatprep.subr.mxu0 0.0
      %2296 = vmatpush1.msra.mxu0 0.0
      %2297 = vmatprep.subr.mxu0 0.0
      %2298 = vmatpush1.msra.mxu0 0.0
      %2299 = vmatprep.subr.mxu0 0.0
      %2300 = vmatpush1.msra.mxu0 0.0
      %2301 = vmatprep.subr.mxu0 0.0
      %2302 = vmatpush1.msra.mxu0 0.0
      %2303 = vmatprep.subr.mxu0 0.0
      %2304 = vmatpush1.msra.mxu0 0.0
      %2305 = vmatprep.subr.mxu0 0.0
      %2306 = vmatpush1.msra.mxu0 0.0
      %2307 = vmatprep.mubr.f32.mxu0 0.0
      %2308 = vmatmul.mubr.f32.gmra.mrb[0].mxu0 %v527
      %v2309 = vpop.f32.mrb[0].mxu0
      %v2310 = vadd.f32 %v2169, %v2309
      %v2311 = vpop.f32.mrb[0].mxu0
      %2312 = vdwg.mxu0
      %v2313 = vld [vmem:[%s7] sm:$0x7]
      %v2315 = vlaneseq
      %v2316 = vshrl.u32 %v2315, 7
      %v2317 = vsub.s32 0, %v2316
      %v2318 = vrot.slane %v2313, %v2317
      %v2319 = vlaneseq
      %v2320 = vshrl.u32 %v2319, 7
      %v2321 = vsub.s32 1, %v2320
      %v2322 = vrot.slane %v2313, %v2321
      %v2323 = vlaneseq
      %v2324 = vshrl.u32 %v2323, 7
      %v2325 = vsub.s32 2, %v2324
      %v2326 = vrot.slane %v2313, %v2325
      %v2330 = vadd.f32 %v2239, %v2318
      %v2331 = vadd.f32 %v2241, %v2322
      %v2332 = vadd.f32 %v2310, %v2326
      %v2333 = vld [vmem:[%s6] sm:$0xff]
      %v2334 = vld [vmem:[%s6 + $0x8] sm:$0xff]
      %v2335 = vld [vmem:[%s6 + $0x10] sm:$0xff]
      %v2336 = vld [vmem:[%s6 + $0x18] sm:$0xff]
      %v2337 = vld [vmem:[%s6 + $0x20] sm:$0xff]
      %v2338 = vld [vmem:[%s6 + $0x28] sm:$0xff]
      %v2339 = vld [vmem:[%s6 + $0x30] sm:$0xff]
      %v2340 = vld [vmem:[%s6 + $0x38] sm:$0xff]
      %v2341 = vld [vmem:[%s6 + $0x40] sm:$0xff]
      %v2342 = vld [vmem:[%s6 + $0x48] sm:$0xff]
      %v2343 = vld [vmem:[%s6 + $0x50] sm:$0xff]
      %v2344 = vld [vmem:[%s6 + $0x58] sm:$0xff]
      %v2345 = vld [vmem:[%s6 + $0x60] sm:$0xff]
      %v2346 = vld [vmem:[%s6 + $0x68] sm:$0xff]
      %v2347 = vld [vmem:[%s6 + $0x70] sm:$0xff]
      %v2348 = vld [vmem:[%s6 + $0x78] sm:$0xff]
      %v2349 = vld [vmem:[%s6 + $0x80] sm:$0xff]
      %v2350 = vld [vmem:[%s6 + $0x88] sm:$0xff]
      %v2351 = vld [vmem:[%s6 + $0x90] sm:$0xff]
      %v2352 = vld [vmem:[%s6 + $0x98] sm:$0xff]
      %v2353 = vld [vmem:[%s6 + $0xa0] sm:$0xff]
      %v2354 = vld [vmem:[%s6 + $0xa8] sm:$0xff]
      %v2355 = vld [vmem:[%s6 + $0xb0] sm:$0xff]
      %v2356 = vld [vmem:[%s6 + $0xb8] sm:$0xff]
      %v2357 = vld [vmem:[%s6 + $0xc0] sm:$0xff]
      %v2358 = vld [vmem:[%s6 + $0xc8] sm:$0xff]
      %v2359 = vld [vmem:[%s6 + $0xd0] sm:$0xff]
      %v2360 = vld [vmem:[%s6 + $0xd8] sm:$0xff]
      %v2361 = vld [vmem:[%s6 + $0xe0] sm:$0xff]
      %v2362 = vld [vmem:[%s6 + $0xe8] sm:$0xff]
      %v2363 = vld [vmem:[%s6 + $0xf0] sm:$0xff]
      %v2364 = vld [vmem:[%s6 + $0xf8] sm:$0xff]
      %v2365 = vld [vmem:[%s6 + $0x100] sm:$0xff]
      %v2366 = vld [vmem:[%s6 + $0x108] sm:$0xff]
      %v2367 = vld [vmem:[%s6 + $0x110] sm:$0xff]
      %v2368 = vld [vmem:[%s6 + $0x118] sm:$0xff]
      %v2369 = vld [vmem:[%s6 + $0x120] sm:$0xff]
      %v2370 = vld [vmem:[%s6 + $0x128] sm:$0xff]
      %v2371 = vld [vmem:[%s6 + $0x130] sm:$0xff]
      %v2372 = vld [vmem:[%s6 + $0x138] sm:$0xff]
      %v2373 = vld [vmem:[%s6 + $0x140] sm:$0xff]
      %v2374 = vld [vmem:[%s6 + $0x148] sm:$0xff]
      %v2375 = vld [vmem:[%s6 + $0x150] sm:$0xff]
      %v2376 = vld [vmem:[%s6 + $0x158] sm:$0xff]
      %v2377 = vld [vmem:[%s6 + $0x160] sm:$0xff]
      %v2378 = vld [vmem:[%s6 + $0x168] sm:$0xff]
      %v2379 = vld [vmem:[%s6 + $0x170] sm:$0xff]
      %v2380 = vld [vmem:[%s6 + $0x178] sm:$0xff]
      %v2381 = vld [vmem:[%s8] sm:$0x7]
      %v2383 = vlaneseq
      %v2384 = vshrl.u32 %v2383, 7
      %v2385 = vsub.s32 0, %v2384
      %v2386 = vrot.slane %v2381, %v2385
      %v2387 = vlaneseq
      %v2388 = vshrl.u32 %v2387, 7
      %v2389 = vsub.s32 1, %v2388
      %v2390 = vrot.slane %v2381, %v2389
      %v2391 = vlaneseq
      %v2392 = vshrl.u32 %v2391, 7
      %v2393 = vsub.s32 2, %v2392
      %v2394 = vrot.slane %v2381, %v2393
      %2398 = vmatprep.subr.mxu0 %v2334
      %2399 = vmatpush1.msra.mxu0 %v2333
      %2400 = vmatprep.subr.mxu0 %v2337
      %2401 = vmatpush1.msra.mxu0 %v2336
      %2402 = vmatprep.subr.mxu0 %v2340
      %2403 = vmatpush1.msra.mxu0 %v2339
      %2404 = vmatprep.subr.mxu0 %v2343
      %2405 = vmatpush1.msra.mxu0 %v2342
      %2406 = vmatprep.subr.mxu0 %v2346
      %2407 = vmatpush1.msra.mxu0 %v2345
      %2408 = vmatprep.subr.mxu0 %v2349
      %2409 = vmatpush1.msra.mxu0 %v2348
      %2410 = vmatprep.subr.mxu0 %v2352
      %2411 = vmatpush1.msra.mxu0 %v2351
      %2412 = vmatprep.subr.mxu0 %v2355
      %2413 = vmatpush1.msra.mxu0 %v2354
      %2414 = vmatprep.subr.mxu0 %v2358
      %2415 = vmatpush1.msra.mxu0 %v2357
      %2416 = vmatprep.subr.mxu0 %v2361
      %2417 = vmatpush1.msra.mxu0 %v2360
      %2418 = vmatprep.subr.mxu0 %v2364
      %2419 = vmatpush1.msra.mxu0 %v2363
      %2420 = vmatprep.subr.mxu0 %v2367
      %2421 = vmatpush1.msra.mxu0 %v2366
      %2422 = vmatprep.subr.mxu0 %v2370
      %2423 = vmatpush1.msra.mxu0 %v2369
      %2424 = vmatprep.subr.mxu0 %v2373
      %2425 = vmatpush1.msra.mxu0 %v2372
      %2426 = vmatprep.subr.mxu0 %v2376
      %2427 = vmatpush1.msra.mxu0 %v2375
      %2428 = vmatprep.subr.mxu0 %v2379
      %2429 = vmatpush1.msra.mxu0 %v2378
      %2430 = vmatprep.subr.mxu0 0.0
      %2431 = vmatpush1.msra.mxu0 0.0
      %2432 = vmatprep.subr.mxu0 0.0
      %2433 = vmatpush1.msra.mxu0 0.0
      %2434 = vmatprep.subr.mxu0 0.0
      %2435 = vmatpush1.msra.mxu0 0.0
      %2436 = vmatprep.subr.mxu0 0.0
      %2437 = vmatpush1.msra.mxu0 0.0
      %2438 = vmatprep.subr.mxu0 0.0
      %2439 = vmatpush1.msra.mxu0 0.0
      %2440 = vmatprep.subr.mxu0 0.0
      %2441 = vmatpush1.msra.mxu0 0.0
      %2442 = vmatprep.subr.mxu0 0.0
      %2443 = vmatpush1.msra.mxu0 0.0
      %2444 = vmatprep.subr.mxu0 0.0
      %2445 = vmatpush1.msra.mxu0 0.0
      %2446 = vmatprep.subr.mxu0 0.0
      %2447 = vmatpush1.msra.mxu0 0.0
      %2448 = vmatprep.subr.mxu0 0.0
      %2449 = vmatpush1.msra.mxu0 0.0
      %2450 = vmatprep.subr.mxu0 0.0
      %2451 = vmatpush1.msra.mxu0 0.0
      %2452 = vmatprep.subr.mxu0 0.0
      %2453 = vmatpush1.msra.mxu0 0.0
      %2454 = vmatprep.subr.mxu0 0.0
      %2455 = vmatpush1.msra.mxu0 0.0
      %2456 = vmatprep.subr.mxu0 0.0
      %2457 = vmatpush1.msra.mxu0 0.0
      %2458 = vmatprep.subr.mxu0 0.0
      %2459 = vmatpush1.msra.mxu0 0.0
      %2460 = vmatprep.subr.mxu0 0.0
      %2461 = vmatpush1.msra.mxu0 0.0
      %2462 = vmatprep.mubr.f32.mxu0 0.0
      %2463 = vmatmul.mubr.f32.gmra.mrb[0].mxu0 %v442
      %v2464 = vpop.f32.mrb[0].mxu0
      %v2465 = vadd.f32 %v2386, %v2464
      %v2466 = vpop.f32.mrb[0].mxu0
      %v2467 = vadd.f32 %v2390, %v2466
      %2468 = vdwg.mxu0
      %2469 = vmatprep.subr.mxu0 0.0
      %2470 = vmatpush1.msra.mxu0 %v2335
      %2471 = vmatprep.subr.mxu0 0.0
      %2472 = vmatpush1.msra.mxu0 %v2338
      %2473 = vmatprep.subr.mxu0 0.0
      %2474 = vmatpush1.msra.mxu0 %v2341
      %2475 = vmatprep.subr.mxu0 0.0
      %2476 = vmatpush1.msra.mxu0 %v2344
      %2477 = vmatprep.subr.mxu0 0.0
      %2478 = vmatpush1.msra.mxu0 %v2347
      %2479 = vmatprep.subr.mxu0 0.0
      %2480 = vmatpush1.msra.mxu0 %v2350
      %2481 = vmatprep.subr.mxu0 0.0
      %2482 = vmatpush1.msra.mxu0 %v2353
      %2483 = vmatprep.subr.mxu0 0.0
      %2484 = vmatpush1.msra.mxu0 %v2356
      %2485 = vmatprep.subr.mxu0 0.0
      %2486 = vmatpush1.msra.mxu0 %v2359
      %2487 = vmatprep.subr.mxu0 0.0
      %2488 = vmatpush1.msra.mxu0 %v2362
      %2489 = vmatprep.subr.mxu0 0.0
      %2490 = vmatpush1.msra.mxu0 %v2365
      %2491 = vmatprep.subr.mxu0 0.0
      %2492 = vmatpush1.msra.mxu0 %v2368
      %2493 = vmatprep.subr.mxu0 0.0
      %2494 = vmatpush1.msra.mxu0 %v2371
      %2495 = vmatprep.subr.mxu0 0.0
      %2496 = vmatpush1.msra.mxu0 %v2374
      %2497 = vmatprep.subr.mxu0 0.0
      %2498 = vmatpush1.msra.mxu0 %v2377
      %2499 = vmatprep.subr.mxu0 0.0
      %2500 = vmatpush1.msra.mxu0 %v2380
      %2501 = vmatprep.subr.mxu0 0.0
      %2502 = vmatpush1.msra.mxu0 0.0
      %2503 = vmatprep.subr.mxu0 0.0
      %2504 = vmatpush1.msra.mxu0 0.0
      %2505 = vmatprep.subr.mxu0 0.0
      %2506 = vmatpush1.msra.mxu0 0.0
      %2507 = vmatprep.subr.mxu0 0.0
      %2508 = vmatpush1.msra.mxu0 0.0
      %2509 = vmatprep.subr.mxu0 0.0
      %2510 = vmatpush1.msra.mxu0 0.0
      %2511 = vmatprep.subr.mxu0 0.0
      %2512 = vmatpush1.msra.mxu0 0.0
      %2513 = vmatprep.subr.mxu0 0.0
      %2514 = vmatpush1.msra.mxu0 0.0
      %2515 = vmatprep.subr.mxu0 0.0
      %2516 = vmatpush1.msra.mxu0 0.0
      %2517 = vmatprep.subr.mxu0 0.0
      %2518 = vmatpush1.msra.mxu0 0.0
      %2519 = vmatprep.subr.mxu0 0.0
      %2520 = vmatpush1.msra.mxu0 0.0
      %2521 = vmatprep.subr.mxu0 0.0
      %2522 = vmatpush1.msra.mxu0 0.0
      %2523 = vmatprep.subr.mxu0 0.0
      %2524 = vmatpush1.msra.mxu0 0.0
      %2525 = vmatprep.subr.mxu0 0.0
      %2526 = vmatpush1.msra.mxu0 0.0
      %2527 = vmatprep.subr.mxu0 0.0
      %2528 = vmatpush1.msra.mxu0 0.0
      %2529 = vmatprep.subr.mxu0 0.0
      %2530 = vmatpush1.msra.mxu0 0.0
      %2531 = vmatprep.subr.mxu0 0.0
      %2532 = vmatpush1.msra.mxu0 0.0
      %2533 = vmatprep.mubr.f32.mxu0 0.0
      %2534 = vmatmul.mubr.f32.gmra.mrb[0].mxu0 %v442
      %v2535 = vpop.f32.mrb[0].mxu0
      %v2536 = vadd.f32 %v2394, %v2535
      %v2537 = vpop.f32.mrb[0].mxu0
      %2538 = vdwg.mxu0
      %v2539 = vadd.f32 %v2330, %v2465
      %v2540 = vxor.u32 %v2539, 2147483648
      %v2541 = vmul.f32 %v2540, 1.442695
      %v2542 = vpow.pop %v2541
      %v2543 = vadd.f32 %v2542, 1.0
      %v2544 = vrcp.pop %v2543
      %v2545 = vmul.f32 1.0, %v2544
      %v2546 = vadd.f32 %v2331, %v2467
      %v2547 = vxor.u32 %v2546, 2147483648
      %v2548 = vmul.f32 %v2547, 1.442695
      %v2549 = vpow.pop %v2548
      %v2550 = vadd.f32 %v2549, 1.0
      %v2551 = vrcp.pop %v2550
      %v2552 = vmul.f32 1.0, %v2551
      %v2553 = vmul.f32 %v2545, %v2536
      %v2554 = vadd.f32 %v2332, %v2553
      %v2555 = vtanh.pop %v2554
      %v2556 = vsub.f32 1.0, %v2552
      %v2557 = vmul.f32 %v2556, %v2555
      %v2558 = vmul.f32 %v2552, %v442
      %v2559 = vadd.f32 %v2557, %v2558
      %v2560 = vld [vmem:[%s9] sm:$0xff]
      %v2561 = vld [vmem:[%s9 + $0x8] sm:$0xff]
      %v2562 = vld [vmem:[%s9 + $0x10] sm:$0xff]
      %v2563 = vld [vmem:[%s9 + $0x18] sm:$0xff]
      %v2564 = vld [vmem:[%s9 + $0x20] sm:$0xff]
      %v2565 = vld [vmem:[%s9 + $0x28] sm:$0xff]
      %v2566 = vld [vmem:[%s9 + $0x30] sm:$0xff]
      %v2567 = vld [vmem:[%s9 + $0x38] sm:$0xff]
      %v2568 = vld [vmem:[%s9 + $0x40] sm:$0xff]
      %v2569 = vld [vmem:[%s9 + $0x48] sm:$0xff]
      %v2570 = vld [vmem:[%s9 + $0x50] sm:$0xff]
      %v2571 = vld [vmem:[%s9 + $0x58] sm:$0xff]
      %v2572 = vld [vmem:[%s9 + $0x60] sm:$0xff]
      %v2573 = vld [vmem:[%s9 + $0x68] sm:$0xff]
      %v2574 = vld [vmem:[%s9 + $0x70] sm:$0xff]
      %v2575 = vld [vmem:[%s9 + $0x78] sm:$0xff]
      %v2576 = vld [vmem:[%s10] sm:$0xff]
      %v2577 = vld [vmem:[%s10 + $0x8] sm:$0xff]
      %v2578 = vld [vmem:[%s10 + $0x10] sm:$0xff]
      %v2579 = vld [vmem:[%s10 + $0x18] sm:$0xff]
      %v2580 = vld [vmem:[%s10 + $0x20] sm:$0xff]
      %v2581 = vld [vmem:[%s10 + $0x28] sm:$0xff]
      %v2582 = vld [vmem:[%s10 + $0x30] sm:$0xff]
      %v2583 = vld [vmem:[%s10 + $0x38] sm:$0xff]
      %v2584 = vld [vmem:[%s10 + $0x40] sm:$0xff]
      %v2585 = vld [vmem:[%s10 + $0x48] sm:$0xff]
      %v2586 = vld [vmem:[%s10 + $0x50] sm:$0xff]
      %v2587 = vld [vmem:[%s10 + $0x58] sm:$0xff]
      %v2588 = vld [vmem:[%s10 + $0x60] sm:$0xff]
      %v2589 = vld [vmem:[%s10 + $0x68] sm:$0xff]
      %v2590 = vld [vmem:[%s10 + $0x70] sm:$0xff]
      %v2591 = vld [vmem:[%s10 + $0x78] sm:$0xff]
      %2592 = vmatprep.subr.mxu0 0.0
      %2593 = vmatpush1.msra.mxu0 %v2576
      %2594 = vmatprep.subr.mxu0 0.0
      %2595 = vmatpush1.msra.mxu0 %v2577
      %2596 = vmatprep.subr.mxu0 0.0
      %2597 = vmatpush1.msra.mxu0 %v2578
      %2598 = vmatprep.subr.mxu0 0.0
      %2599 = vmatpush1.msra.mxu0 %v2579
      %2600 = vmatprep.subr.mxu0 0.0
      %2601 = vmatpush1.msra.mxu0 %v2580
      %2602 = vmatprep.subr.mxu0 0.0
      %2603 = vmatpush1.msra.mxu0 %v2581
      %2604 = vmatprep.subr.mxu0 0.0
      %2605 = vmatpush1.msra.mxu0 %v2582
      %2606 = vmatprep.subr.mxu0 0.0
      %2607 = vmatpush1.msra.mxu0 %v2583
      %2608 = vmatprep.subr.mxu0 0.0
      %2609 = vmatpush1.msra.mxu0 %v2584
      %2610 = vmatprep.subr.mxu0 0.0
      %2611 = vmatpush1.msra.mxu0 %v2585
      %2612 = vmatprep.subr.mxu0 0.0
      %2613 = vmatpush1.msra.mxu0 %v2586
      %2614 = vmatprep.subr.mxu0 0.0
      %2615 = vmatpush1.msra.mxu0 %v2587
      %2616 = vmatprep.subr.mxu0 0.0
      %2617 = vmatpush1.msra.mxu0 %v2588
      %2618 = vmatprep.subr.mxu0 0.0
      %2619 = vmatpush1.msra.mxu0 %v2589
      %2620 = vmatprep.subr.mxu0 0.0
      %2621 = vmatpush1.msra.mxu0 %v2590
      %2622 = vmatprep.subr.mxu0 0.0
      %2623 = vmatpush1.msra.mxu0 %v2591
      %2624 = vmatprep.subr.mxu0 0.0
      %2625 = vmatpush1.msra.mxu0 0.0
      %2626 = vmatprep.subr.mxu0 0.0
      %2627 = vmatpush1.msra.mxu0 0.0
      %2628 = vmatprep.subr.mxu0 0.0
      %2629 = vmatpush1.msra.mxu0 0.0
      %2630 = vmatprep.subr.mxu0 0.0
      %2631 = vmatpush1.msra.mxu0 0.0
      %2632 = vmatprep.subr.mxu0 0.0
      %2633 = vmatpush1.msra.mxu0 0.0
      %2634 = vmatprep.subr.mxu0 0.0
      %2635 = vmatpush1.msra.mxu0 0.0
      %2636 = vmatprep.subr.mxu0 0.0
      %2637 = vmatpush1.msra.mxu0 0.0
      %2638 = vmatprep.subr.mxu0 0.0
      %2639 = vmatpush1.msra.mxu0 0.0
      %2640 = vmatprep.subr.mxu0 0.0
      %2641 = vmatpush1.msra.mxu0 0.0
      %2642 = vmatprep.subr.mxu0 0.0
      %2643 = vmatpush1.msra.mxu0 0.0
      %2644 = vmatprep.subr.mxu0 0.0
      %2645 = vmatpush1.msra.mxu0 0.0
      %2646 = vmatprep.subr.mxu0 0.0
      %2647 = vmatpush1.msra.mxu0 0.0
      %2648 = vmatprep.subr.mxu0 0.0
      %2649 = vmatpush1.msra.mxu0 0.0
      %2650 = vmatprep.subr.mxu0 0.0
      %2651 = vmatpush1.msra.mxu0 0.0
      %2652 = vmatprep.subr.mxu0 0.0
      %2653 = vmatpush1.msra.mxu0 0.0
      %2654 = vmatprep.subr.mxu0 0.0
      %2655 = vmatpush1.msra.mxu0 0.0
      %2656 = vmatprep.mubr.f32.mxu0 0.0
      %2657 = vmatmul.mubr.f32.gmra.mrb[0].mxu0 %v2029
      %v2658 = vpop.f32.mrb[0].mxu0
      %v2659 = vadd.f32 0.0, %v2658
      %v2660 = vpop.f32.mrb[0].mxu0
      %2661 = vdwg.mxu0
      %2662 = vmatprep.subr.mxu0 0.0
      %2663 = vmatpush1.msra.mxu0 %v2560
      %2664 = vmatprep.subr.mxu0 0.0
      %2665 = vmatpush1.msra.mxu0 %v2561
      %2666 = vmatprep.subr.mxu0 0.0
      %2667 = vmatpush1.msra.mxu0 %v2562
      %2668 = vmatprep.subr.mxu0 0.0
      %2669 = vmatpush1.msra.mxu0 %v2563
      %2670 = vmatprep.subr.mxu0 0.0
      %2671 = vmatpush1.msra.mxu0 %v2564
      %2672 = vmatprep.subr.mxu0 0.0
      %2673 = vmatpush1.msra.mxu0 %v2565
      %2674 = vmatprep.subr.mxu0 0.0
      %2675 = vmatpush1.msra.mxu0 %v2566
      %2676 = vmatprep.subr.mxu0 0.0
      %2677 = vmatpush1.msra.mxu0 %v2567
      %2678 = vmatprep.subr.mxu0 0.0
      %2679 = vmatpush1.msra.mxu0 %v2568
      %2680 = vmatprep.subr.mxu0 0.0
      %2681 = vmatpush1.msra.mxu0 %v2569
      %2682 = vmatprep.subr.mxu0 0.0
      %2683 = vmatpush1.msra.mxu0 %v2570
      %2684 = vmatprep.subr.mxu0 0.0
      %2685 = vmatpush1.msra.mxu0 %v2571
      %2686 = vmatprep.subr.mxu0 0.0
      %2687 = vmatpush1.msra.mxu0 %v2572
      %2688 = vmatprep.subr.mxu0 0.0
      %2689 = vmatpush1.msra.mxu0 %v2573
      %2690 = vmatprep.subr.mxu0 0.0
      %2691 = vmatpush1.msra.mxu0 %v2574
      %2692 = vmatprep.subr.mxu0 0.0
      %2693 = vmatpush1.msra.mxu0 %v2575
      %2694 = vmatprep.subr.mxu0 0.0
      %2695 = vmatpush1.msra.mxu0 0.0
      %2696 = vmatprep.subr.mxu0 0.0
      %2697 = vmatpush1.msra.mxu0 0.0
      %2698 = vmatprep.subr.mxu0 0.0
      %2699 = vmatpush1.msra.mxu0 0.0
      %2700 = vmatprep.subr.mxu0 0.0
      %2701 = vmatpush1.msra.mxu0 0.0
      %2702 = vmatprep.subr.mxu0 0.0
      %2703 = vmatpush1.msra.mxu0 0.0
      %2704 = vmatprep.subr.mxu0 0.0
      %2705 = vmatpush1.msra.mxu0 0.0
      %2706 = vmatprep.subr.mxu0 0.0
      %2707 = vmatpush1.msra.mxu0 0.0
      %2708 = vmatprep.subr.mxu0 0.0
      %2709 = vmatpush1.msra.mxu0 0.0
      %2710 = vmatprep.subr.mxu0 0.0
      %2711 = vmatpush1.msra.mxu0 0.0
      %2712 = vmatprep.subr.mxu0 0.0
      %2713 = vmatpush1.msra.mxu0 0.0
      %2714 = vmatprep.subr.mxu0 0.0
      %2715 = vmatpush1.msra.mxu0 0.0
      %2716 = vmatprep.subr.mxu0 0.0
      %2717 = vmatpush1.msra.mxu0 0.0
      %2718 = vmatprep.subr.mxu0 0.0
      %2719 = vmatpush1.msra.mxu0 0.0
      %2720 = vmatprep.subr.mxu0 0.0
      %2721 = vmatpush1.msra.mxu0 0.0
      %2722 = vmatprep.subr.mxu0 0.0
      %2723 = vmatpush1.msra.mxu0 0.0
      %2724 = vmatprep.subr.mxu0 0.0
      %2725 = vmatpush1.msra.mxu0 0.0
      %2726 = vmatprep.mubr.f32.mxu0 0.0
      %2727 = vmatmul.mubr.f32.gmra.mrb[0].mxu0 %v2559
      %v2728 = vpop.f32.mrb[0].mxu0
      %v2729 = vadd.f32 %v2659, %v2728
      %v2730 = vpop.f32.mrb[0].mxu0
      %2731 = vdwg.mxu0
      %v2732 = vld [vmem:[%s11] sm:$0x1]
      %v2734 = vlaneseq
      %v2735 = vshrl.u32 %v2734, 7
      %v2736 = vsub.s32 0, %v2735
      %v2737 = vrot.slane %v2732, %v2736
      %v2739 = vadd.f32 %v2729, %v2737
      %2740 = vst [vmem:[%s425] sm:$0xff] %v2739
      %v2741 = vcombine.low %v1305, %v1307
      %v2742 = vcombine.low %v1309, %v1311
      %v2743 = vcombine.low %v1313, %v1315
      %v2744 = vcombine.low %v1317, %v1319
      %v2746 = vunpack.c.l.s4 1966171168
      %v2747 = vunpack.c.0.s8 %v2746
      %v2748 = vlaneseq
      %v2749 = vshrl.u32 %v2748, 7
      %v2750 = vsub.s32 %v2747, %v2749
      %v2751 = vrot.slane %v2741, %v2750
      %v2753 = vunpack.c.l.s4 1966171168
      %v2754 = vunpack.c.0.s8 %v2753
      %v2755 = vlaneseq
      %v2756 = vshrl.u32 %v2755, 7
      %v2757 = vsub.s32 %v2754, %v2756
      %v2758 = vrot.slane %v2742, %v2757
      %v2760 = vunpack.c.l.s4 1966171168
      %v2761 = vunpack.c.0.s8 %v2760
      %v2762 = vlaneseq
      %v2763 = vshrl.u32 %v2762, 7
      %v2764 = vsub.s32 %v2761, %v2763
      %v2765 = vrot.slane %v2743, %v2764
      %v2767 = vunpack.c.l.s4 1966171168
      %v2768 = vunpack.c.0.s8 %v2767
      %v2769 = vlaneseq
      %v2770 = vshrl.u32 %v2769, 7
      %v2771 = vsub.s32 %v2768, %v2770
      %v2772 = vrot.slane %v2744, %v2771
      %v2773 = vcombine.low %v2751, %v2758
      %v2774 = vcombine.low %v2765, %v2772
      %v2776 = vunpack.c.l.s4 1966171168
      %v2777 = vunpack.c.0.s8 %v2776
      %v2778 = vlaneseq
      %v2779 = vshrl.u32 %v2778, 7
      %v2780 = vsub.s32 %v2777, %v2779
      %v2781 = vrot.slane %v2773, %v2780
      %v2783 = vunpack.c.l.s4 1966171168
      %v2784 = vunpack.c.0.s8 %v2783
      %v2785 = vlaneseq
      %v2786 = vshrl.u32 %v2785, 7
      %v2787 = vsub.s32 %v2784, %v2786
      %v2788 = vrot.slane %v2774, %v2787
      %v2789 = vcombine.low %v2781, %v2788
      %2791 = vst.msk [vmem:[%s429] sm:$0xff] %vm1320, %v2789
      %2792 = vmax.xlane.f32.xlu0 %v2739
      %v2793 = vpop.xlane.xlu0 %2792
      %vm2794 = vcmp.ge.f32.partialorder %v2739, %v2793
      %v2795 = vsel %vm2794, %v431, 128
      %v2796 = vand.u32 %v2795, 65535
      %v2797 = vshra.s32 %v2795, 16
      %v2798 = vcvt.s32.f32 %v2796
      %v2799 = vcvt.s32.f32 %v2797
      %2800 = vmin.xlane.f32.xlu0 %v2799
      %v2801 = vpop.xlane.xlu0 %2800
      %vm2802 = vcmp.eq.f32.partialorder %v2799, %v2801
      %v2803 = vsel %vm2802, %v2798, inf
      %2804 = vmin.xlane.f32.xlu0 %v2803
      %v2805 = vpop.xlane.xlu0 %2804
      %v2806 = vcvt.f32.s32 %v2805
      %v2807 = vcvt.f32.s32 %v2801
      %v2808 = vshll.u32 %v2807, 16
      %v2809 = vadd.s32 %v2808, %v2806
      %vm2810 = vcmp.eq.s32.totalorder %v431, %v2809
      %v2811 = vsel %vm2810, 1, 0
      %v2812 = vcvt.s32.f32 %v2811
      %2813 = vst [vmem:[#allocation3] sm:$0xff] %v2812
      %2814 = vst [vmem:[#allocation2] sm:$0xff] %v2559
      %p2815 = scmp.lt.s32.totalorder %s25, 7
      %s2816 = scalar_select %p2815, %s25, 7
      %s2817 = smul.addr %s2816, 8
      %s2818 = scalar_lea.vmem %s12, %s2817
      %p2819 = scmp.lt.s32.totalorder %s25, 7
      %s2820 = scalar_select %p2819, %s25, 7
      %s2821 = smul.addr %s2820, 8
      %s2822 = scalar_lea.vmem %s13, %s2821
      // Predicated region
      $region73: #{seq2seq_forward.3} parent=67 // pred_check
        %p2823 = pneg %p295
      $region74: #{seq2seq_forward.3} parent=67 // pred_check_branch
        %2825 = sbr.rel (%p2823) target = $region76
      $region75: #{seq2seq_forward.3} parent=67 // pred_region
        _
      $region76: #{seq2seq_forward.3} parent=67 // pred_fallthru
        _
      // Predicated region
      $region77: #{seq2seq_forward.3} parent=67 // pred_check
        %p2826 = pneg %p321
      $region78: #{seq2seq_forward.3} parent=67 // pred_check_branch
        %2828 = sbr.rel (%p2826) target = $region80
      $region79: #{seq2seq_forward.3} parent=67 // pred_region
        _
      $region80: #{seq2seq_forward.3} parent=67 // pred_fallthru
        _
    $region68: #{seq2seq_forward.3} parent=5 // pred_fallthru
      _
    %p2829 = scmp.le.s32.totalorder 2, %s20
    // Predicated region
    $region81: #{seq2seq_forward.3} parent=5 // pred_check
      %p2830 = pneg %p2829
    $region82: #{seq2seq_forward.3} parent=5 // pred_check_branch
      %2832 = sbr.rel (%p2830) target = $region84
    $region83: #{seq2seq_forward.3} parent=5 // pred_region
      %s2833 = ssub.s32 %s20, 2
      // Predicated region
      $region85: #{seq2seq_forward.3} parent=83 // pred_check
        %p2834 = pneg %p301
      $region86: #{seq2seq_forward.3} parent=83 // pred_check_branch
        %2836 = sbr.rel (%p2834) target = $region88
      $region87: #{seq2seq_forward.3} parent=83 // pred_region
        %p2837 = scmp.lt.s32.totalorder %s26, 7
        %s2838 = scalar_select %p2837, %s26, 7
        %s2839 = smul.addr %s2838, 8
        %s2840 = scalar_lea.vmem %s12, %s2839
      $region88: #{seq2seq_forward.3} parent=83 // pred_fallthru
        _
      // Predicated region
      $region89: #{seq2seq_forward.3} parent=83 // pred_check
        %p2841 = pneg %p327
      $region90: #{seq2seq_forward.3} parent=83 // pred_check_branch
        %2843 = sbr.rel (%p2841) target = $region92
      $region91: #{seq2seq_forward.3} parent=83 // pred_region
        %p2844 = scmp.lt.s32.totalorder %s26, 7
        %s2845 = scalar_select %p2844, %s26, 7
        %s2846 = smul.addr %s2845, 8
        %s2847 = scalar_lea.vmem %s13, %s2846
      $region92: #{seq2seq_forward.3} parent=83 // pred_fallthru
        _
    $region84: #{seq2seq_forward.3} parent=5 // pred_fallthru
      _
  $region6: #{seq2seq_forward.3} parent=0 // loop_footer
    %s24 = sadd.s32 1, %s20
  $region7: #{seq2seq_forward.3} parent=0 // loop_footer_branch
    %19 = sbr.rel target = $region3
  $region8: #{seq2seq_forward.3} parent=0 // loop_exit
    _

</llo_original>
